<compile_context>
chip_gen: v7x
topology: tpu7x:2x2x1
jax: 0.10.0
libtpu: 0.0.40
codegen_flags: <defaults>
</compile_context>

<pallas_src>
import functools

import jax
import jax.numpy as jnp
from jax.experimental import pallas as pl
from jax.experimental.pallas import tpu as pltpu


# ----------------------------------------------------------------------------
# Fused bottleneck kernel (one pallas_call per ResNet bottleneck block)
# ----------------------------------------------------------------------------
def _bottleneck_kernel(x_ref, w1_ref, b1_ref, w2_ref, b2_ref, w3_ref, b3_ref,
                       *rest, H, W, stride, has_ds):
    """Processes one image: relu(bn(conv1_1x1)) -> relu(bn(conv2_3x3/stride))
    -> bn(conv3_1x1) + identity/downsample -> relu.  BN pre-folded."""
    i = 0
    wd_ref = bd_ref = d_ref = None
    if has_ds:
        wd_ref, bd_ref = rest[0], rest[1]
        i = 2
    if stride == 2:
        d_ref = rest[i]
        i += 1
    o_ref, t1p_ref, cols_ref = rest[i], rest[i + 1], rest[i + 2]

    HW = H * W
    P = w1_ref.shape[1]                       # planes
    P0 = (W + 1 + 7) // 8 * 8                 # zero-row pad (>= W+1, 8-aligned)

    x = x_ref[...]                            # (HW, Cin) bf16

    # ---- conv1: 1x1 + folded-BN bias + ReLU --------------------------------
    t1 = jnp.dot(x, w1_ref[...], preferred_element_type=jnp.float32)
    t1 = jnp.maximum(t1 + b1_ref[...], 0.0).astype(jnp.bfloat16)      # (HW, P)

    # ---- row-padded VMEM copy used for the 3x3 tap gather -------------------
    zpad = jnp.zeros((P0, P), jnp.bfloat16)
    t1p_ref[pl.ds(0, P0), :] = zpad
    t1p_ref[pl.ds(P0 + HW, P0), :] = zpad
    t1p_ref[pl.ds(P0, HW), :] = t1

    # ---- build im2col (tap-major K = 9*P) at full spatial resolution --------
    w_of_row = jax.lax.broadcasted_iota(jnp.int32, (HW, P), 0) % W
    zeros = jnp.zeros((HW, P), jnp.bfloat16)
    mask_m1 = w_of_row >= 1                    # dw = -1 invalid where w == 0
    mask_p1 = w_of_row <= W - 2                # dw = +1 invalid where w == W-1
    for t in range(9):
        dh, dw = t // 3 - 1, t % 3 - 1
        v = t1p_ref[pl.ds(P0 + dh * W + dw, HW), :]
        if dw == -1:
            v = jnp.where(mask_m1, v, zeros)
        elif dw == 1:
            v = jnp.where(mask_p1, v, zeros)
        cols_ref[:, pl.ds(t * P, P)] = v

    # ---- conv2: 3x3 as a single deep-K matmul + bias + ReLU ----------------
    t2 = jnp.dot(cols_ref[...], w2_ref[...], preferred_element_type=jnp.float32)
    t2 = jnp.maximum(t2 + b2_ref[...], 0.0).astype(jnp.bfloat16)      # (HW, P)

    # ---- stride-2: decimate rows/cols with an exact 0/1 selection matmul ----
    if stride == 2:
        d = d_ref[...]                         # (HoWo, HW) 0/1 bf16
        t2 = jnp.dot(d, t2, preferred_element_type=jnp.float32).astype(jnp.bfloat16)
        xi = jnp.dot(d, x, preferred_element_type=jnp.float32).astype(jnp.bfloat16)
    else:
        xi = x

    # ---- identity / downsample branch ---------------------------------------
    if has_ds:
        ident = jnp.dot(xi, wd_ref[...],
                        preferred_element_type=jnp.float32) + bd_ref[...]
    else:
        ident = xi.astype(jnp.float32)         # Cin == Cout in this case

    # ---- conv3: 1x1 + bias + fused residual + ReLU --------------------------
    y = jnp.dot(t2, w3_ref[...], preferred_element_type=jnp.float32)
    y = y + b3_ref[...] + ident
    o_ref[...] = jnp.maximum(y, 0.0).astype(o_ref.dtype)


@functools.lru_cache(maxsize=None)
def _decimation_matrix(H, W):
    """(Ho*Wo, H*W) 0/1 matrix selecting the stride-2 grid (per image)."""
    Ho, Wo = H // 2, W // 2
    q = jnp.arange(Ho * Wo)
    src = (2 * (q // Wo)) * W + 2 * (q % Wo)
    p = jnp.arange(H * W)
    return (p[None, :] == src[:, None]).astype(jnp.bfloat16)


def bottleneck(x, blk):
    """x: (N, H, W, Cin) bf16 -> (N, H//s, W//s, Cout) bf16, one pallas_call."""
    N, H, W, Cin = x.shape
    s = blk['stride']
    has_ds = 'wd' in blk
    P = blk['w1'].shape[1]
    Cout = blk['w3'].shape[1]
    Ho, Wo = H // s, W // s
    HW, HoWo = H * W, Ho * Wo
    P0 = (W + 1 + 7) // 8 * 8
    R = HW + 2 * P0

    const2 = lambda n: (0, 0)
    in_specs = [
        pl.BlockSpec((None, HW, Cin), lambda n: (n, 0, 0)),
        pl.BlockSpec(blk['w1'].shape, const2),
        pl.BlockSpec(blk['b1'].shape, const2),
        pl.BlockSpec(blk['w2'].shape, const2),
        pl.BlockSpec(blk['b2'].shape, const2),
        pl.BlockSpec(blk['w3'].shape, const2),
        pl.BlockSpec(blk['b3'].shape, const2),
    ]
    args = [x.reshape(N, HW, Cin), blk['w1'], blk['b1'], blk['w2'], blk['b2'],
            blk['w3'], blk['b3']]
    if has_ds:
        in_specs += [pl.BlockSpec(blk['wd'].shape, const2),
                     pl.BlockSpec(blk['bd'].shape, const2)]
        args += [blk['wd'], blk['bd']]
    if s == 2:
        d = _decimation_matrix(H, W)
        in_specs.append(pl.BlockSpec(d.shape, const2))
        args.append(d)

    out = pl.pallas_call(
        functools.partial(_bottleneck_kernel, H=H, W=W, stride=s,
                          has_ds=has_ds),
        out_shape=jax.ShapeDtypeStruct((N, HoWo, Cout), jnp.bfloat16),
        grid=(N,),
        in_specs=in_specs,
        out_specs=pl.BlockSpec((None, HoWo, Cout), lambda n: (n, 0, 0)),
        scratch_shapes=[pltpu.VMEM((R, P), jnp.bfloat16),
                        pltpu.VMEM((HW, 9 * P), jnp.bfloat16)],
        compiler_params=pltpu.CompilerParams(
            dimension_semantics=("parallel",),
            vmem_limit_bytes=48 * 1024 * 1024),   # < v7x 64 MiB physical
    )(*args)
    return out.reshape(N, Ho, Wo, Cout)


# ----------------------------------------------------------------------------
# Stem: 7x7/s2/p3 conv (+BN +ReLU) as one im2col matmul, then 3x3/s2 maxpool
# ----------------------------------------------------------------------------
def _stem_matmul_kernel(x_ref, w_ref, b_ref, o_ref):
    y = jnp.dot(x_ref[...], w_ref[...], preferred_element_type=jnp.float32)
    o_ref[...] = jnp.maximum(y + b_ref[...], 0.0).astype(o_ref.dtype)


def _im2col(x, kh, kw, stride, pad):
    """bf16 patch matrix in (tap, channel) K-order."""
    # TODO(synk): stem im2col gather stays in XLA glue (Cin=3 is too narrow for
    # a lane-friendly in-kernel gather); it runs once per forward.
    N, H, W, C = x.shape
    xp = jnp.pad(x, ((0, 0), (pad, pad), (pad, pad), (0, 0)))
    Ho = (H + 2 * pad - kh) // stride + 1
    Wo = (W + 2 * pad - kw) // stride + 1
    cols = []
    for i in range(kh):
        for j in range(kw):
            cols.append(xp[:, i:i + stride * Ho:stride,
                           j:j + stride * Wo:stride, :])
    patches = jnp.concatenate(cols, axis=-1)
    return patches.reshape(N * Ho * Wo, kh * kw * C), (N, Ho, Wo)


def stem_conv7x7_s2(x, w, b):
    cols, (N, Ho, Wo) = _im2col(x, 7, 7, 2, 3)
    out = pl.pallas_call(
        _stem_matmul_kernel,
        out_shape=jax.ShapeDtypeStruct((cols.shape[0], w.shape[1]),
                                       jnp.bfloat16),
    )(cols, w, b)
    return out.reshape(N, Ho, Wo, w.shape[1])


def _maxpool_kernel(x_ref, o_ref):
    """3x3/s2/p1 max-pool; one padded image per grid step.

    Input block: (1, Ho+1, 2, Wo+1, 2C) -- even/odd rows split on dim 2,
    even/odd columns folded into the lane dim (first/second C lanes).
    """
    _, Ho, Wo, C = o_ref.shape
    v = x_ref[0]                       # (Ho+1, 2, Wo+1, 2C)
    he = v[:, 0]                       # even padded rows
    ho = v[:, 1]                       # odd padded rows
    vmax = jnp.maximum(jnp.maximum(he[:Ho], ho[:Ho]), he[1:Ho + 1])
    ev = vmax[:, :, :C]                # even padded columns
    od = vmax[:, :, C:]                # odd padded columns
    out = jnp.maximum(jnp.maximum(ev[:, :Wo, :], od[:, :Wo, :]),
                      ev[:, 1:Wo + 1, :])
    o_ref[0] = out


def maxpool_3x3_s2_p1(x):
    """MaxPool2d(kernel=3, stride=2, padding=1) on NHWC bf16 (post-ReLU) input."""
    N, H, W, C = x.shape
    Ho = (H - 1) // 2 + 1
    Wo = (W - 1) // 2 + 1
    neg = float(jnp.finfo(x.dtype).min)      # safe: input is post-ReLU (>= 0)
    hp = 1 + (H % 2)                         # make padded extents even
    wp = 1 + (W % 2)
    xp = jnp.pad(x, ((0, 0), (1, hp), (1, wp), (0, 0)), constant_values=neg)
    Hp, Wp = H + 1 + hp, W + 1 + wp          # = 2*(Ho+1), 2*(Wo+1)
    xr = xp.reshape(N, Hp // 2, 2, Wp // 2, 2 * C)

    return pl.pallas_call(
        _maxpool_kernel,
        out_shape=jax.ShapeDtypeStruct((N, Ho, Wo, C), x.dtype),
        grid=(N,),
        in_specs=[pl.BlockSpec((1, Hp // 2, 2, Wp // 2, 2 * C),
                               lambda n: (n, 0, 0, 0, 0))],
        out_specs=pl.BlockSpec((1, Ho, Wo, C), lambda n: (n, 0, 0, 0)),
        compiler_params=pltpu.CompilerParams(
            dimension_semantics=("parallel",)),
    )(xr)


# ----------------------------------------------------------------------------
# Backbone forward
# ----------------------------------------------------------------------------
def custom_backbone_forward(params, x_nchw):
    """Equivalent of CustomBackbone.forward: dict layer1..layer4 (NCHW f32)."""
    x = jnp.transpose(x_nchw, (0, 2, 3, 1)).astype(jnp.bfloat16)   # NCHW->NHWC
    x = stem_conv7x7_s2(x, params['stem_w'], params['stem_b'])
    x = maxpool_3x3_s2_p1(x)

    feats = {}
    for name, blocks in zip(('layer1', 'layer2', 'layer3', 'layer4'),
                            params['layers']):
        for blk in blocks:
            x = bottleneck(x, blk)
        feats[name] = jnp.transpose(x, (0, 3, 1, 2)).astype(jnp.float32)
    return feats


# ----------------------------------------------------------------------------
# Deterministic parameters (ResNet-50 shapes, eval BN folded into weights)
# ----------------------------------------------------------------------------
def init_params(key):
    keys = iter(jax.random.split(key, 1024))

    def conv_w(kh, kw, cin, cout):
        fan_in = kh * kw * cin
        return jax.random.normal(next(keys), (kh, kw, cin, cout),
                                 jnp.float32) * (2.0 / fan_in) ** 0.5

    def bn(c):
        k1, k2, k3, k4 = jax.random.split(next(keys), 4)
        gamma = jax.random.uniform(k1, (c,), jnp.float32, 0.5, 1.5)
        beta = 0.1 * jax.random.normal(k2, (c,), jnp.float32)
        mean = 0.1 * jax.random.normal(k3, (c,), jnp.float32)
        var = jax.random.uniform(k4, (c,), jnp.float32, 0.5, 1.5)
        scale = gamma / jnp.sqrt(var + 1e-5)
        bias = (beta - mean * scale).reshape(1, c)           # kernel-ready
        return scale, bias

    def fold1x1(w, scale):                    # (1,1,cin,cout) -> (cin,cout)
        return (w[0, 0] * scale[None, :]).astype(jnp.bfloat16)

    def fold3x3(w, scale):                    # (3,3,cin,cout) -> (9*cin,cout)
        cin, cout = w.shape[2], w.shape[3]
        return (w * scale[None, None, None, :]).astype(
            jnp.bfloat16).reshape(9 * cin, cout)

    params = {}
    w = conv_w(7, 7, 3, 64)
    s, b = bn(64)
    params['stem_w'] = (w * s[None, None, None, :]).astype(
        jnp.bfloat16).reshape(49 * 3, 64)
    params['stem_b'] = b

    inplanes = 64
    cfg = [(64, 3, 1), (128, 4, 2), (256, 6, 2), (512, 3, 2)]   # ResNet-50
    layers = []
    for planes, nblocks, stride in cfg:
        blocks = []
        for bi in range(nblocks):
            s_ = stride if bi == 0 else 1
            blk = {'stride': s_}
            w1 = conv_w(1, 1, inplanes, planes)
            sc, bb = bn(planes)
            blk['w1'], blk['b1'] = fold1x1(w1, sc), bb
            w2 = conv_w(3, 3, planes, planes)
            sc, bb = bn(planes)
            blk['w2'], blk['b2'] = fold3x3(w2, sc), bb
            w3 = conv_w(1, 1, planes, planes * 4)
            sc, bb = bn(planes * 4)
            blk['w3'], blk['b3'] = fold1x1(w3, sc), bb
            if s_ != 1 or inplanes != planes * 4:
                wd = conv_w(1, 1, inplanes, planes * 4)
                sc, bb = bn(planes * 4)
                blk['wd'], blk['bd'] = fold1x1(wd, sc), bb
            blocks.append(blk)
            inplanes = planes * 4
        layers.append(blocks)
    params['layers'] = layers
    return params


# ----------------------------------------------------------------------------
if __name__ == "__main__":
    key = jax.random.PRNGKey(0)
    pkey, xkey = jax.random.split(key)
    params = init_params(pkey)

    # Small NCHW input consistent with the module (3 RGB channels).
    x = jax.random.normal(xkey, (2, 3, 64, 64), jnp.float32)

    feats = custom_backbone_forward(params, x)
    jax.block_until_ready(feats)

    expected = {
        'layer1': (2, 256, 16, 16),
        'layer2': (2, 512, 8, 8),
        'layer3': (2, 1024, 4, 4),
        'layer4': (2, 2048, 2, 2),
    }
    for name, shape in expected.items():
        assert feats[name].shape == shape, (name, feats[name].shape)
        assert feats[name].dtype == jnp.float32
        assert bool(jnp.isfinite(feats[name]).all()), name
        assert float(feats[name].min()) >= 0.0, name      # post-ReLU outputs

    print("KERNEL_OK")
</pallas_src>

<mosaic_0001>
module attributes {stable_mosaic.version = 11 : i64} {
  func.func @_stem_matmul_kernel(%arg0: memref<2048x147xbf16, #tpu.memory_space<vmem>>, %arg1: memref<147x64xbf16, #tpu.memory_space<vmem>>, %arg2: memref<1x64xf32, #tpu.memory_space<vmem>>, %arg3: memref<2048x64xbf16, #tpu.memory_space<vmem>>) attributes {dimension_semantics = [], scalar_prefetch = 0 : i64, scratch_operands = 0 : i64, tpu.core_type = #tpu.core_type<tc>} {
    %c0 = arith.constant 0 : index
    %c0_0 = arith.constant 0 : index
    %0 = vector.load %arg0[%c0, %c0_0] : memref<2048x147xbf16, #tpu.memory_space<vmem>>, vector<2048x147xbf16>
    %c0_1 = arith.constant 0 : index
    %c0_2 = arith.constant 0 : index
    %1 = vector.load %arg1[%c0_1, %c0_2] : memref<147x64xbf16, #tpu.memory_space<vmem>>, vector<147x64xbf16>
    %cst = arith.constant dense<0.000000e+00> : vector<2048x64xf32>
    %2 = tpu.matmul %0, %1, %cst {dimension_numbers = #tpu.dot_dimension_numbers<[1], [0], [0], [1], [0, 0, 1, 1], [], []>} : vector<2048x147xbf16>, vector<147x64xbf16>, vector<2048x64xf32> -> vector<2048x64xf32>
    %c0_3 = arith.constant 0 : index
    %c0_4 = arith.constant 0 : index
    %3 = vector.load %arg2[%c0_3, %c0_4] : memref<1x64xf32, #tpu.memory_space<vmem>>, vector<1x64xf32>
    %4 = vector.broadcast %3 : vector<1x64xf32> to vector<2048x64xf32>
    %5 = arith.addf %2, %4 : vector<2048x64xf32>
    %cst_5 = arith.constant 0.000000e+00 : f32
    %6 = vector.broadcast %cst_5 : f32 to vector<2048x64xf32>
    %7 = arith.maximumf %5, %6 : vector<2048x64xf32>
    %8 = arith.truncf %7 : vector<2048x64xf32> to vector<2048x64xbf16>
    %c0_6 = arith.constant 0 : index
    %c0_7 = arith.constant 0 : index
    %9 = vector.load %arg3[%c0_6, %c0_7] : memref<2048x64xbf16, #tpu.memory_space<vmem>>, vector<2048x64xbf16>
    tpu.vector_store %arg3[%c0_6, %c0_7], %8 {strides = array<i32>} : memref<2048x64xbf16, #tpu.memory_space<vmem>>, vector<2048x64xbf16>,
    return
  }
}

</mosaic_0001>

<llo_original>
// kernel: tpu_custom_call.1
$region0: #{tpu_custom_call.1}
  #allocation0 [shape = 'u32[]', space=smem, size = 0x4, offset = 0x4, fixed_abs, tag = 'smem constant byte address 0x4 - core index']
  #allocation1 [shape = 'u32[144,128]{1,0:T(1,128)}', space=vmem, size = 0x12000, scoped, tag = 'internal scratch']
  %s0 = inlined_call_operand.vmem [shape: bf16[2048,147], index: 0, kind: input, shape index: {}]
  %s1 = inlined_call_operand.vmem [shape: bf16[147,64], index: 1, kind: input, shape index: {}]
  %s2 = inlined_call_operand.vmem [shape: f32[1,64], index: 2, kind: input, shape index: {}]
  %s3 = inlined_call_operand.vmem [shape: bf16[2048,64], index: 3, kind: output, shape index: {}]
  %s4 = sld [smem:[#allocation0]]
  $region22: #{tpu_custom_call.1} parent=0
    _
  %s6 = ssub.s32 1, %s4
  %s7 = scalar_select 0, %s6, %s4
  // Predicated region
  $region2: #{tpu_custom_call.1} parent=0 // pred_check
    _
  $region3: #{tpu_custom_call.1} parent=0 // pred_check_branch
    %9 = sbr.rel (0) target = $region5
  $region4: #{tpu_custom_call.1} parent=0 // pred_region
    _
  $region5: #{tpu_custom_call.1} parent=0 // pred_fallthru
    _
  // Predicated region
  $region6: #{tpu_custom_call.1} parent=0 // pred_check
    _
  $region7: #{tpu_custom_call.1} parent=0 // pred_check_branch
    %11 = sbr.rel (0) target = $region9
  $region8: #{tpu_custom_call.1} parent=0 // pred_region
    _
  $region9: #{tpu_custom_call.1} parent=0 // pred_fallthru
    _
  // Predicated region
  $region10: #{tpu_custom_call.1} parent=0 // pred_check
    _
  $region11: #{tpu_custom_call.1} parent=0 // pred_check_branch
    %13 = sbr.rel (0) target = $region13
  $region12: #{tpu_custom_call.1} parent=0 // pred_region
    _
  $region13: #{tpu_custom_call.1} parent=0 // pred_fallthru
    _
  %v15 = vld [vmem:[%s0] sm:$0xff]
  %v16 = vld [vmem:[%s0 + $0x8] sm:$0xff]
  %v17 = vld [vmem:[%s0 + $0x10] sm:$0xff]
  %v18 = vld [vmem:[%s0 + $0x18] sm:$0xff]
  %v19 = vld [vmem:[%s0 + $0x20] sm:$0xff]
  %v20 = vld [vmem:[%s0 + $0x28] sm:$0xff]
  %v21 = vld [vmem:[%s0 + $0x30] sm:$0xff]
  %v22 = vld [vmem:[%s0 + $0x38] sm:$0xff]
  %v23 = vld [vmem:[%s0 + $0x40] sm:$0xff]
  %v24 = vld [vmem:[%s0 + $0x48] sm:$0xff]
  %v25 = vld [vmem:[%s0 + $0x50] sm:$0xff]
  %v26 = vld [vmem:[%s0 + $0x58] sm:$0xff]
  %v27 = vld [vmem:[%s0 + $0x60] sm:$0xff]
  %v28 = vld [vmem:[%s0 + $0x68] sm:$0xff]
  %v29 = vld [vmem:[%s0 + $0x70] sm:$0xff]
  %v30 = vld [vmem:[%s0 + $0x78] sm:$0xff]
  %v31 = vld [vmem:[%s0 + $0x80] sm:$0xff]
  %v32 = vld [vmem:[%s0 + $0x88] sm:$0xff]
  %v33 = vld [vmem:[%s0 + $0x90] sm:$0xff]
  %v34 = vld [vmem:[%s0 + $0x98] sm:$0xff]
  %v35 = vld [vmem:[%s0 + $0xa0] sm:$0xff]
  %v36 = vld [vmem:[%s0 + $0xa8] sm:$0xff]
  %v37 = vld [vmem:[%s0 + $0xb0] sm:$0xff]
  %v38 = vld [vmem:[%s0 + $0xb8] sm:$0xff]
  %v39 = vld [vmem:[%s0 + $0xc0] sm:$0xff]
  %v40 = vld [vmem:[%s0 + $0xc8] sm:$0xff]
  %v41 = vld [vmem:[%s0 + $0xd0] sm:$0xff]
  %v42 = vld [vmem:[%s0 + $0xd8] sm:$0xff]
  %v43 = vld [vmem:[%s0 + $0xe0] sm:$0xff]
  %v44 = vld [vmem:[%s0 + $0xe8] sm:$0xff]
  %v45 = vld [vmem:[%s0 + $0xf0] sm:$0xff]
  %v46 = vld [vmem:[%s0 + $0xf8] sm:$0xff]
  %v47 = vld [vmem:[%s0 + $0x100] sm:$0xff]
  %v48 = vld [vmem:[%s0 + $0x108] sm:$0xff]
  %v49 = vld [vmem:[%s0 + $0x110] sm:$0xff]
  %v50 = vld [vmem:[%s0 + $0x118] sm:$0xff]
  %v51 = vld [vmem:[%s0 + $0x120] sm:$0xff]
  %v52 = vld [vmem:[%s0 + $0x128] sm:$0xff]
  %v53 = vld [vmem:[%s0 + $0x130] sm:$0xff]
  %v54 = vld [vmem:[%s0 + $0x138] sm:$0xff]
  %v55 = vld [vmem:[%s0 + $0x140] sm:$0xff]
  %v56 = vld [vmem:[%s0 + $0x148] sm:$0xff]
  %v57 = vld [vmem:[%s0 + $0x150] sm:$0xff]
  %v58 = vld [vmem:[%s0 + $0x158] sm:$0xff]
  %v59 = vld [vmem:[%s0 + $0x160] sm:$0xff]
  %v60 = vld [vmem:[%s0 + $0x168] sm:$0xff]
  %v61 = vld [vmem:[%s0 + $0x170] sm:$0xff]
  %v62 = vld [vmem:[%s0 + $0x178] sm:$0xff]
  %v63 = vld [vmem:[%s0 + $0x180] sm:$0xff]
  %v64 = vld [vmem:[%s0 + $0x188] sm:$0xff]
  %v65 = vld [vmem:[%s0 + $0x190] sm:$0xff]
  %v66 = vld [vmem:[%s0 + $0x198] sm:$0xff]
  %v67 = vld [vmem:[%s0 + $0x1a0] sm:$0xff]
  %v68 = vld [vmem:[%s0 + $0x1a8] sm:$0xff]
  %v69 = vld [vmem:[%s0 + $0x1b0] sm:$0xff]
  %v70 = vld [vmem:[%s0 + $0x1b8] sm:$0xff]
  %v71 = vld [vmem:[%s0 + $0x1c0] sm:$0xff]
  %v72 = vld [vmem:[%s0 + $0x1c8] sm:$0xff]
  %v73 = vld [vmem:[%s0 + $0x1d0] sm:$0xff]
  %v74 = vld [vmem:[%s0 + $0x1d8] sm:$0xff]
  %v75 = vld [vmem:[%s0 + $0x1e0] sm:$0xff]
  %v76 = vld [vmem:[%s0 + $0x1e8] sm:$0xff]
  %v77 = vld [vmem:[%s0 + $0x1f0] sm:$0xff]
  %v78 = vld [vmem:[%s0 + $0x1f8] sm:$0xff]
  %v79 = vld [vmem:[%s0 + $0x200] sm:$0xff]
  %v80 = vld [vmem:[%s0 + $0x208] sm:$0xff]
  %v81 = vld [vmem:[%s0 + $0x210] sm:$0xff]
  %v82 = vld [vmem:[%s0 + $0x218] sm:$0xff]
  %v83 = vld [vmem:[%s0 + $0x220] sm:$0xff]
  %v84 = vld [vmem:[%s0 + $0x228] sm:$0xff]
  %v85 = vld [vmem:[%s0 + $0x230] sm:$0xff]
  %v86 = vld [vmem:[%s0 + $0x238] sm:$0xff]
  %v87 = vld [vmem:[%s0 + $0x240] sm:$0xff]
  %v88 = vld [vmem:[%s0 + $0x248] sm:$0xff]
  %v89 = vld [vmem:[%s0 + $0x250] sm:$0xff]
  %v90 = vld [vmem:[%s0 + $0x258] sm:$0xff]
  %v91 = vld [vmem:[%s0 + $0x260] sm:$0xff]
  %v92 = vld [vmem:[%s0 + $0x268] sm:$0xff]
  %v93 = vld [vmem:[%s0 + $0x270] sm:$0xff]
  %v94 = vld [vmem:[%s0 + $0x278] sm:$0xff]
  %v95 = vld [vmem:[%s0 + $0x280] sm:$0xff]
  %v96 = vld [vmem:[%s0 + $0x288] sm:$0xff]
  %v97 = vld [vmem:[%s0 + $0x290] sm:$0xff]
  %v98 = vld [vmem:[%s0 + $0x298] sm:$0xff]
  %v99 = vld [vmem:[%s0 + $0x2a0] sm:$0xff]
  %v100 = vld [vmem:[%s0 + $0x2a8] sm:$0xff]
  %v101 = vld [vmem:[%s0 + $0x2b0] sm:$0xff]
  %v102 = vld [vmem:[%s0 + $0x2b8] sm:$0xff]
  %v103 = vld [vmem:[%s0 + $0x2c0] sm:$0xff]
  %v104 = vld [vmem:[%s0 + $0x2c8] sm:$0xff]
  %v105 = vld [vmem:[%s0 + $0x2d0] sm:$0xff]
  %v106 = vld [vmem:[%s0 + $0x2d8] sm:$0xff]
  %v107 = vld [vmem:[%s0 + $0x2e0] sm:$0xff]
  %v108 = vld [vmem:[%s0 + $0x2e8] sm:$0xff]
  %v109 = vld [vmem:[%s0 + $0x2f0] sm:$0xff]
  %v110 = vld [vmem:[%s0 + $0x2f8] sm:$0xff]
  %v111 = vld [vmem:[%s0 + $0x300] sm:$0xff]
  %v112 = vld [vmem:[%s0 + $0x308] sm:$0xff]
  %v113 = vld [vmem:[%s0 + $0x310] sm:$0xff]
  %v114 = vld [vmem:[%s0 + $0x318] sm:$0xff]
  %v115 = vld [vmem:[%s0 + $0x320] sm:$0xff]
  %v116 = vld [vmem:[%s0 + $0x328] sm:$0xff]
  %v117 = vld [vmem:[%s0 + $0x330] sm:$0xff]
  %v118 = vld [vmem:[%s0 + $0x338] sm:$0xff]
  %v119 = vld [vmem:[%s0 + $0x340] sm:$0xff]
  %v120 = vld [vmem:[%s0 + $0x348] sm:$0xff]
  %v121 = vld [vmem:[%s0 + $0x350] sm:$0xff]
  %v122 = vld [vmem:[%s0 + $0x358] sm:$0xff]
  %v123 = vld [vmem:[%s0 + $0x360] sm:$0xff]
  %v124 = vld [vmem:[%s0 + $0x368] sm:$0xff]
  %v125 = vld [vmem:[%s0 + $0x370] sm:$0xff]
  %v126 = vld [vmem:[%s0 + $0x378] sm:$0xff]
  %v127 = vld [vmem:[%s0 + $0x380] sm:$0xff]
  %v128 = vld [vmem:[%s0 + $0x388] sm:$0xff]
  %v129 = vld [vmem:[%s0 + $0x390] sm:$0xff]
  %v130 = vld [vmem:[%s0 + $0x398] sm:$0xff]
  %v131 = vld [vmem:[%s0 + $0x3a0] sm:$0xff]
  %v132 = vld [vmem:[%s0 + $0x3a8] sm:$0xff]
  %v133 = vld [vmem:[%s0 + $0x3b0] sm:$0xff]
  %v134 = vld [vmem:[%s0 + $0x3b8] sm:$0xff]
  %v135 = vld [vmem:[%s0 + $0x3c0] sm:$0xff]
  %v136 = vld [vmem:[%s0 + $0x3c8] sm:$0xff]
  %v137 = vld [vmem:[%s0 + $0x3d0] sm:$0xff]
  %v138 = vld [vmem:[%s0 + $0x3d8] sm:$0xff]
  %v139 = vld [vmem:[%s0 + $0x3e0] sm:$0xff]
  %v140 = vld [vmem:[%s0 + $0x3e8] sm:$0xff]
  %v141 = vld [vmem:[%s0 + $0x3f0] sm:$0xff]
  %v142 = vld [vmem:[%s0 + $0x3f8] sm:$0xff]
  %v143 = vld [vmem:[%s0 + $0x400] sm:$0xff]
  %v144 = vld [vmem:[%s0 + $0x408] sm:$0xff]
  %v145 = vld [vmem:[%s0 + $0x410] sm:$0xff]
  %v146 = vld [vmem:[%s0 + $0x418] sm:$0xff]
  %v147 = vld [vmem:[%s0 + $0x420] sm:$0xff]
  %v148 = vld [vmem:[%s0 + $0x428] sm:$0xff]
  %v149 = vld [vmem:[%s0 + $0x430] sm:$0xff]
  %v150 = vld [vmem:[%s0 + $0x438] sm:$0xff]
  %v151 = vld [vmem:[%s0 + $0x440] sm:$0xff]
  %v152 = vld [vmem:[%s0 + $0x448] sm:$0xff]
  %v153 = vld [vmem:[%s0 + $0x450] sm:$0xff]
  %v154 = vld [vmem:[%s0 + $0x458] sm:$0xff]
  %v155 = vld [vmem:[%s0 + $0x460] sm:$0xff]
  %v156 = vld [vmem:[%s0 + $0x468] sm:$0xff]
  %v157 = vld [vmem:[%s0 + $0x470] sm:$0xff]
  %v158 = vld [vmem:[%s0 + $0x478] sm:$0xff]
  %v159 = vld [vmem:[%s0 + $0x480] sm:$0xff]
  %v160 = vld [vmem:[%s0 + $0x488] sm:$0xff]
  %v161 = vld [vmem:[%s0 + $0x490] sm:$0xff]
  %v162 = vld [vmem:[%s0 + $0x498] sm:$0xff]
  %v163 = vld [vmem:[%s0 + $0x4a0] sm:$0xff]
  %v164 = vld [vmem:[%s0 + $0x4a8] sm:$0xff]
  %v165 = vld [vmem:[%s0 + $0x4b0] sm:$0xff]
  %v166 = vld [vmem:[%s0 + $0x4b8] sm:$0xff]
  %v167 = vld [vmem:[%s0 + $0x4c0] sm:$0xff]
  %v168 = vld [vmem:[%s0 + $0x4c8] sm:$0xff]
  %v169 = vld [vmem:[%s0 + $0x4d0] sm:$0xff]
  %v170 = vld [vmem:[%s0 + $0x4d8] sm:$0xff]
  %v171 = vld [vmem:[%s0 + $0x4e0] sm:$0xff]
  %v172 = vld [vmem:[%s0 + $0x4e8] sm:$0xff]
  %v173 = vld [vmem:[%s0 + $0x4f0] sm:$0xff]
  %v174 = vld [vmem:[%s0 + $0x4f8] sm:$0xff]
  %v175 = vld [vmem:[%s0 + $0x500] sm:$0xff]
  %v176 = vld [vmem:[%s0 + $0x508] sm:$0xff]
  %v177 = vld [vmem:[%s0 + $0x510] sm:$0xff]
  %v178 = vld [vmem:[%s0 + $0x518] sm:$0xff]
  %v179 = vld [vmem:[%s0 + $0x520] sm:$0xff]
  %v180 = vld [vmem:[%s0 + $0x528] sm:$0xff]
  %v181 = vld [vmem:[%s0 + $0x530] sm:$0xff]
  %v182 = vld [vmem:[%s0 + $0x538] sm:$0xff]
  %v183 = vld [vmem:[%s0 + $0x540] sm:$0xff]
  %v184 = vld [vmem:[%s0 + $0x548] sm:$0xff]
  %v185 = vld [vmem:[%s0 + $0x550] sm:$0xff]
  %v186 = vld [vmem:[%s0 + $0x558] sm:$0xff]
  %v187 = vld [vmem:[%s0 + $0x560] sm:$0xff]
  %v188 = vld [vmem:[%s0 + $0x568] sm:$0xff]
  %v189 = vld [vmem:[%s0 + $0x570] sm:$0xff]
  %v190 = vld [vmem:[%s0 + $0x578] sm:$0xff]
  %v191 = vld [vmem:[%s0 + $0x580] sm:$0xff]
  %v192 = vld [vmem:[%s0 + $0x588] sm:$0xff]
  %v193 = vld [vmem:[%s0 + $0x590] sm:$0xff]
  %v194 = vld [vmem:[%s0 + $0x598] sm:$0xff]
  %v195 = vld [vmem:[%s0 + $0x5a0] sm:$0xff]
  %v196 = vld [vmem:[%s0 + $0x5a8] sm:$0xff]
  %v197 = vld [vmem:[%s0 + $0x5b0] sm:$0xff]
  %v198 = vld [vmem:[%s0 + $0x5b8] sm:$0xff]
  %v199 = vld [vmem:[%s0 + $0x5c0] sm:$0xff]
  %v200 = vld [vmem:[%s0 + $0x5c8] sm:$0xff]
  %v201 = vld [vmem:[%s0 + $0x5d0] sm:$0xff]
  %v202 = vld [vmem:[%s0 + $0x5d8] sm:$0xff]
  %v203 = vld [vmem:[%s0 + $0x5e0] sm:$0xff]
  %v204 = vld [vmem:[%s0 + $0x5e8] sm:$0xff]
  %v205 = vld [vmem:[%s0 + $0x5f0] sm:$0xff]
  %v206 = vld [vmem:[%s0 + $0x5f8] sm:$0xff]
  %v207 = vld [vmem:[%s0 + $0x600] sm:$0xff]
  %v208 = vld [vmem:[%s0 + $0x608] sm:$0xff]
  %v209 = vld [vmem:[%s0 + $0x610] sm:$0xff]
  %v210 = vld [vmem:[%s0 + $0x618] sm:$0xff]
  %v211 = vld [vmem:[%s0 + $0x620] sm:$0xff]
  %v212 = vld [vmem:[%s0 + $0x628] sm:$0xff]
  %v213 = vld [vmem:[%s0 + $0x630] sm:$0xff]
  %v214 = vld [vmem:[%s0 + $0x638] sm:$0xff]
  %v215 = vld [vmem:[%s0 + $0x640] sm:$0xff]
  %v216 = vld [vmem:[%s0 + $0x648] sm:$0xff]
  %v217 = vld [vmem:[%s0 + $0x650] sm:$0xff]
  %v218 = vld [vmem:[%s0 + $0x658] sm:$0xff]
  %v219 = vld [vmem:[%s0 + $0x660] sm:$0xff]
  %v220 = vld [vmem:[%s0 + $0x668] sm:$0xff]
  %v221 = vld [vmem:[%s0 + $0x670] sm:$0xff]
  %v222 = vld [vmem:[%s0 + $0x678] sm:$0xff]
  %v223 = vld [vmem:[%s0 + $0x680] sm:$0xff]
  %v224 = vld [vmem:[%s0 + $0x688] sm:$0xff]
  %v225 = vld [vmem:[%s0 + $0x690] sm:$0xff]
  %v226 = vld [vmem:[%s0 + $0x698] sm:$0xff]
  %v227 = vld [vmem:[%s0 + $0x6a0] sm:$0xff]
  %v228 = vld [vmem:[%s0 + $0x6a8] sm:$0xff]
  %v229 = vld [vmem:[%s0 + $0x6b0] sm:$0xff]
  %v230 = vld [vmem:[%s0 + $0x6b8] sm:$0xff]
  %v231 = vld [vmem:[%s0 + $0x6c0] sm:$0xff]
  %v232 = vld [vmem:[%s0 + $0x6c8] sm:$0xff]
  %v233 = vld [vmem:[%s0 + $0x6d0] sm:$0xff]
  %v234 = vld [vmem:[%s0 + $0x6d8] sm:$0xff]
  %v235 = vld [vmem:[%s0 + $0x6e0] sm:$0xff]
  %v236 = vld [vmem:[%s0 + $0x6e8] sm:$0xff]
  %v237 = vld [vmem:[%s0 + $0x6f0] sm:$0xff]
  %v238 = vld [vmem:[%s0 + $0x6f8] sm:$0xff]
  %v239 = vld [vmem:[%s0 + $0x700] sm:$0xff]
  %v240 = vld [vmem:[%s0 + $0x708] sm:$0xff]
  %v241 = vld [vmem:[%s0 + $0x710] sm:$0xff]
  %v242 = vld [vmem:[%s0 + $0x718] sm:$0xff]
  %v243 = vld [vmem:[%s0 + $0x720] sm:$0xff]
  %v244 = vld [vmem:[%s0 + $0x728] sm:$0xff]
  %v245 = vld [vmem:[%s0 + $0x730] sm:$0xff]
  %v246 = vld [vmem:[%s0 + $0x738] sm:$0xff]
  %v247 = vld [vmem:[%s0 + $0x740] sm:$0xff]
  %v248 = vld [vmem:[%s0 + $0x748] sm:$0xff]
  %v249 = vld [vmem:[%s0 + $0x750] sm:$0xff]
  %v250 = vld [vmem:[%s0 + $0x758] sm:$0xff]
  %v251 = vld [vmem:[%s0 + $0x760] sm:$0xff]
  %v252 = vld [vmem:[%s0 + $0x768] sm:$0xff]
  %v253 = vld [vmem:[%s0 + $0x770] sm:$0xff]
  %v254 = vld [vmem:[%s0 + $0x778] sm:$0xff]
  %v255 = vld [vmem:[%s0 + $0x780] sm:$0xff]
  %v256 = vld [vmem:[%s0 + $0x788] sm:$0xff]
  %v257 = vld [vmem:[%s0 + $0x790] sm:$0xff]
  %v258 = vld [vmem:[%s0 + $0x798] sm:$0xff]
  %v259 = vld [vmem:[%s0 + $0x7a0] sm:$0xff]
  %v260 = vld [vmem:[%s0 + $0x7a8] sm:$0xff]
  %v261 = vld [vmem:[%s0 + $0x7b0] sm:$0xff]
  %v262 = vld [vmem:[%s0 + $0x7b8] sm:$0xff]
  %v263 = vld [vmem:[%s0 + $0x7c0] sm:$0xff]
  %v264 = vld [vmem:[%s0 + $0x7c8] sm:$0xff]
  %v265 = vld [vmem:[%s0 + $0x7d0] sm:$0xff]
  %v266 = vld [vmem:[%s0 + $0x7d8] sm:$0xff]
  %v267 = vld [vmem:[%s0 + $0x7e0] sm:$0xff]
  %v268 = vld [vmem:[%s0 + $0x7e8] sm:$0xff]
  %v269 = vld [vmem:[%s0 + $0x7f0] sm:$0xff]
  %v270 = vld [vmem:[%s0 + $0x7f8] sm:$0xff]
  %v271 = vld [vmem:[%s1] sm:$0xf]
  %v272 = vld [vmem:[%s1 + $0x4] sm:$0xf]
  %v273 = vld [vmem:[%s1 + $0x8] sm:$0xf]
  %v274 = vld [vmem:[%s1 + $0xc] sm:$0xf]
  %v275 = vld [vmem:[%s1 + $0x10] sm:$0xf]
  %v276 = vld [vmem:[%s1 + $0x14] sm:$0xf]
  %v277 = vld [vmem:[%s1 + $0x18] sm:$0xf]
  %v278 = vld [vmem:[%s1 + $0x1c] sm:$0xf]
  %v279 = vld [vmem:[%s1 + $0x20] sm:$0xf]
  %v280 = vld [vmem:[%s1 + $0x24] sm:$0xf]
  %v281 = vld [vmem:[%s1 + $0x28] sm:$0xf]
  %v282 = vld [vmem:[%s1 + $0x2c] sm:$0xf]
  %v283 = vld [vmem:[%s1 + $0x30] sm:$0xf]
  %v284 = vld [vmem:[%s1 + $0x34] sm:$0xf]
  %v285 = vld [vmem:[%s1 + $0x38] sm:$0xf]
  %v286 = vld [vmem:[%s1 + $0x3c] sm:$0xf]
  %v287 = vld [vmem:[%s1 + $0x40] sm:$0xf]
  %v288 = vld [vmem:[%s1 + $0x44] sm:$0xf]
  %v289 = vld [vmem:[%s1 + $0x48] sm:$0x3]
  %v290 = vld [vmem:[%s2] sm:$0x1]
  %v292 = vlaneseq
  %v293 = vshrl.u32 %v292, 7
  %v294 = vsub.s32 0, %v293
  %v295 = vrot.slane %v290, %v294
  %v553 = vunpack.c.l.b16 %v15
  %v554 = vunpack.c.h.b16 %v15
  %v555 = vunpack.c.l.b16 %v16
  %v556 = vunpack.c.h.b16 %v16
  %v557 = vunpack.c.l.b16 %v17
  %v558 = vunpack.c.h.b16 %v17
  %v559 = vunpack.c.l.b16 %v18
  %v560 = vunpack.c.h.b16 %v18
  %v561 = vunpack.c.l.b16 %v19
  %v562 = vunpack.c.h.b16 %v19
  %v563 = vunpack.c.l.b16 %v20
  %v564 = vunpack.c.h.b16 %v20
  %v565 = vunpack.c.l.b16 %v21
  %v566 = vunpack.c.h.b16 %v21
  %v567 = vunpack.c.l.b16 %v22
  %v568 = vunpack.c.h.b16 %v22
  %v569 = vunpack.c.l.b16 %v23
  %v570 = vunpack.c.h.b16 %v23
  %v571 = vunpack.c.l.b16 %v24
  %v572 = vunpack.c.h.b16 %v24
  %v573 = vunpack.c.l.b16 %v25
  %v574 = vunpack.c.h.b16 %v25
  %v575 = vunpack.c.l.b16 %v26
  %v576 = vunpack.c.h.b16 %v26
  %v577 = vunpack.c.l.b16 %v27
  %v578 = vunpack.c.h.b16 %v27
  %v579 = vunpack.c.l.b16 %v28
  %v580 = vunpack.c.h.b16 %v28
  %v581 = vunpack.c.l.b16 %v29
  %v582 = vunpack.c.h.b16 %v29
  %v583 = vunpack.c.l.b16 %v30
  %v584 = vunpack.c.h.b16 %v30
  %v585 = vunpack.c.l.b16 %v31
  %v586 = vunpack.c.h.b16 %v31
  %v587 = vunpack.c.l.b16 %v32
  %v588 = vunpack.c.h.b16 %v32
  %v589 = vunpack.c.l.b16 %v33
  %v590 = vunpack.c.h.b16 %v33
  %v591 = vunpack.c.l.b16 %v34
  %v592 = vunpack.c.h.b16 %v34
  %v593 = vunpack.c.l.b16 %v35
  %v594 = vunpack.c.h.b16 %v35
  %v595 = vunpack.c.l.b16 %v36
  %v596 = vunpack.c.h.b16 %v36
  %v597 = vunpack.c.l.b16 %v37
  %v598 = vunpack.c.h.b16 %v37
  %v599 = vunpack.c.l.b16 %v38
  %v600 = vunpack.c.h.b16 %v38
  %v601 = vunpack.c.l.b16 %v39
  %v602 = vunpack.c.h.b16 %v39
  %v603 = vunpack.c.l.b16 %v40
  %v604 = vunpack.c.h.b16 %v40
  %v605 = vunpack.c.l.b16 %v41
  %v606 = vunpack.c.h.b16 %v41
  %v607 = vunpack.c.l.b16 %v42
  %v608 = vunpack.c.h.b16 %v42
  %v609 = vunpack.c.l.b16 %v43
  %v610 = vunpack.c.h.b16 %v43
  %v611 = vunpack.c.l.b16 %v44
  %v612 = vunpack.c.h.b16 %v44
  %v613 = vunpack.c.l.b16 %v45
  %v614 = vunpack.c.h.b16 %v45
  %v615 = vunpack.c.l.b16 %v46
  %v616 = vunpack.c.h.b16 %v46
  %v617 = vunpack.c.l.b16 %v47
  %v618 = vunpack.c.h.b16 %v47
  %v619 = vunpack.c.l.b16 %v48
  %v620 = vunpack.c.h.b16 %v48
  %v621 = vunpack.c.l.b16 %v49
  %v622 = vunpack.c.h.b16 %v49
  %v623 = vunpack.c.l.b16 %v50
  %v624 = vunpack.c.h.b16 %v50
  %v625 = vunpack.c.l.b16 %v51
  %v626 = vunpack.c.h.b16 %v51
  %v627 = vunpack.c.l.b16 %v52
  %v628 = vunpack.c.h.b16 %v52
  %v629 = vunpack.c.l.b16 %v53
  %v630 = vunpack.c.h.b16 %v53
  %v631 = vunpack.c.l.b16 %v54
  %v632 = vunpack.c.h.b16 %v54
  %v633 = vunpack.c.l.b16 %v55
  %v634 = vunpack.c.h.b16 %v55
  %v635 = vunpack.c.l.b16 %v56
  %v636 = vunpack.c.h.b16 %v56
  %v637 = vunpack.c.l.b16 %v57
  %v638 = vunpack.c.h.b16 %v57
  %v639 = vunpack.c.l.b16 %v58
  %v640 = vunpack.c.h.b16 %v58
  %v641 = vunpack.c.l.b16 %v59
  %v642 = vunpack.c.h.b16 %v59
  %v643 = vunpack.c.l.b16 %v60
  %v644 = vunpack.c.h.b16 %v60
  %v645 = vunpack.c.l.b16 %v61
  %v646 = vunpack.c.h.b16 %v61
  %v647 = vunpack.c.l.b16 %v62
  %v648 = vunpack.c.h.b16 %v62
  %v649 = vunpack.c.l.b16 %v63
  %v650 = vunpack.c.h.b16 %v63
  %v651 = vunpack.c.l.b16 %v64
  %v652 = vunpack.c.h.b16 %v64
  %v653 = vunpack.c.l.b16 %v65
  %v654 = vunpack.c.h.b16 %v65
  %v655 = vunpack.c.l.b16 %v66
  %v656 = vunpack.c.h.b16 %v66
  %v657 = vunpack.c.l.b16 %v67
  %v658 = vunpack.c.h.b16 %v67
  %v659 = vunpack.c.l.b16 %v68
  %v660 = vunpack.c.h.b16 %v68
  %v661 = vunpack.c.l.b16 %v69
  %v662 = vunpack.c.h.b16 %v69
  %v663 = vunpack.c.l.b16 %v70
  %v664 = vunpack.c.h.b16 %v70
  %v665 = vunpack.c.l.b16 %v71
  %v666 = vunpack.c.h.b16 %v71
  %v667 = vunpack.c.l.b16 %v72
  %v668 = vunpack.c.h.b16 %v72
  %v669 = vunpack.c.l.b16 %v73
  %v670 = vunpack.c.h.b16 %v73
  %v671 = vunpack.c.l.b16 %v74
  %v672 = vunpack.c.h.b16 %v74
  %v673 = vunpack.c.l.b16 %v75
  %v674 = vunpack.c.h.b16 %v75
  %v675 = vunpack.c.l.b16 %v76
  %v676 = vunpack.c.h.b16 %v76
  %v677 = vunpack.c.l.b16 %v77
  %v678 = vunpack.c.h.b16 %v77
  %v679 = vunpack.c.l.b16 %v78
  %v680 = vunpack.c.h.b16 %v78
  %v681 = vunpack.c.l.b16 %v79
  %v682 = vunpack.c.h.b16 %v79
  %v683 = vunpack.c.l.b16 %v80
  %v684 = vunpack.c.h.b16 %v80
  %v685 = vunpack.c.l.b16 %v81
  %v686 = vunpack.c.h.b16 %v81
  %v687 = vunpack.c.l.b16 %v82
  %v688 = vunpack.c.h.b16 %v82
  %v689 = vunpack.c.l.b16 %v83
  %v690 = vunpack.c.h.b16 %v83
  %v691 = vunpack.c.l.b16 %v84
  %v692 = vunpack.c.h.b16 %v84
  %v693 = vunpack.c.l.b16 %v85
  %v694 = vunpack.c.h.b16 %v85
  %v695 = vunpack.c.l.b16 %v86
  %v696 = vunpack.c.h.b16 %v86
  %v697 = vunpack.c.l.b16 %v87
  %v698 = vunpack.c.h.b16 %v87
  %v699 = vunpack.c.l.b16 %v88
  %v700 = vunpack.c.h.b16 %v88
  %v701 = vunpack.c.l.b16 %v89
  %v702 = vunpack.c.h.b16 %v89
  %v703 = vunpack.c.l.b16 %v90
  %v704 = vunpack.c.h.b16 %v90
  %v705 = vunpack.c.l.b16 %v91
  %v706 = vunpack.c.h.b16 %v91
  %v707 = vunpack.c.l.b16 %v92
  %v708 = vunpack.c.h.b16 %v92
  %v709 = vunpack.c.l.b16 %v93
  %v710 = vunpack.c.h.b16 %v93
  %v711 = vunpack.c.l.b16 %v94
  %v712 = vunpack.c.h.b16 %v94
  %v713 = vunpack.c.l.b16 %v95
  %v714 = vunpack.c.h.b16 %v95
  %v715 = vunpack.c.l.b16 %v96
  %v716 = vunpack.c.h.b16 %v96
  %v717 = vunpack.c.l.b16 %v97
  %v718 = vunpack.c.h.b16 %v97
  %v719 = vunpack.c.l.b16 %v98
  %v720 = vunpack.c.h.b16 %v98
  %v721 = vunpack.c.l.b16 %v99
  %v722 = vunpack.c.h.b16 %v99
  %v723 = vunpack.c.l.b16 %v100
  %v724 = vunpack.c.h.b16 %v100
  %v725 = vunpack.c.l.b16 %v101
  %v726 = vunpack.c.h.b16 %v101
  %v727 = vunpack.c.l.b16 %v102
  %v728 = vunpack.c.h.b16 %v102
  %v729 = vunpack.c.l.b16 %v103
  %v730 = vunpack.c.h.b16 %v103
  %v731 = vunpack.c.l.b16 %v104
  %v732 = vunpack.c.h.b16 %v104
  %v733 = vunpack.c.l.b16 %v105
  %v734 = vunpack.c.h.b16 %v105
  %v735 = vunpack.c.l.b16 %v106
  %v736 = vunpack.c.h.b16 %v106
  %v737 = vunpack.c.l.b16 %v107
  %v738 = vunpack.c.h.b16 %v107
  %v739 = vunpack.c.l.b16 %v108
  %v740 = vunpack.c.h.b16 %v108
  %v741 = vunpack.c.l.b16 %v109
  %v742 = vunpack.c.h.b16 %v109
  %v743 = vunpack.c.l.b16 %v110
  %v744 = vunpack.c.h.b16 %v110
  %v745 = vunpack.c.l.b16 %v111
  %v746 = vunpack.c.h.b16 %v111
  %v747 = vunpack.c.l.b16 %v112
  %v748 = vunpack.c.h.b16 %v112
  %v749 = vunpack.c.l.b16 %v113
  %v750 = vunpack.c.h.b16 %v113
  %v751 = vunpack.c.l.b16 %v114
  %v752 = vunpack.c.h.b16 %v114
  %v753 = vunpack.c.l.b16 %v115
  %v754 = vunpack.c.h.b16 %v115
  %v755 = vunpack.c.l.b16 %v116
  %v756 = vunpack.c.h.b16 %v116
  %v757 = vunpack.c.l.b16 %v117
  %v758 = vunpack.c.h.b16 %v117
  %v759 = vunpack.c.l.b16 %v118
  %v760 = vunpack.c.h.b16 %v118
  %v761 = vunpack.c.l.b16 %v119
  %v762 = vunpack.c.h.b16 %v119
  %v763 = vunpack.c.l.b16 %v120
  %v764 = vunpack.c.h.b16 %v120
  %v765 = vunpack.c.l.b16 %v121
  %v766 = vunpack.c.h.b16 %v121
  %v767 = vunpack.c.l.b16 %v122
  %v768 = vunpack.c.h.b16 %v122
  %v769 = vunpack.c.l.b16 %v123
  %v770 = vunpack.c.h.b16 %v123
  %v771 = vunpack.c.l.b16 %v124
  %v772 = vunpack.c.h.b16 %v124
  %v773 = vunpack.c.l.b16 %v125
  %v774 = vunpack.c.h.b16 %v125
  %v775 = vunpack.c.l.b16 %v126
  %v776 = vunpack.c.h.b16 %v126
  %v777 = vunpack.c.l.b16 %v127
  %v778 = vunpack.c.h.b16 %v127
  %v779 = vunpack.c.l.b16 %v128
  %v780 = vunpack.c.h.b16 %v128
  %v781 = vunpack.c.l.b16 %v129
  %v782 = vunpack.c.h.b16 %v129
  %v783 = vunpack.c.l.b16 %v130
  %v784 = vunpack.c.h.b16 %v130
  %v785 = vunpack.c.l.b16 %v131
  %v786 = vunpack.c.h.b16 %v131
  %v787 = vunpack.c.l.b16 %v132
  %v788 = vunpack.c.h.b16 %v132
  %v789 = vunpack.c.l.b16 %v133
  %v790 = vunpack.c.h.b16 %v133
  %v791 = vunpack.c.l.b16 %v134
  %v792 = vunpack.c.h.b16 %v134
  %v793 = vunpack.c.l.b16 %v135
  %v794 = vunpack.c.h.b16 %v135
  %v795 = vunpack.c.l.b16 %v136
  %v796 = vunpack.c.h.b16 %v136
  %v797 = vunpack.c.l.b16 %v137
  %v798 = vunpack.c.h.b16 %v137
  %v799 = vunpack.c.l.b16 %v138
  %v800 = vunpack.c.h.b16 %v138
  %v801 = vunpack.c.l.b16 %v139
  %v802 = vunpack.c.h.b16 %v139
  %v803 = vunpack.c.l.b16 %v140
  %v804 = vunpack.c.h.b16 %v140
  %v805 = vunpack.c.l.b16 %v141
  %v806 = vunpack.c.h.b16 %v141
  %v807 = vunpack.c.l.b16 %v142
  %v808 = vunpack.c.h.b16 %v142
  %v809 = vunpack.c.l.b16 %v143
  %v810 = vunpack.c.h.b16 %v143
  %v811 = vunpack.c.l.b16 %v144
  %v812 = vunpack.c.h.b16 %v144
  %v813 = vunpack.c.l.b16 %v145
  %v814 = vunpack.c.h.b16 %v145
  %v815 = vunpack.c.l.b16 %v146
  %v816 = vunpack.c.h.b16 %v146
  %v817 = vunpack.c.l.b16 %v147
  %v818 = vunpack.c.h.b16 %v147
  %v819 = vunpack.c.l.b16 %v148
  %v820 = vunpack.c.h.b16 %v148
  %v821 = vunpack.c.l.b16 %v149
  %v822 = vunpack.c.h.b16 %v149
  %v823 = vunpack.c.l.b16 %v150
  %v824 = vunpack.c.h.b16 %v150
  %v825 = vunpack.c.l.b16 %v151
  %v826 = vunpack.c.h.b16 %v151
  %v827 = vunpack.c.l.b16 %v152
  %v828 = vunpack.c.h.b16 %v152
  %v829 = vunpack.c.l.b16 %v153
  %v830 = vunpack.c.h.b16 %v153
  %v831 = vunpack.c.l.b16 %v154
  %v832 = vunpack.c.h.b16 %v154
  %v833 = vunpack.c.l.b16 %v155
  %v834 = vunpack.c.h.b16 %v155
  %v835 = vunpack.c.l.b16 %v156
  %v836 = vunpack.c.h.b16 %v156
  %v837 = vunpack.c.l.b16 %v157
  %v838 = vunpack.c.h.b16 %v157
  %v839 = vunpack.c.l.b16 %v158
  %v840 = vunpack.c.h.b16 %v158
  %v841 = vunpack.c.l.b16 %v159
  %v842 = vunpack.c.h.b16 %v159
  %v843 = vunpack.c.l.b16 %v160
  %v844 = vunpack.c.h.b16 %v160
  %v845 = vunpack.c.l.b16 %v161
  %v846 = vunpack.c.h.b16 %v161
  %v847 = vunpack.c.l.b16 %v162
  %v848 = vunpack.c.h.b16 %v162
  %v849 = vunpack.c.l.b16 %v163
  %v850 = vunpack.c.h.b16 %v163
  %v851 = vunpack.c.l.b16 %v164
  %v852 = vunpack.c.h.b16 %v164
  %v853 = vunpack.c.l.b16 %v165
  %v854 = vunpack.c.h.b16 %v165
  %v855 = vunpack.c.l.b16 %v166
  %v856 = vunpack.c.h.b16 %v166
  %v857 = vunpack.c.l.b16 %v167
  %v858 = vunpack.c.h.b16 %v167
  %v859 = vunpack.c.l.b16 %v168
  %v860 = vunpack.c.h.b16 %v168
  %v861 = vunpack.c.l.b16 %v169
  %v862 = vunpack.c.h.b16 %v169
  %v863 = vunpack.c.l.b16 %v170
  %v864 = vunpack.c.h.b16 %v170
  %v865 = vunpack.c.l.b16 %v171
  %v866 = vunpack.c.h.b16 %v171
  %v867 = vunpack.c.l.b16 %v172
  %v868 = vunpack.c.h.b16 %v172
  %v869 = vunpack.c.l.b16 %v173
  %v870 = vunpack.c.h.b16 %v173
  %v871 = vunpack.c.l.b16 %v174
  %v872 = vunpack.c.h.b16 %v174
  %v873 = vunpack.c.l.b16 %v175
  %v874 = vunpack.c.h.b16 %v175
  %v875 = vunpack.c.l.b16 %v176
  %v876 = vunpack.c.h.b16 %v176
  %v877 = vunpack.c.l.b16 %v177
  %v878 = vunpack.c.h.b16 %v177
  %v879 = vunpack.c.l.b16 %v178
  %v880 = vunpack.c.h.b16 %v178
  %v881 = vunpack.c.l.b16 %v179
  %v882 = vunpack.c.h.b16 %v179
  %v883 = vunpack.c.l.b16 %v180
  %v884 = vunpack.c.h.b16 %v180
  %v885 = vunpack.c.l.b16 %v181
  %v886 = vunpack.c.h.b16 %v181
  %v887 = vunpack.c.l.b16 %v182
  %v888 = vunpack.c.h.b16 %v182
  %v889 = vunpack.c.l.b16 %v183
  %v890 = vunpack.c.h.b16 %v183
  %v891 = vunpack.c.l.b16 %v184
  %v892 = vunpack.c.h.b16 %v184
  %v893 = vunpack.c.l.b16 %v185
  %v894 = vunpack.c.h.b16 %v185
  %v895 = vunpack.c.l.b16 %v186
  %v896 = vunpack.c.h.b16 %v186
  %v897 = vunpack.c.l.b16 %v187
  %v898 = vunpack.c.h.b16 %v187
  %v899 = vunpack.c.l.b16 %v188
  %v900 = vunpack.c.h.b16 %v188
  %v901 = vunpack.c.l.b16 %v189
  %v902 = vunpack.c.h.b16 %v189
  %v903 = vunpack.c.l.b16 %v190
  %v904 = vunpack.c.h.b16 %v190
  %v905 = vunpack.c.l.b16 %v191
  %v906 = vunpack.c.h.b16 %v191
  %v907 = vunpack.c.l.b16 %v192
  %v908 = vunpack.c.h.b16 %v192
  %v909 = vunpack.c.l.b16 %v193
  %v910 = vunpack.c.h.b16 %v193
  %v911 = vunpack.c.l.b16 %v194
  %v912 = vunpack.c.h.b16 %v194
  %v913 = vunpack.c.l.b16 %v195
  %v914 = vunpack.c.h.b16 %v195
  %v915 = vunpack.c.l.b16 %v196
  %v916 = vunpack.c.h.b16 %v196
  %v917 = vunpack.c.l.b16 %v197
  %v918 = vunpack.c.h.b16 %v197
  %v919 = vunpack.c.l.b16 %v198
  %v920 = vunpack.c.h.b16 %v198
  %v921 = vunpack.c.l.b16 %v199
  %v922 = vunpack.c.h.b16 %v199
  %v923 = vunpack.c.l.b16 %v200
  %v924 = vunpack.c.h.b16 %v200
  %v925 = vunpack.c.l.b16 %v201
  %v926 = vunpack.c.h.b16 %v201
  %v927 = vunpack.c.l.b16 %v202
  %v928 = vunpack.c.h.b16 %v202
  %v929 = vunpack.c.l.b16 %v203
  %v930 = vunpack.c.h.b16 %v203
  %v931 = vunpack.c.l.b16 %v204
  %v932 = vunpack.c.h.b16 %v204
  %v933 = vunpack.c.l.b16 %v205
  %v934 = vunpack.c.h.b16 %v205
  %v935 = vunpack.c.l.b16 %v206
  %v936 = vunpack.c.h.b16 %v206
  %v937 = vunpack.c.l.b16 %v207
  %v938 = vunpack.c.h.b16 %v207
  %v939 = vunpack.c.l.b16 %v208
  %v940 = vunpack.c.h.b16 %v208
  %v941 = vunpack.c.l.b16 %v209
  %v942 = vunpack.c.h.b16 %v209
  %v943 = vunpack.c.l.b16 %v210
  %v944 = vunpack.c.h.b16 %v210
  %v945 = vunpack.c.l.b16 %v211
  %v946 = vunpack.c.h.b16 %v211
  %v947 = vunpack.c.l.b16 %v212
  %v948 = vunpack.c.h.b16 %v212
  %v949 = vunpack.c.l.b16 %v213
  %v950 = vunpack.c.h.b16 %v213
  %v951 = vunpack.c.l.b16 %v214
  %v952 = vunpack.c.h.b16 %v214
  %v953 = vunpack.c.l.b16 %v215
  %v954 = vunpack.c.h.b16 %v215
  %v955 = vunpack.c.l.b16 %v216
  %v956 = vunpack.c.h.b16 %v216
  %v957 = vunpack.c.l.b16 %v217
  %v958 = vunpack.c.h.b16 %v217
  %v959 = vunpack.c.l.b16 %v218
  %v960 = vunpack.c.h.b16 %v218
  %v961 = vunpack.c.l.b16 %v219
  %v962 = vunpack.c.h.b16 %v219
  %v963 = vunpack.c.l.b16 %v220
  %v964 = vunpack.c.h.b16 %v220
  %v965 = vunpack.c.l.b16 %v221
  %v966 = vunpack.c.h.b16 %v221
  %v967 = vunpack.c.l.b16 %v222
  %v968 = vunpack.c.h.b16 %v222
  %v969 = vunpack.c.l.b16 %v223
  %v970 = vunpack.c.h.b16 %v223
  %v971 = vunpack.c.l.b16 %v224
  %v972 = vunpack.c.h.b16 %v224
  %v973 = vunpack.c.l.b16 %v225
  %v974 = vunpack.c.h.b16 %v225
  %v975 = vunpack.c.l.b16 %v226
  %v976 = vunpack.c.h.b16 %v226
  %v977 = vunpack.c.l.b16 %v227
  %v978 = vunpack.c.h.b16 %v227
  %v979 = vunpack.c.l.b16 %v228
  %v980 = vunpack.c.h.b16 %v228
  %v981 = vunpack.c.l.b16 %v229
  %v982 = vunpack.c.h.b16 %v229
  %v983 = vunpack.c.l.b16 %v230
  %v984 = vunpack.c.h.b16 %v230
  %v985 = vunpack.c.l.b16 %v231
  %v986 = vunpack.c.h.b16 %v231
  %v987 = vunpack.c.l.b16 %v232
  %v988 = vunpack.c.h.b16 %v232
  %v989 = vunpack.c.l.b16 %v233
  %v990 = vunpack.c.h.b16 %v233
  %v991 = vunpack.c.l.b16 %v234
  %v992 = vunpack.c.h.b16 %v234
  %v993 = vunpack.c.l.b16 %v235
  %v994 = vunpack.c.h.b16 %v235
  %v995 = vunpack.c.l.b16 %v236
  %v996 = vunpack.c.h.b16 %v236
  %v997 = vunpack.c.l.b16 %v237
  %v998 = vunpack.c.h.b16 %v237
  %v999 = vunpack.c.l.b16 %v238
  %v1000 = vunpack.c.h.b16 %v238
  %v1001 = vunpack.c.l.b16 %v239
  %v1002 = vunpack.c.h.b16 %v239
  %v1003 = vunpack.c.l.b16 %v240
  %v1004 = vunpack.c.h.b16 %v240
  %v1005 = vunpack.c.l.b16 %v241
  %v1006 = vunpack.c.h.b16 %v241
  %v1007 = vunpack.c.l.b16 %v242
  %v1008 = vunpack.c.h.b16 %v242
  %v1009 = vunpack.c.l.b16 %v243
  %v1010 = vunpack.c.h.b16 %v243
  %v1011 = vunpack.c.l.b16 %v244
  %v1012 = vunpack.c.h.b16 %v244
  %v1013 = vunpack.c.l.b16 %v245
  %v1014 = vunpack.c.h.b16 %v245
  %v1015 = vunpack.c.l.b16 %v246
  %v1016 = vunpack.c.h.b16 %v246
  %v1017 = vunpack.c.l.b16 %v247
  %v1018 = vunpack.c.h.b16 %v247
  %v1019 = vunpack.c.l.b16 %v248
  %v1020 = vunpack.c.h.b16 %v248
  %v1021 = vunpack.c.l.b16 %v249
  %v1022 = vunpack.c.h.b16 %v249
  %v1023 = vunpack.c.l.b16 %v250
  %v1024 = vunpack.c.h.b16 %v250
  %v1025 = vunpack.c.l.b16 %v251
  %v1026 = vunpack.c.h.b16 %v251
  %v1027 = vunpack.c.l.b16 %v252
  %v1028 = vunpack.c.h.b16 %v252
  %v1029 = vunpack.c.l.b16 %v253
  %v1030 = vunpack.c.h.b16 %v253
  %v1031 = vunpack.c.l.b16 %v254
  %v1032 = vunpack.c.h.b16 %v254
  %v1033 = vunpack.c.l.b16 %v255
  %v1034 = vunpack.c.h.b16 %v255
  %v1035 = vunpack.c.l.b16 %v256
  %v1036 = vunpack.c.h.b16 %v256
  %v1037 = vunpack.c.l.b16 %v257
  %v1038 = vunpack.c.h.b16 %v257
  %v1039 = vunpack.c.l.b16 %v258
  %v1040 = vunpack.c.h.b16 %v258
  %v1041 = vunpack.c.l.b16 %v259
  %v1042 = vunpack.c.h.b16 %v259
  %v1043 = vunpack.c.l.b16 %v260
  %v1044 = vunpack.c.h.b16 %v260
  %v1045 = vunpack.c.l.b16 %v261
  %v1046 = vunpack.c.h.b16 %v261
  %v1047 = vunpack.c.l.b16 %v262
  %v1048 = vunpack.c.h.b16 %v262
  %v1049 = vunpack.c.l.b16 %v263
  %v1050 = vunpack.c.h.b16 %v263
  %v1051 = vunpack.c.l.b16 %v264
  %v1052 = vunpack.c.h.b16 %v264
  %v1053 = vunpack.c.l.b16 %v265
  %v1054 = vunpack.c.h.b16 %v265
  %v1055 = vunpack.c.l.b16 %v266
  %v1056 = vunpack.c.h.b16 %v266
  %v1057 = vunpack.c.l.b16 %v267
  %v1058 = vunpack.c.h.b16 %v267
  %v1059 = vunpack.c.l.b16 %v268
  %v1060 = vunpack.c.h.b16 %v268
  %v1061 = vunpack.c.l.b16 %v269
  %v1062 = vunpack.c.h.b16 %v269
  %v1063 = vunpack.c.l.b16 %v270
  %v1064 = vunpack.c.h.b16 %v270
  %v1065 = vpack.c.b16 %v555, %v553
  %v1066 = vpack.c.b16 %v556, %v554
  %v1067 = vpack.c.b16 %v559, %v557
  %v1068 = vpack.c.b16 %v560, %v558
  %v1069 = vpack.c.b16 %v563, %v561
  %v1070 = vpack.c.b16 %v564, %v562
  %v1071 = vpack.c.b16 %v567, %v565
  %v1072 = vpack.c.b16 %v568, %v566
  %v1073 = vpack.c.b16 %v571, %v569
  %v1074 = vpack.c.b16 %v572, %v570
  %v1075 = vpack.c.b16 %v575, %v573
  %v1076 = vpack.c.b16 %v576, %v574
  %v1077 = vpack.c.b16 %v579, %v577
  %v1078 = vpack.c.b16 %v580, %v578
  %v1079 = vpack.c.b16 %v583, %v581
  %v1080 = vpack.c.b16 %v584, %v582
  %v1081 = vpack.c.b16 %v587, %v585
  %v1082 = vpack.c.b16 %v588, %v586
  %v1083 = vpack.c.b16 %v591, %v589
  %v1084 = vpack.c.b16 %v592, %v590
  %v1085 = vpack.c.b16 %v595, %v593
  %v1086 = vpack.c.b16 %v596, %v594
  %v1087 = vpack.c.b16 %v599, %v597
  %v1088 = vpack.c.b16 %v600, %v598
  %v1089 = vpack.c.b16 %v603, %v601
  %v1090 = vpack.c.b16 %v604, %v602
  %v1091 = vpack.c.b16 %v607, %v605
  %v1092 = vpack.c.b16 %v608, %v606
  %v1093 = vpack.c.b16 %v611, %v609
  %v1094 = vpack.c.b16 %v612, %v610
  %v1095 = vpack.c.b16 %v615, %v613
  %v1096 = vpack.c.b16 %v616, %v614
  %v1097 = vpack.c.b16 %v619, %v617
  %v1098 = vpack.c.b16 %v620, %v618
  %v1099 = vpack.c.b16 %v623, %v621
  %v1100 = vpack.c.b16 %v624, %v622
  %v1101 = vpack.c.b16 %v627, %v625
  %v1102 = vpack.c.b16 %v628, %v626
  %v1103 = vpack.c.b16 %v631, %v629
  %v1104 = vpack.c.b16 %v632, %v630
  %v1105 = vpack.c.b16 %v635, %v633
  %v1106 = vpack.c.b16 %v636, %v634
  %v1107 = vpack.c.b16 %v639, %v637
  %v1108 = vpack.c.b16 %v640, %v638
  %v1109 = vpack.c.b16 %v643, %v641
  %v1110 = vpack.c.b16 %v644, %v642
  %v1111 = vpack.c.b16 %v647, %v645
  %v1112 = vpack.c.b16 %v648, %v646
  %v1113 = vpack.c.b16 %v651, %v649
  %v1114 = vpack.c.b16 %v652, %v650
  %v1115 = vpack.c.b16 %v655, %v653
  %v1116 = vpack.c.b16 %v656, %v654
  %v1117 = vpack.c.b16 %v659, %v657
  %v1118 = vpack.c.b16 %v660, %v658
  %v1119 = vpack.c.b16 %v663, %v661
  %v1120 = vpack.c.b16 %v664, %v662
  %v1121 = vpack.c.b16 %v667, %v665
  %v1122 = vpack.c.b16 %v668, %v666
  %v1123 = vpack.c.b16 %v671, %v669
  %v1124 = vpack.c.b16 %v672, %v670
  %v1125 = vpack.c.b16 %v675, %v673
  %v1126 = vpack.c.b16 %v676, %v674
  %v1127 = vpack.c.b16 %v679, %v677
  %v1128 = vpack.c.b16 %v680, %v678
  %v1129 = vpack.c.b16 %v683, %v681
  %v1130 = vpack.c.b16 %v684, %v682
  %v1131 = vpack.c.b16 %v687, %v685
  %v1132 = vpack.c.b16 %v688, %v686
  %v1133 = vpack.c.b16 %v691, %v689
  %v1134 = vpack.c.b16 %v692, %v690
  %v1135 = vpack.c.b16 %v695, %v693
  %v1136 = vpack.c.b16 %v696, %v694
  %v1137 = vpack.c.b16 %v699, %v697
  %v1138 = vpack.c.b16 %v700, %v698
  %v1139 = vpack.c.b16 %v703, %v701
  %v1140 = vpack.c.b16 %v704, %v702
  %v1141 = vpack.c.b16 %v707, %v705
  %v1142 = vpack.c.b16 %v708, %v706
  %v1143 = vpack.c.b16 %v711, %v709
  %v1144 = vpack.c.b16 %v712, %v710
  %v1145 = vpack.c.b16 %v715, %v713
  %v1146 = vpack.c.b16 %v716, %v714
  %v1147 = vpack.c.b16 %v719, %v717
  %v1148 = vpack.c.b16 %v720, %v718
  %v1149 = vpack.c.b16 %v723, %v721
  %v1150 = vpack.c.b16 %v724, %v722
  %v1151 = vpack.c.b16 %v727, %v725
  %v1152 = vpack.c.b16 %v728, %v726
  %v1153 = vpack.c.b16 %v731, %v729
  %v1154 = vpack.c.b16 %v732, %v730
  %v1155 = vpack.c.b16 %v735, %v733
  %v1156 = vpack.c.b16 %v736, %v734
  %v1157 = vpack.c.b16 %v739, %v737
  %v1158 = vpack.c.b16 %v740, %v738
  %v1159 = vpack.c.b16 %v743, %v741
  %v1160 = vpack.c.b16 %v744, %v742
  %v1161 = vpack.c.b16 %v747, %v745
  %v1162 = vpack.c.b16 %v748, %v746
  %v1163 = vpack.c.b16 %v751, %v749
  %v1164 = vpack.c.b16 %v752, %v750
  %v1165 = vpack.c.b16 %v755, %v753
  %v1166 = vpack.c.b16 %v756, %v754
  %v1167 = vpack.c.b16 %v759, %v757
  %v1168 = vpack.c.b16 %v760, %v758
  %v1169 = vpack.c.b16 %v763, %v761
  %v1170 = vpack.c.b16 %v764, %v762
  %v1171 = vpack.c.b16 %v767, %v765
  %v1172 = vpack.c.b16 %v768, %v766
  %v1173 = vpack.c.b16 %v771, %v769
  %v1174 = vpack.c.b16 %v772, %v770
  %v1175 = vpack.c.b16 %v775, %v773
  %v1176 = vpack.c.b16 %v776, %v774
  %v1177 = vpack.c.b16 %v779, %v777
  %v1178 = vpack.c.b16 %v780, %v778
  %v1179 = vpack.c.b16 %v783, %v781
  %v1180 = vpack.c.b16 %v784, %v782
  %v1181 = vpack.c.b16 %v787, %v785
  %v1182 = vpack.c.b16 %v788, %v786
  %v1183 = vpack.c.b16 %v791, %v789
  %v1184 = vpack.c.b16 %v792, %v790
  %v1185 = vpack.c.b16 %v795, %v793
  %v1186 = vpack.c.b16 %v796, %v794
  %v1187 = vpack.c.b16 %v799, %v797
  %v1188 = vpack.c.b16 %v800, %v798
  %v1189 = vpack.c.b16 %v803, %v801
  %v1190 = vpack.c.b16 %v804, %v802
  %v1191 = vpack.c.b16 %v807, %v805
  %v1192 = vpack.c.b16 %v808, %v806
  %v1193 = vpack.c.b16 %v811, %v809
  %v1194 = vpack.c.b16 %v812, %v810
  %v1195 = vpack.c.b16 %v815, %v813
  %v1196 = vpack.c.b16 %v816, %v814
  %v1197 = vpack.c.b16 %v819, %v817
  %v1198 = vpack.c.b16 %v820, %v818
  %v1199 = vpack.c.b16 %v823, %v821
  %v1200 = vpack.c.b16 %v824, %v822
  %v1201 = vpack.c.b16 %v827, %v825
  %v1202 = vpack.c.b16 %v828, %v826
  %v1203 = vpack.c.b16 %v831, %v829
  %v1204 = vpack.c.b16 %v832, %v830
  %v1205 = vpack.c.b16 %v835, %v833
  %v1206 = vpack.c.b16 %v836, %v834
  %v1207 = vpack.c.b16 %v839, %v837
  %v1208 = vpack.c.b16 %v840, %v838
  %v1209 = vpack.c.b16 %v843, %v841
  %v1210 = vpack.c.b16 %v844, %v842
  %v1211 = vpack.c.b16 %v847, %v845
  %v1212 = vpack.c.b16 %v848, %v846
  %v1213 = vpack.c.b16 %v851, %v849
  %v1214 = vpack.c.b16 %v852, %v850
  %v1215 = vpack.c.b16 %v855, %v853
  %v1216 = vpack.c.b16 %v856, %v854
  %v1217 = vpack.c.b16 %v859, %v857
  %v1218 = vpack.c.b16 %v860, %v858
  %v1219 = vpack.c.b16 %v863, %v861
  %v1220 = vpack.c.b16 %v864, %v862
  %v1221 = vpack.c.b16 %v867, %v865
  %v1222 = vpack.c.b16 %v868, %v866
  %v1223 = vpack.c.b16 %v871, %v869
  %v1224 = vpack.c.b16 %v872, %v870
  %v1225 = vpack.c.b16 %v875, %v873
  %v1226 = vpack.c.b16 %v876, %v874
  %v1227 = vpack.c.b16 %v879, %v877
  %v1228 = vpack.c.b16 %v880, %v878
  %v1229 = vpack.c.b16 %v883, %v881
  %v1230 = vpack.c.b16 %v884, %v882
  %v1231 = vpack.c.b16 %v887, %v885
  %v1232 = vpack.c.b16 %v888, %v886
  %v1233 = vpack.c.b16 %v891, %v889
  %v1234 = vpack.c.b16 %v892, %v890
  %v1235 = vpack.c.b16 %v895, %v893
  %v1236 = vpack.c.b16 %v896, %v894
  %v1237 = vpack.c.b16 %v899, %v897
  %v1238 = vpack.c.b16 %v900, %v898
  %v1239 = vpack.c.b16 %v903, %v901
  %v1240 = vpack.c.b16 %v904, %v902
  %v1241 = vpack.c.b16 %v907, %v905
  %v1242 = vpack.c.b16 %v908, %v906
  %v1243 = vpack.c.b16 %v911, %v909
  %v1244 = vpack.c.b16 %v912, %v910
  %v1245 = vpack.c.b16 %v915, %v913
  %v1246 = vpack.c.b16 %v916, %v914
  %v1247 = vpack.c.b16 %v919, %v917
  %v1248 = vpack.c.b16 %v920, %v918
  %v1249 = vpack.c.b16 %v923, %v921
  %v1250 = vpack.c.b16 %v924, %v922
  %v1251 = vpack.c.b16 %v927, %v925
  %v1252 = vpack.c.b16 %v928, %v926
  %v1253 = vpack.c.b16 %v931, %v929
  %v1254 = vpack.c.b16 %v932, %v930
  %v1255 = vpack.c.b16 %v935, %v933
  %v1256 = vpack.c.b16 %v936, %v934
  %v1257 = vpack.c.b16 %v939, %v937
  %v1258 = vpack.c.b16 %v940, %v938
  %v1259 = vpack.c.b16 %v943, %v941
  %v1260 = vpack.c.b16 %v944, %v942
  %v1261 = vpack.c.b16 %v947, %v945
  %v1262 = vpack.c.b16 %v948, %v946
  %v1263 = vpack.c.b16 %v951, %v949
  %v1264 = vpack.c.b16 %v952, %v950
  %v1265 = vpack.c.b16 %v955, %v953
  %v1266 = vpack.c.b16 %v956, %v954
  %v1267 = vpack.c.b16 %v959, %v957
  %v1268 = vpack.c.b16 %v960, %v958
  %v1269 = vpack.c.b16 %v963, %v961
  %v1270 = vpack.c.b16 %v964, %v962
  %v1271 = vpack.c.b16 %v967, %v965
  %v1272 = vpack.c.b16 %v968, %v966
  %v1273 = vpack.c.b16 %v971, %v969
  %v1274 = vpack.c.b16 %v972, %v970
  %v1275 = vpack.c.b16 %v975, %v973
  %v1276 = vpack.c.b16 %v976, %v974
  %v1277 = vpack.c.b16 %v979, %v977
  %v1278 = vpack.c.b16 %v980, %v978
  %v1279 = vpack.c.b16 %v983, %v981
  %v1280 = vpack.c.b16 %v984, %v982
  %v1281 = vpack.c.b16 %v987, %v985
  %v1282 = vpack.c.b16 %v988, %v986
  %v1283 = vpack.c.b16 %v991, %v989
  %v1284 = vpack.c.b16 %v992, %v990
  %v1285 = vpack.c.b16 %v995, %v993
  %v1286 = vpack.c.b16 %v996, %v994
  %v1287 = vpack.c.b16 %v999, %v997
  %v1288 = vpack.c.b16 %v1000, %v998
  %v1289 = vpack.c.b16 %v1003, %v1001
  %v1290 = vpack.c.b16 %v1004, %v1002
  %v1291 = vpack.c.b16 %v1007, %v1005
  %v1292 = vpack.c.b16 %v1008, %v1006
  %v1293 = vpack.c.b16 %v1011, %v1009
  %v1294 = vpack.c.b16 %v1012, %v1010
  %v1295 = vpack.c.b16 %v1015, %v1013
  %v1296 = vpack.c.b16 %v1016, %v1014
  %v1297 = vpack.c.b16 %v1019, %v1017
  %v1298 = vpack.c.b16 %v1020, %v1018
  %v1299 = vpack.c.b16 %v1023, %v1021
  %v1300 = vpack.c.b16 %v1024, %v1022
  %v1301 = vpack.c.b16 %v1027, %v1025
  %v1302 = vpack.c.b16 %v1028, %v1026
  %v1303 = vpack.c.b16 %v1031, %v1029
  %v1304 = vpack.c.b16 %v1032, %v1030
  %v1305 = vpack.c.b16 %v1035, %v1033
  %v1306 = vpack.c.b16 %v1036, %v1034
  %v1307 = vpack.c.b16 %v1039, %v1037
  %v1308 = vpack.c.b16 %v1040, %v1038
  %v1309 = vpack.c.b16 %v1043, %v1041
  %v1310 = vpack.c.b16 %v1044, %v1042
  %v1311 = vpack.c.b16 %v1047, %v1045
  %v1312 = vpack.c.b16 %v1048, %v1046
  %v1313 = vpack.c.b16 %v1051, %v1049
  %v1314 = vpack.c.b16 %v1052, %v1050
  %v1315 = vpack.c.b16 %v1055, %v1053
  %v1316 = vpack.c.b16 %v1056, %v1054
  %v1317 = vpack.c.b16 %v1059, %v1057
  %v1318 = vpack.c.b16 %v1060, %v1058
  %v1319 = vpack.c.b16 %v1063, %v1061
  %v1320 = vpack.c.b16 %v1064, %v1062
  %v1468 = vunpack.c.l.b16 %v271
  %v1469 = vunpack.c.l.b16 %v272
  %v1470 = vunpack.c.l.b16 %v273
  %v1471 = vunpack.c.l.b16 %v274
  %v1472 = vunpack.c.l.b16 %v275
  %v1473 = vunpack.c.l.b16 %v276
  %v1474 = vunpack.c.l.b16 %v277
  %v1475 = vunpack.c.l.b16 %v278
  %v1476 = vunpack.c.l.b16 %v279
  %v1477 = vunpack.c.l.b16 %v280
  %v1478 = vunpack.c.l.b16 %v281
  %v1479 = vunpack.c.l.b16 %v282
  %v1480 = vunpack.c.l.b16 %v283
  %v1481 = vunpack.c.l.b16 %v284
  %v1482 = vunpack.c.l.b16 %v285
  %v1483 = vunpack.c.l.b16 %v286
  %v1484 = vunpack.c.l.b16 %v287
  %v1485 = vunpack.c.l.b16 %v288
  %v1486 = vunpack.c.l.b16 %v289
  %v1487 = vpack.c.b16 %v1469, %v1468
  %v1488 = vpack.c.b16 %v1471, %v1470
  %v1489 = vpack.c.b16 %v1473, %v1472
  %v1490 = vpack.c.b16 %v1475, %v1474
  %v1491 = vpack.c.b16 %v1477, %v1476
  %v1492 = vpack.c.b16 %v1479, %v1478
  %v1493 = vpack.c.b16 %v1481, %v1480
  %v1494 = vpack.c.b16 %v1483, %v1482
  %v1495 = vpack.c.b16 %v1485, %v1484
  %v1496 = vpack.c.b16 %v1486, %v1486
  %vm1506 = vcmask 154624
  %v1508 = vsel %vm1506, %v1066, 0
  %v1511 = vsel %vm1506, %v1068, 0
  %v1514 = vsel %vm1506, %v1070, 0
  %v1517 = vsel %vm1506, %v1072, 0
  %v1520 = vsel %vm1506, %v1074, 0
  %v1523 = vsel %vm1506, %v1076, 0
  %v1526 = vsel %vm1506, %v1078, 0
  %v1529 = vsel %vm1506, %v1080, 0
  %v1532 = vsel %vm1506, %v1082, 0
  %v1535 = vsel %vm1506, %v1084, 0
  %v1538 = vsel %vm1506, %v1086, 0
  %v1541 = vsel %vm1506, %v1088, 0
  %v1544 = vsel %vm1506, %v1090, 0
  %v1547 = vsel %vm1506, %v1092, 0
  %v1550 = vsel %vm1506, %v1094, 0
  %v1553 = vsel %vm1506, %v1096, 0
  %v1556 = vsel %vm1506, %v1098, 0
  %v1559 = vsel %vm1506, %v1100, 0
  %v1562 = vsel %vm1506, %v1102, 0
  %v1565 = vsel %vm1506, %v1104, 0
  %v1568 = vsel %vm1506, %v1106, 0
  %v1571 = vsel %vm1506, %v1108, 0
  %v1574 = vsel %vm1506, %v1110, 0
  %v1577 = vsel %vm1506, %v1112, 0
  %v1580 = vsel %vm1506, %v1114, 0
  %v1583 = vsel %vm1506, %v1116, 0
  %v1586 = vsel %vm1506, %v1118, 0
  %v1589 = vsel %vm1506, %v1120, 0
  %v1592 = vsel %vm1506, %v1122, 0
  %v1595 = vsel %vm1506, %v1124, 0
  %v1598 = vsel %vm1506, %v1126, 0
  %v1601 = vsel %vm1506, %v1128, 0
  %v1604 = vsel %vm1506, %v1130, 0
  %v1607 = vsel %vm1506, %v1132, 0
  %v1610 = vsel %vm1506, %v1134, 0
  %v1613 = vsel %vm1506, %v1136, 0
  %v1616 = vsel %vm1506, %v1138, 0
  %v1619 = vsel %vm1506, %v1140, 0
  %v1622 = vsel %vm1506, %v1142, 0
  %v1625 = vsel %vm1506, %v1144, 0
  %v1628 = vsel %vm1506, %v1146, 0
  %v1631 = vsel %vm1506, %v1148, 0
  %v1634 = vsel %vm1506, %v1150, 0
  %v1637 = vsel %vm1506, %v1152, 0
  %v1640 = vsel %vm1506, %v1154, 0
  %v1643 = vsel %vm1506, %v1156, 0
  %v1646 = vsel %vm1506, %v1158, 0
  %v1649 = vsel %vm1506, %v1160, 0
  %v1652 = vsel %vm1506, %v1162, 0
  %v1655 = vsel %vm1506, %v1164, 0
  %v1658 = vsel %vm1506, %v1166, 0
  %v1661 = vsel %vm1506, %v1168, 0
  %v1664 = vsel %vm1506, %v1170, 0
  %v1667 = vsel %vm1506, %v1172, 0
  %v1670 = vsel %vm1506, %v1174, 0
  %v1673 = vsel %vm1506, %v1176, 0
  %v1676 = vsel %vm1506, %v1178, 0
  %v1679 = vsel %vm1506, %v1180, 0
  %v1682 = vsel %vm1506, %v1182, 0
  %v1685 = vsel %vm1506, %v1184, 0
  %v1688 = vsel %vm1506, %v1186, 0
  %v1691 = vsel %vm1506, %v1188, 0
  %v1694 = vsel %vm1506, %v1190, 0
  %v1697 = vsel %vm1506, %v1192, 0
  %v1700 = vsel %vm1506, %v1194, 0
  %v1703 = vsel %vm1506, %v1196, 0
  %v1706 = vsel %vm1506, %v1198, 0
  %v1709 = vsel %vm1506, %v1200, 0
  %v1712 = vsel %vm1506, %v1202, 0
  %v1715 = vsel %vm1506, %v1204, 0
  %v1718 = vsel %vm1506, %v1206, 0
  %v1721 = vsel %vm1506, %v1208, 0
  %v1724 = vsel %vm1506, %v1210, 0
  %v1727 = vsel %vm1506, %v1212, 0
  %v1730 = vsel %vm1506, %v1214, 0
  %v1733 = vsel %vm1506, %v1216, 0
  %v1736 = vsel %vm1506, %v1218, 0
  %v1739 = vsel %vm1506, %v1220, 0
  %v1742 = vsel %vm1506, %v1222, 0
  %v1745 = vsel %vm1506, %v1224, 0
  %v1748 = vsel %vm1506, %v1226, 0
  %v1751 = vsel %vm1506, %v1228, 0
  %v1754 = vsel %vm1506, %v1230, 0
  %v1757 = vsel %vm1506, %v1232, 0
  %v1760 = vsel %vm1506, %v1234, 0
  %v1763 = vsel %vm1506, %v1236, 0
  %v1766 = vsel %vm1506, %v1238, 0
  %v1769 = vsel %vm1506, %v1240, 0
  %v1772 = vsel %vm1506, %v1242, 0
  %v1775 = vsel %vm1506, %v1244, 0
  %v1778 = vsel %vm1506, %v1246, 0
  %v1781 = vsel %vm1506, %v1248, 0
  %v1784 = vsel %vm1506, %v1250, 0
  %v1787 = vsel %vm1506, %v1252, 0
  %v1790 = vsel %vm1506, %v1254, 0
  %v1793 = vsel %vm1506, %v1256, 0
  %v1796 = vsel %vm1506, %v1258, 0
  %v1799 = vsel %vm1506, %v1260, 0
  %v1802 = vsel %vm1506, %v1262, 0
  %v1805 = vsel %vm1506, %v1264, 0
  %v1808 = vsel %vm1506, %v1266, 0
  %v1811 = vsel %vm1506, %v1268, 0
  %v1814 = vsel %vm1506, %v1270, 0
  %v1817 = vsel %vm1506, %v1272, 0
  %v1820 = vsel %vm1506, %v1274, 0
  %v1823 = vsel %vm1506, %v1276, 0
  %v1826 = vsel %vm1506, %v1278, 0
  %v1829 = vsel %vm1506, %v1280, 0
  %v1832 = vsel %vm1506, %v1282, 0
  %v1835 = vsel %vm1506, %v1284, 0
  %v1838 = vsel %vm1506, %v1286, 0
  %v1841 = vsel %vm1506, %v1288, 0
  %v1844 = vsel %vm1506, %v1290, 0
  %v1847 = vsel %vm1506, %v1292, 0
  %v1850 = vsel %vm1506, %v1294, 0
  %v1853 = vsel %vm1506, %v1296, 0
  %v1856 = vsel %vm1506, %v1298, 0
  %v1859 = vsel %vm1506, %v1300, 0
  %v1862 = vsel %vm1506, %v1302, 0
  %v1865 = vsel %vm1506, %v1304, 0
  %v1868 = vsel %vm1506, %v1306, 0
  %v1871 = vsel %vm1506, %v1308, 0
  %v1874 = vsel %vm1506, %v1310, 0
  %v1877 = vsel %vm1506, %v1312, 0
  %v1880 = vsel %vm1506, %v1314, 0
  %v1883 = vsel %vm1506, %v1316, 0
  %v1886 = vsel %vm1506, %v1318, 0
  %v1889 = vsel %vm1506, %v1320, 0
  %vm1891 = vcmask 1040384
  %vm1892 = vcmask 1041408
  %v1893 = vsel %vm1891, 4294967295, 65535
  %v1894 = vsel %vm1892, %v1893, 0
  %v1896 = vand.u32 %v1496, %v1894
  %1898 = vmatprep.subr.bf16.mxu0 0
  %1899 = vmatpush1.bf16.msra.mxu0 %v1487
  %1900 = vmatprep.subr.bf16.mxu0 0
  %1901 = vmatpush1.bf16.msra.mxu0 %v1488
  %1902 = vmatprep.subr.bf16.mxu0 0
  %1903 = vmatpush1.bf16.msra.mxu0 %v1489
  %1904 = vmatprep.subr.bf16.mxu0 0
  %1905 = vmatpush1.bf16.msra.mxu0 %v1490
  %1906 = vmatprep.subr.bf16.mxu0 0
  %1907 = vmatpush1.bf16.msra.mxu0 %v1491
  %1908 = vmatprep.subr.bf16.mxu0 0
  %1909 = vmatpush1.bf16.msra.mxu0 %v1492
  %1910 = vmatprep.subr.bf16.mxu0 0
  %1911 = vmatpush1.bf16.msra.mxu0 %v1493
  %1912 = vmatprep.subr.bf16.mxu0 0
  %1913 = vmatpush1.bf16.msra.mxu0 %v1494
  %1914 = vmatprep.subr.bf16.mxu0 0
  %1915 = vmatpush1.bf16.msra.mxu0 %v1495
  %1916 = vmatprep.subr.bf16.mxu0 0
  %1917 = vmatpush1.bf16.msra.mxu0 %v1896
  %1918 = vmatprep.subr.bf16.mxu0 0
  %1919 = vmatpush1.bf16.msra.mxu0 0
  %1920 = vmatprep.subr.bf16.mxu0 0
  %1921 = vmatpush1.bf16.msra.mxu0 0
  %1922 = vmatprep.subr.bf16.mxu0 0
  %1923 = vmatpush1.bf16.msra.mxu0 0
  %1924 = vmatprep.subr.bf16.mxu0 0
  %1925 = vmatpush1.bf16.msra.mxu0 0
  %1926 = vmatprep.subr.bf16.mxu0 0
  %1927 = vmatpush1.bf16.msra.mxu0 0
  %1928 = vmatprep.subr.bf16.mxu0 0
  %1929 = vmatpush1.bf16.msra.mxu0 0
  %1930 = vmatprep.mubr.bf16.mxu0 %v1508
  %1931 = vmatmul.mubr.bf16.gmra.mrb[0].mxu0 %v1065
  %v1932 = vpop.f32.mrb[0].mxu0
  %v1933 = vadd.f32 %v295, %v1932
  %v1934 = vpop.f32.mrb[0].mxu0
  %v1935 = vpop.f32.mrb[0].mxu0
  %v1936 = vadd.f32 %v295, %v1935
  %v1937 = vpop.f32.mrb[0].mxu0
  %1938 = vmatprep.mubr.bf16.mxu0 %v1511
  %1939 = vmatmul.mubr.bf16.gmra.mrb[0].mxu0 %v1067
  %v1940 = vpop.f32.mrb[0].mxu0
  %v1941 = vadd.f32 %v295, %v1940
  %v1942 = vpop.f32.mrb[0].mxu0
  %v1943 = vpop.f32.mrb[0].mxu0
  %v1944 = vadd.f32 %v295, %v1943
  %v1945 = vpop.f32.mrb[0].mxu0
  %1946 = vmatprep.mubr.bf16.mxu0 %v1514
  %1947 = vmatmul.mubr.bf16.gmra.mrb[0].mxu0 %v1069
  %v1948 = vpop.f32.mrb[0].mxu0
  %v1949 = vadd.f32 %v295, %v1948
  %v1950 = vpop.f32.mrb[0].mxu0
  %v1951 = vpop.f32.mrb[0].mxu0
  %v1952 = vadd.f32 %v295, %v1951
  %v1953 = vpop.f32.mrb[0].mxu0
  %1954 = vmatprep.mubr.bf16.mxu0 %v1517
  %1955 = vmatmul.mubr.bf16.gmra.mrb[0].mxu0 %v1071
  %v1956 = vpop.f32.mrb[0].mxu0
  %v1957 = vadd.f32 %v295, %v1956
  %v1958 = vpop.f32.mrb[0].mxu0
  %v1959 = vpop.f32.mrb[0].mxu0
  %v1960 = vadd.f32 %v295, %v1959
  %v1961 = vpop.f32.mrb[0].mxu0
  %1962 = vmatprep.mubr.bf16.mxu0 %v1520
  %1963 = vmatmul.mubr.bf16.gmra.mrb[0].mxu0 %v1073
  %v1964 = vpop.f32.mrb[0].mxu0
  %v1965 = vadd.f32 %v295, %v1964
  %v1966 = vpop.f32.mrb[0].mxu0
  %v1967 = vpop.f32.mrb[0].mxu0
  %v1968 = vadd.f32 %v295, %v1967
  %v1969 = vpop.f32.mrb[0].mxu0
  %1970 = vmatprep.mubr.bf16.mxu0 %v1523
  %1971 = vmatmul.mubr.bf16.gmra.mrb[0].mxu0 %v1075
  %v1972 = vpop.f32.mrb[0].mxu0
  %v1973 = vadd.f32 %v295, %v1972
  %v1974 = vpop.f32.mrb[0].mxu0
  %v1975 = vpop.f32.mrb[0].mxu0
  %v1976 = vadd.f32 %v295, %v1975
  %v1977 = vpop.f32.mrb[0].mxu0
  %1978 = vmatprep.mubr.bf16.mxu0 %v1526
  %1979 = vmatmul.mubr.bf16.gmra.mrb[0].mxu0 %v1077
  %v1980 = vpop.f32.mrb[0].mxu0
  %v1981 = vadd.f32 %v295, %v1980
  %v1982 = vpop.f32.mrb[0].mxu0
  %v1983 = vpop.f32.mrb[0].mxu0
  %v1984 = vadd.f32 %v295, %v1983
  %v1985 = vpop.f32.mrb[0].mxu0
  %1986 = vmatprep.mubr.bf16.mxu0 %v1529
  %1987 = vmatmul.mubr.bf16.gmra.mrb[0].mxu0 %v1079
  %v1988 = vpop.f32.mrb[0].mxu0
  %v1989 = vadd.f32 %v295, %v1988
  %v1990 = vpop.f32.mrb[0].mxu0
  %v1991 = vpop.f32.mrb[0].mxu0
  %v1992 = vadd.f32 %v295, %v1991
  %v1993 = vpop.f32.mrb[0].mxu0
  %1994 = vmatprep.mubr.bf16.mxu0 %v1532
  %1995 = vmatmul.mubr.bf16.gmra.mrb[0].mxu0 %v1081
  %v1996 = vpop.f32.mrb[0].mxu0
  %v1997 = vadd.f32 %v295, %v1996
  %v1998 = vpop.f32.mrb[0].mxu0
  %v1999 = vpop.f32.mrb[0].mxu0
  %v2000 = vadd.f32 %v295, %v1999
  %v2001 = vpop.f32.mrb[0].mxu0
  %2002 = vmatprep.mubr.bf16.mxu0 %v1535
  %2003 = vmatmul.mubr.bf16.gmra.mrb[0].mxu0 %v1083
  %v2004 = vpop.f32.mrb[0].mxu0
  %v2005 = vadd.f32 %v295, %v2004
  %v2006 = vpop.f32.mrb[0].mxu0
  %v2007 = vpop.f32.mrb[0].mxu0
  %v2008 = vadd.f32 %v295, %v2007
  %v2009 = vpop.f32.mrb[0].mxu0
  %2010 = vmatprep.mubr.bf16.mxu0 %v1538
  %2011 = vmatmul.mubr.bf16.gmra.mrb[0].mxu0 %v1085
  %v2012 = vpop.f32.mrb[0].mxu0
  %v2013 = vadd.f32 %v295, %v2012
  %v2014 = vpop.f32.mrb[0].mxu0
  %v2015 = vpop.f32.mrb[0].mxu0
  %v2016 = vadd.f32 %v295, %v2015
  %v2017 = vpop.f32.mrb[0].mxu0
  %2018 = vmatprep.mubr.bf16.mxu0 %v1541
  %2019 = vmatmul.mubr.bf16.gmra.mrb[0].mxu0 %v1087
  %v2020 = vpop.f32.mrb[0].mxu0
  %v2021 = vadd.f32 %v295, %v2020
  %v2022 = vpop.f32.mrb[0].mxu0
  %v2023 = vpop.f32.mrb[0].mxu0
  %v2024 = vadd.f32 %v295, %v2023
  %v2025 = vpop.f32.mrb[0].mxu0
  %2026 = vmatprep.mubr.bf16.mxu0 %v1544
  %2027 = vmatmul.mubr.bf16.gmra.mrb[0].mxu0 %v1089
  %v2028 = vpop.f32.mrb[0].mxu0
  %v2029 = vadd.f32 %v295, %v2028
  %v2030 = vpop.f32.mrb[0].mxu0
  %v2031 = vpop.f32.mrb[0].mxu0
  %v2032 = vadd.f32 %v295, %v2031
  %v2033 = vpop.f32.mrb[0].mxu0
  %2034 = vmatprep.mubr.bf16.mxu0 %v1547
  %2035 = vmatmul.mubr.bf16.gmra.mrb[0].mxu0 %v1091
  %v2036 = vpop.f32.mrb[0].mxu0
  %v2037 = vadd.f32 %v295, %v2036
  %v2038 = vpop.f32.mrb[0].mxu0
  %v2039 = vpop.f32.mrb[0].mxu0
  %v2040 = vadd.f32 %v295, %v2039
  %v2041 = vpop.f32.mrb[0].mxu0
  %2042 = vmatprep.mubr.bf16.mxu0 %v1550
  %2043 = vmatmul.mubr.bf16.gmra.mrb[0].mxu0 %v1093
  %v2044 = vpop.f32.mrb[0].mxu0
  %v2045 = vadd.f32 %v295, %v2044
  %v2046 = vpop.f32.mrb[0].mxu0
  %v2047 = vpop.f32.mrb[0].mxu0
  %v2048 = vadd.f32 %v295, %v2047
  %v2049 = vpop.f32.mrb[0].mxu0
  %2050 = vmatprep.mubr.bf16.mxu0 %v1553
  %2051 = vmatmul.mubr.bf16.gmra.mrb[0].mxu0 %v1095
  %v2052 = vpop.f32.mrb[0].mxu0
  %v2053 = vadd.f32 %v295, %v2052
  %v2054 = vpop.f32.mrb[0].mxu0
  %v2055 = vpop.f32.mrb[0].mxu0
  %v2056 = vadd.f32 %v295, %v2055
  %v2057 = vpop.f32.mrb[0].mxu0
  %2058 = vmatprep.mubr.bf16.mxu0 %v1556
  %2059 = vmatmul.mubr.bf16.gmra.mrb[0].mxu0 %v1097
  %v2060 = vpop.f32.mrb[0].mxu0
  %v2061 = vadd.f32 %v295, %v2060
  %v2062 = vpop.f32.mrb[0].mxu0
  %v2063 = vpop.f32.mrb[0].mxu0
  %v2064 = vadd.f32 %v295, %v2063
  %v2065 = vpop.f32.mrb[0].mxu0
  %2066 = vmatprep.mubr.bf16.mxu0 %v1559
  %2067 = vmatmul.mubr.bf16.gmra.mrb[0].mxu0 %v1099
  %v2068 = vpop.f32.mrb[0].mxu0
  %v2069 = vadd.f32 %v295, %v2068
  %v2070 = vpop.f32.mrb[0].mxu0
  %v2071 = vpop.f32.mrb[0].mxu0
  %v2072 = vadd.f32 %v295, %v2071
  %v2073 = vpop.f32.mrb[0].mxu0
  %2074 = vmatprep.mubr.bf16.mxu0 %v1562
  %2075 = vmatmul.mubr.bf16.gmra.mrb[0].mxu0 %v1101
  %v2076 = vpop.f32.mrb[0].mxu0
  %v2077 = vadd.f32 %v295, %v2076
  %v2078 = vpop.f32.mrb[0].mxu0
  %v2079 = vpop.f32.mrb[0].mxu0
  %v2080 = vadd.f32 %v295, %v2079
  %v2081 = vpop.f32.mrb[0].mxu0
  %2082 = vmatprep.mubr.bf16.mxu0 %v1565
  %2083 = vmatmul.mubr.bf16.gmra.mrb[0].mxu0 %v1103
  %v2084 = vpop.f32.mrb[0].mxu0
  %v2085 = vadd.f32 %v295, %v2084
  %v2086 = vpop.f32.mrb[0].mxu0
  %v2087 = vpop.f32.mrb[0].mxu0
  %v2088 = vadd.f32 %v295, %v2087
  %v2089 = vpop.f32.mrb[0].mxu0
  %2090 = vmatprep.mubr.bf16.mxu0 %v1568
  %2091 = vmatmul.mubr.bf16.gmra.mrb[0].mxu0 %v1105
  %v2092 = vpop.f32.mrb[0].mxu0
  %v2093 = vadd.f32 %v295, %v2092
  %v2094 = vpop.f32.mrb[0].mxu0
  %v2095 = vpop.f32.mrb[0].mxu0
  %v2096 = vadd.f32 %v295, %v2095
  %v2097 = vpop.f32.mrb[0].mxu0
  %2098 = vmatprep.mubr.bf16.mxu0 %v1571
  %2099 = vmatmul.mubr.bf16.gmra.mrb[0].mxu0 %v1107
  %v2100 = vpop.f32.mrb[0].mxu0
  %v2101 = vadd.f32 %v295, %v2100
  %v2102 = vpop.f32.mrb[0].mxu0
  %v2103 = vpop.f32.mrb[0].mxu0
  %v2104 = vadd.f32 %v295, %v2103
  %v2105 = vpop.f32.mrb[0].mxu0
  %2106 = vmatprep.mubr.bf16.mxu0 %v1574
  %2107 = vmatmul.mubr.bf16.gmra.mrb[0].mxu0 %v1109
  %v2108 = vpop.f32.mrb[0].mxu0
  %v2109 = vadd.f32 %v295, %v2108
  %v2110 = vpop.f32.mrb[0].mxu0
  %v2111 = vpop.f32.mrb[0].mxu0
  %v2112 = vadd.f32 %v295, %v2111
  %v2113 = vpop.f32.mrb[0].mxu0
  %2114 = vmatprep.mubr.bf16.mxu0 %v1577
  %2115 = vmatmul.mubr.bf16.gmra.mrb[0].mxu0 %v1111
  %v2116 = vpop.f32.mrb[0].mxu0
  %v2117 = vadd.f32 %v295, %v2116
  %v2118 = vpop.f32.mrb[0].mxu0
  %v2119 = vpop.f32.mrb[0].mxu0
  %v2120 = vadd.f32 %v295, %v2119
  %v2121 = vpop.f32.mrb[0].mxu0
  %2122 = vmatprep.mubr.bf16.mxu0 %v1580
  %2123 = vmatmul.mubr.bf16.gmra.mrb[0].mxu0 %v1113
  %v2124 = vpop.f32.mrb[0].mxu0
  %v2125 = vadd.f32 %v295, %v2124
  %v2126 = vpop.f32.mrb[0].mxu0
  %v2127 = vpop.f32.mrb[0].mxu0
  %v2128 = vadd.f32 %v295, %v2127
  %v2129 = vpop.f32.mrb[0].mxu0
  %2130 = vmatprep.mubr.bf16.mxu0 %v1583
  %2131 = vmatmul.mubr.bf16.gmra.mrb[0].mxu0 %v1115
  %v2132 = vpop.f32.mrb[0].mxu0
  %v2133 = vadd.f32 %v295, %v2132
  %v2134 = vpop.f32.mrb[0].mxu0
  %v2135 = vpop.f32.mrb[0].mxu0
  %v2136 = vadd.f32 %v295, %v2135
  %v2137 = vpop.f32.mrb[0].mxu0
  %2138 = vmatprep.mubr.bf16.mxu0 %v1586
  %2139 = vmatmul.mubr.bf16.gmra.mrb[0].mxu0 %v1117
  %v2140 = vpop.f32.mrb[0].mxu0
  %v2141 = vadd.f32 %v295, %v2140
  %v2142 = vpop.f32.mrb[0].mxu0
  %v2143 = vpop.f32.mrb[0].mxu0
  %v2144 = vadd.f32 %v295, %v2143
  %v2145 = vpop.f32.mrb[0].mxu0
  %2146 = vmatprep.mubr.bf16.mxu0 %v1589
  %2147 = vmatmul.mubr.bf16.gmra.mrb[0].mxu0 %v1119
  %v2148 = vpop.f32.mrb[0].mxu0
  %v2149 = vadd.f32 %v295, %v2148
  %v2150 = vpop.f32.mrb[0].mxu0
  %v2151 = vpop.f32.mrb[0].mxu0
  %v2152 = vadd.f32 %v295, %v2151
  %v2153 = vpop.f32.mrb[0].mxu0
  %2154 = vmatprep.mubr.bf16.mxu0 %v1592
  %2155 = vmatmul.mubr.bf16.gmra.mrb[0].mxu0 %v1121
  %v2156 = vpop.f32.mrb[0].mxu0
  %v2157 = vadd.f32 %v295, %v2156
  %v2158 = vpop.f32.mrb[0].mxu0
  %v2159 = vpop.f32.mrb[0].mxu0
  %v2160 = vadd.f32 %v295, %v2159
  %v2161 = vpop.f32.mrb[0].mxu0
  %2162 = vmatprep.mubr.bf16.mxu0 %v1595
  %2163 = vmatmul.mubr.bf16.gmra.mrb[0].mxu0 %v1123
  %v2164 = vpop.f32.mrb[0].mxu0
  %v2165 = vadd.f32 %v295, %v2164
  %v2166 = vpop.f32.mrb[0].mxu0
  %v2167 = vpop.f32.mrb[0].mxu0
  %v2168 = vadd.f32 %v295, %v2167
  %v2169 = vpop.f32.mrb[0].mxu0
  %2170 = vmatprep.mubr.bf16.mxu0 %v1598
  %2171 = vmatmul.mubr.bf16.gmra.mrb[0].mxu0 %v1125
  %v2172 = vpop.f32.mrb[0].mxu0
  %v2173 = vadd.f32 %v295, %v2172
  %v2174 = vpop.f32.mrb[0].mxu0
  %v2175 = vpop.f32.mrb[0].mxu0
  %v2176 = vadd.f32 %v295, %v2175
  %v2177 = vpop.f32.mrb[0].mxu0
  %2178 = vmatprep.mubr.bf16.mxu0 %v1601
  %2179 = vmatmul.mubr.bf16.gmra.mrb[0].mxu0 %v1127
  %v2180 = vpop.f32.mrb[0].mxu0
  %v2181 = vadd.f32 %v295, %v2180
  %v2182 = vpop.f32.mrb[0].mxu0
  %v2183 = vpop.f32.mrb[0].mxu0
  %v2184 = vadd.f32 %v295, %v2183
  %v2185 = vpop.f32.mrb[0].mxu0
  %2186 = vmatprep.mubr.bf16.mxu0 %v1604
  %2187 = vmatmul.mubr.bf16.gmra.mrb[0].mxu0 %v1129
  %v2188 = vpop.f32.mrb[0].mxu0
  %v2189 = vadd.f32 %v295, %v2188
  %v2190 = vpop.f32.mrb[0].mxu0
  %v2191 = vpop.f32.mrb[0].mxu0
  %v2192 = vadd.f32 %v295, %v2191
  %v2193 = vpop.f32.mrb[0].mxu0
  %2194 = vmatprep.mubr.bf16.mxu0 %v1607
  %2195 = vmatmul.mubr.bf16.gmra.mrb[0].mxu0 %v1131
  %v2196 = vpop.f32.mrb[0].mxu0
  %v2197 = vadd.f32 %v295, %v2196
  %v2198 = vpop.f32.mrb[0].mxu0
  %v2199 = vpop.f32.mrb[0].mxu0
  %v2200 = vadd.f32 %v295, %v2199
  %v2201 = vpop.f32.mrb[0].mxu0
  %2202 = vmatprep.mubr.bf16.mxu0 %v1610
  %2203 = vmatmul.mubr.bf16.gmra.mrb[0].mxu0 %v1133
  %v2204 = vpop.f32.mrb[0].mxu0
  %v2205 = vadd.f32 %v295, %v2204
  %v2206 = vpop.f32.mrb[0].mxu0
  %v2207 = vpop.f32.mrb[0].mxu0
  %v2208 = vadd.f32 %v295, %v2207
  %v2209 = vpop.f32.mrb[0].mxu0
  %2210 = vmatprep.mubr.bf16.mxu0 %v1613
  %2211 = vmatmul.mubr.bf16.gmra.mrb[0].mxu0 %v1135
  %v2212 = vpop.f32.mrb[0].mxu0
  %v2213 = vadd.f32 %v295, %v2212
  %v2214 = vpop.f32.mrb[0].mxu0
  %v2215 = vpop.f32.mrb[0].mxu0
  %v2216 = vadd.f32 %v295, %v2215
  %v2217 = vpop.f32.mrb[0].mxu0
  %2218 = vmatprep.mubr.bf16.mxu0 %v1616
  %2219 = vmatmul.mubr.bf16.gmra.mrb[0].mxu0 %v1137
  %v2220 = vpop.f32.mrb[0].mxu0
  %v2221 = vadd.f32 %v295, %v2220
  %v2222 = vpop.f32.mrb[0].mxu0
  %v2223 = vpop.f32.mrb[0].mxu0
  %v2224 = vadd.f32 %v295, %v2223
  %v2225 = vpop.f32.mrb[0].mxu0
  %2226 = vmatprep.mubr.bf16.mxu0 %v1619
  %2227 = vmatmul.mubr.bf16.gmra.mrb[0].mxu0 %v1139
  %v2228 = vpop.f32.mrb[0].mxu0
  %v2229 = vadd.f32 %v295, %v2228
  %v2230 = vpop.f32.mrb[0].mxu0
  %v2231 = vpop.f32.mrb[0].mxu0
  %v2232 = vadd.f32 %v295, %v2231
  %v2233 = vpop.f32.mrb[0].mxu0
  %2234 = vmatprep.mubr.bf16.mxu0 %v1622
  %2235 = vmatmul.mubr.bf16.gmra.mrb[0].mxu0 %v1141
  %v2236 = vpop.f32.mrb[0].mxu0
  %v2237 = vadd.f32 %v295, %v2236
  %v2238 = vpop.f32.mrb[0].mxu0
  %v2239 = vpop.f32.mrb[0].mxu0
  %v2240 = vadd.f32 %v295, %v2239
  %v2241 = vpop.f32.mrb[0].mxu0
  %2242 = vmatprep.mubr.bf16.mxu0 %v1625
  %2243 = vmatmul.mubr.bf16.gmra.mrb[0].mxu0 %v1143
  %v2244 = vpop.f32.mrb[0].mxu0
  %v2245 = vadd.f32 %v295, %v2244
  %v2246 = vpop.f32.mrb[0].mxu0
  %v2247 = vpop.f32.mrb[0].mxu0
  %v2248 = vadd.f32 %v295, %v2247
  %v2249 = vpop.f32.mrb[0].mxu0
  %2250 = vmatprep.mubr.bf16.mxu0 %v1628
  %2251 = vmatmul.mubr.bf16.gmra.mrb[0].mxu0 %v1145
  %v2252 = vpop.f32.mrb[0].mxu0
  %v2253 = vadd.f32 %v295, %v2252
  %v2254 = vpop.f32.mrb[0].mxu0
  %v2255 = vpop.f32.mrb[0].mxu0
  %v2256 = vadd.f32 %v295, %v2255
  %v2257 = vpop.f32.mrb[0].mxu0
  %2258 = vmatprep.mubr.bf16.mxu0 %v1631
  %2259 = vmatmul.mubr.bf16.gmra.mrb[0].mxu0 %v1147
  %v2260 = vpop.f32.mrb[0].mxu0
  %v2261 = vadd.f32 %v295, %v2260
  %v2262 = vpop.f32.mrb[0].mxu0
  %v2263 = vpop.f32.mrb[0].mxu0
  %v2264 = vadd.f32 %v295, %v2263
  %v2265 = vpop.f32.mrb[0].mxu0
  %2266 = vmatprep.mubr.bf16.mxu0 %v1634
  %2267 = vmatmul.mubr.bf16.gmra.mrb[0].mxu0 %v1149
  %v2268 = vpop.f32.mrb[0].mxu0
  %v2269 = vadd.f32 %v295, %v2268
  %v2270 = vpop.f32.mrb[0].mxu0
  %v2271 = vpop.f32.mrb[0].mxu0
  %v2272 = vadd.f32 %v295, %v2271
  %v2273 = vpop.f32.mrb[0].mxu0
  %2274 = vmatprep.mubr.bf16.mxu0 %v1637
  %2275 = vmatmul.mubr.bf16.gmra.mrb[0].mxu0 %v1151
  %v2276 = vpop.f32.mrb[0].mxu0
  %v2277 = vadd.f32 %v295, %v2276
  %v2278 = vpop.f32.mrb[0].mxu0
  %v2279 = vpop.f32.mrb[0].mxu0
  %v2280 = vadd.f32 %v295, %v2279
  %v2281 = vpop.f32.mrb[0].mxu0
  %2282 = vmatprep.mubr.bf16.mxu0 %v1640
  %2283 = vmatmul.mubr.bf16.gmra.mrb[0].mxu0 %v1153
  %v2284 = vpop.f32.mrb[0].mxu0
  %v2285 = vadd.f32 %v295, %v2284
  %v2286 = vpop.f32.mrb[0].mxu0
  %v2287 = vpop.f32.mrb[0].mxu0
  %v2288 = vadd.f32 %v295, %v2287
  %v2289 = vpop.f32.mrb[0].mxu0
  %2290 = vmatprep.mubr.bf16.mxu0 %v1643
  %2291 = vmatmul.mubr.bf16.gmra.mrb[0].mxu0 %v1155
  %v2292 = vpop.f32.mrb[0].mxu0
  %v2293 = vadd.f32 %v295, %v2292
  %v2294 = vpop.f32.mrb[0].mxu0
  %v2295 = vpop.f32.mrb[0].mxu0
  %v2296 = vadd.f32 %v295, %v2295
  %v2297 = vpop.f32.mrb[0].mxu0
  %2298 = vmatprep.mubr.bf16.mxu0 %v1646
  %2299 = vmatmul.mubr.bf16.gmra.mrb[0].mxu0 %v1157
  %v2300 = vpop.f32.mrb[0].mxu0
  %v2301 = vadd.f32 %v295, %v2300
  %v2302 = vpop.f32.mrb[0].mxu0
  %v2303 = vpop.f32.mrb[0].mxu0
  %v2304 = vadd.f32 %v295, %v2303
  %v2305 = vpop.f32.mrb[0].mxu0
  %2306 = vmatprep.mubr.bf16.mxu0 %v1649
  %2307 = vmatmul.mubr.bf16.gmra.mrb[0].mxu0 %v1159
  %v2308 = vpop.f32.mrb[0].mxu0
  %v2309 = vadd.f32 %v295, %v2308
  %v2310 = vpop.f32.mrb[0].mxu0
  %v2311 = vpop.f32.mrb[0].mxu0
  %v2312 = vadd.f32 %v295, %v2311
  %v2313 = vpop.f32.mrb[0].mxu0
  %2314 = vmatprep.mubr.bf16.mxu0 %v1652
  %2315 = vmatmul.mubr.bf16.gmra.mrb[0].mxu0 %v1161
  %v2316 = vpop.f32.mrb[0].mxu0
  %v2317 = vadd.f32 %v295, %v2316
  %v2318 = vpop.f32.mrb[0].mxu0
  %v2319 = vpop.f32.mrb[0].mxu0
  %v2320 = vadd.f32 %v295, %v2319
  %v2321 = vpop.f32.mrb[0].mxu0
  %2322 = vmatprep.mubr.bf16.mxu0 %v1655
  %2323 = vmatmul.mubr.bf16.gmra.mrb[0].mxu0 %v1163
  %v2324 = vpop.f32.mrb[0].mxu0
  %v2325 = vadd.f32 %v295, %v2324
  %v2326 = vpop.f32.mrb[0].mxu0
  %v2327 = vpop.f32.mrb[0].mxu0
  %v2328 = vadd.f32 %v295, %v2327
  %v2329 = vpop.f32.mrb[0].mxu0
  %2330 = vmatprep.mubr.bf16.mxu0 %v1658
  %2331 = vmatmul.mubr.bf16.gmra.mrb[0].mxu0 %v1165
  %v2332 = vpop.f32.mrb[0].mxu0
  %v2333 = vadd.f32 %v295, %v2332
  %v2334 = vpop.f32.mrb[0].mxu0
  %v2335 = vpop.f32.mrb[0].mxu0
  %v2336 = vadd.f32 %v295, %v2335
  %v2337 = vpop.f32.mrb[0].mxu0
  %2338 = vmatprep.mubr.bf16.mxu0 %v1661
  %2339 = vmatmul.mubr.bf16.gmra.mrb[0].mxu0 %v1167
  %v2340 = vpop.f32.mrb[0].mxu0
  %v2341 = vadd.f32 %v295, %v2340
  %v2342 = vpop.f32.mrb[0].mxu0
  %v2343 = vpop.f32.mrb[0].mxu0
  %v2344 = vadd.f32 %v295, %v2343
  %v2345 = vpop.f32.mrb[0].mxu0
  %2346 = vmatprep.mubr.bf16.mxu0 %v1664
  %2347 = vmatmul.mubr.bf16.gmra.mrb[0].mxu0 %v1169
  %v2348 = vpop.f32.mrb[0].mxu0
  %v2349 = vadd.f32 %v295, %v2348
  %v2350 = vpop.f32.mrb[0].mxu0
  %v2351 = vpop.f32.mrb[0].mxu0
  %v2352 = vadd.f32 %v295, %v2351
  %v2353 = vpop.f32.mrb[0].mxu0
  %2354 = vmatprep.mubr.bf16.mxu0 %v1667
  %2355 = vmatmul.mubr.bf16.gmra.mrb[0].mxu0 %v1171
  %v2356 = vpop.f32.mrb[0].mxu0
  %v2357 = vadd.f32 %v295, %v2356
  %v2358 = vpop.f32.mrb[0].mxu0
  %v2359 = vpop.f32.mrb[0].mxu0
  %v2360 = vadd.f32 %v295, %v2359
  %v2361 = vpop.f32.mrb[0].mxu0
  %2362 = vmatprep.mubr.bf16.mxu0 %v1670
  %2363 = vmatmul.mubr.bf16.gmra.mrb[0].mxu0 %v1173
  %v2364 = vpop.f32.mrb[0].mxu0
  %v2365 = vadd.f32 %v295, %v2364
  %v2366 = vpop.f32.mrb[0].mxu0
  %v2367 = vpop.f32.mrb[0].mxu0
  %v2368 = vadd.f32 %v295, %v2367
  %v2369 = vpop.f32.mrb[0].mxu0
  %2370 = vmatprep.mubr.bf16.mxu0 %v1673
  %2371 = vmatmul.mubr.bf16.gmra.mrb[0].mxu0 %v1175
  %v2372 = vpop.f32.mrb[0].mxu0
  %v2373 = vadd.f32 %v295, %v2372
  %v2374 = vpop.f32.mrb[0].mxu0
  %v2375 = vpop.f32.mrb[0].mxu0
  %v2376 = vadd.f32 %v295, %v2375
  %v2377 = vpop.f32.mrb[0].mxu0
  %2378 = vmatprep.mubr.bf16.mxu0 %v1676
  %2379 = vmatmul.mubr.bf16.gmra.mrb[0].mxu0 %v1177
  %v2380 = vpop.f32.mrb[0].mxu0
  %v2381 = vadd.f32 %v295, %v2380
  %v2382 = vpop.f32.mrb[0].mxu0
  %v2383 = vpop.f32.mrb[0].mxu0
  %v2384 = vadd.f32 %v295, %v2383
  %v2385 = vpop.f32.mrb[0].mxu0
  %2386 = vmatprep.mubr.bf16.mxu0 %v1679
  %2387 = vmatmul.mubr.bf16.gmra.mrb[0].mxu0 %v1179
  %v2388 = vpop.f32.mrb[0].mxu0
  %v2389 = vadd.f32 %v295, %v2388
  %v2390 = vpop.f32.mrb[0].mxu0
  %v2391 = vpop.f32.mrb[0].mxu0
  %v2392 = vadd.f32 %v295, %v2391
  %v2393 = vpop.f32.mrb[0].mxu0
  %2394 = vmatprep.mubr.bf16.mxu0 %v1682
  %2395 = vmatmul.mubr.bf16.gmra.mrb[0].mxu0 %v1181
  %v2396 = vpop.f32.mrb[0].mxu0
  %v2397 = vadd.f32 %v295, %v2396
  %v2398 = vpop.f32.mrb[0].mxu0
  %v2399 = vpop.f32.mrb[0].mxu0
  %v2400 = vadd.f32 %v295, %v2399
  %v2401 = vpop.f32.mrb[0].mxu0
  %2402 = vmatprep.mubr.bf16.mxu0 %v1685
  %2403 = vmatmul.mubr.bf16.gmra.mrb[0].mxu0 %v1183
  %v2404 = vpop.f32.mrb[0].mxu0
  %v2405 = vadd.f32 %v295, %v2404
  %v2406 = vpop.f32.mrb[0].mxu0
  %v2407 = vpop.f32.mrb[0].mxu0
  %v2408 = vadd.f32 %v295, %v2407
  %v2409 = vpop.f32.mrb[0].mxu0
  %2410 = vmatprep.mubr.bf16.mxu0 %v1688
  %2411 = vmatmul.mubr.bf16.gmra.mrb[0].mxu0 %v1185
  %v2412 = vpop.f32.mrb[0].mxu0
  %v2413 = vadd.f32 %v295, %v2412
  %v2414 = vpop.f32.mrb[0].mxu0
  %v2415 = vpop.f32.mrb[0].mxu0
  %v2416 = vadd.f32 %v295, %v2415
  %v2417 = vpop.f32.mrb[0].mxu0
  %2418 = vmatprep.mubr.bf16.mxu0 %v1691
  %2419 = vmatmul.mubr.bf16.gmra.mrb[0].mxu0 %v1187
  %v2420 = vpop.f32.mrb[0].mxu0
  %v2421 = vadd.f32 %v295, %v2420
  %v2422 = vpop.f32.mrb[0].mxu0
  %v2423 = vpop.f32.mrb[0].mxu0
  %v2424 = vadd.f32 %v295, %v2423
  %v2425 = vpop.f32.mrb[0].mxu0
  %2426 = vmatprep.mubr.bf16.mxu0 %v1694
  %2427 = vmatmul.mubr.bf16.gmra.mrb[0].mxu0 %v1189
  %v2428 = vpop.f32.mrb[0].mxu0
  %v2429 = vadd.f32 %v295, %v2428
  %v2430 = vpop.f32.mrb[0].mxu0
  %v2431 = vpop.f32.mrb[0].mxu0
  %v2432 = vadd.f32 %v295, %v2431
  %v2433 = vpop.f32.mrb[0].mxu0
  %2434 = vmatprep.mubr.bf16.mxu0 %v1697
  %2435 = vmatmul.mubr.bf16.gmra.mrb[0].mxu0 %v1191
  %v2436 = vpop.f32.mrb[0].mxu0
  %v2437 = vadd.f32 %v295, %v2436
  %v2438 = vpop.f32.mrb[0].mxu0
  %v2439 = vpop.f32.mrb[0].mxu0
  %v2440 = vadd.f32 %v295, %v2439
  %v2441 = vpop.f32.mrb[0].mxu0
  %2442 = vmatprep.mubr.bf16.mxu0 %v1700
  %2443 = vmatmul.mubr.bf16.gmra.mrb[0].mxu0 %v1193
  %v2444 = vpop.f32.mrb[0].mxu0
  %v2445 = vadd.f32 %v295, %v2444
  %v2446 = vpop.f32.mrb[0].mxu0
  %v2447 = vpop.f32.mrb[0].mxu0
  %v2448 = vadd.f32 %v295, %v2447
  %v2449 = vpop.f32.mrb[0].mxu0
  %2450 = vmatprep.mubr.bf16.mxu0 %v1703
  %2451 = vmatmul.mubr.bf16.gmra.mrb[0].mxu0 %v1195
  %v2452 = vpop.f32.mrb[0].mxu0
  %v2453 = vadd.f32 %v295, %v2452
  %v2454 = vpop.f32.mrb[0].mxu0
  %v2455 = vpop.f32.mrb[0].mxu0
  %v2456 = vadd.f32 %v295, %v2455
  %v2457 = vpop.f32.mrb[0].mxu0
  %2458 = vmatprep.mubr.bf16.mxu0 %v1706
  %2459 = vmatmul.mubr.bf16.gmra.mrb[0].mxu0 %v1197
  %v2460 = vpop.f32.mrb[0].mxu0
  %v2461 = vadd.f32 %v295, %v2460
  %v2462 = vpop.f32.mrb[0].mxu0
  %v2463 = vpop.f32.mrb[0].mxu0
  %v2464 = vadd.f32 %v295, %v2463
  %v2465 = vpop.f32.mrb[0].mxu0
  %2466 = vmatprep.mubr.bf16.mxu0 %v1709
  %2467 = vmatmul.mubr.bf16.gmra.mrb[0].mxu0 %v1199
  %v2468 = vpop.f32.mrb[0].mxu0
  %v2469 = vadd.f32 %v295, %v2468
  %v2470 = vpop.f32.mrb[0].mxu0
  %v2471 = vpop.f32.mrb[0].mxu0
  %v2472 = vadd.f32 %v295, %v2471
  %v2473 = vpop.f32.mrb[0].mxu0
  %2474 = vmatprep.mubr.bf16.mxu0 %v1712
  %2475 = vmatmul.mubr.bf16.gmra.mrb[0].mxu0 %v1201
  %v2476 = vpop.f32.mrb[0].mxu0
  %v2477 = vadd.f32 %v295, %v2476
  %v2478 = vpop.f32.mrb[0].mxu0
  %v2479 = vpop.f32.mrb[0].mxu0
  %v2480 = vadd.f32 %v295, %v2479
  %v2481 = vpop.f32.mrb[0].mxu0
  %2482 = vmatprep.mubr.bf16.mxu0 %v1715
  %2483 = vmatmul.mubr.bf16.gmra.mrb[0].mxu0 %v1203
  %v2484 = vpop.f32.mrb[0].mxu0
  %v2485 = vadd.f32 %v295, %v2484
  %v2486 = vpop.f32.mrb[0].mxu0
  %v2487 = vpop.f32.mrb[0].mxu0
  %v2488 = vadd.f32 %v295, %v2487
  %v2489 = vpop.f32.mrb[0].mxu0
  %2490 = vmatprep.mubr.bf16.mxu0 %v1718
  %2491 = vmatmul.mubr.bf16.gmra.mrb[0].mxu0 %v1205
  %v2492 = vpop.f32.mrb[0].mxu0
  %v2493 = vadd.f32 %v295, %v2492
  %v2494 = vpop.f32.mrb[0].mxu0
  %v2495 = vpop.f32.mrb[0].mxu0
  %v2496 = vadd.f32 %v295, %v2495
  %v2497 = vpop.f32.mrb[0].mxu0
  %2498 = vmatprep.mubr.bf16.mxu0 %v1721
  %2499 = vmatmul.mubr.bf16.gmra.mrb[0].mxu0 %v1207
  %v2500 = vpop.f32.mrb[0].mxu0
  %v2501 = vadd.f32 %v295, %v2500
  %v2502 = vpop.f32.mrb[0].mxu0
  %v2503 = vpop.f32.mrb[0].mxu0
  %v2504 = vadd.f32 %v295, %v2503
  %v2505 = vpop.f32.mrb[0].mxu0
  %2506 = vmatprep.mubr.bf16.mxu0 %v1724
  %2507 = vmatmul.mubr.bf16.gmra.mrb[0].mxu0 %v1209
  %v2508 = vpop.f32.mrb[0].mxu0
  %v2509 = vadd.f32 %v295, %v2508
  %v2510 = vpop.f32.mrb[0].mxu0
  %v2511 = vpop.f32.mrb[0].mxu0
  %v2512 = vadd.f32 %v295, %v2511
  %v2513 = vpop.f32.mrb[0].mxu0
  %2514 = vmatprep.mubr.bf16.mxu0 %v1727
  %2515 = vmatmul.mubr.bf16.gmra.mrb[0].mxu0 %v1211
  %v2516 = vpop.f32.mrb[0].mxu0
  %v2517 = vadd.f32 %v295, %v2516
  %v2518 = vpop.f32.mrb[0].mxu0
  %v2519 = vpop.f32.mrb[0].mxu0
  %v2520 = vadd.f32 %v295, %v2519
  %v2521 = vpop.f32.mrb[0].mxu0
  %2522 = vmatprep.mubr.bf16.mxu0 %v1730
  %2523 = vmatmul.mubr.bf16.gmra.mrb[0].mxu0 %v1213
  %v2524 = vpop.f32.mrb[0].mxu0
  %v2525 = vadd.f32 %v295, %v2524
  %v2526 = vpop.f32.mrb[0].mxu0
  %v2527 = vpop.f32.mrb[0].mxu0
  %v2528 = vadd.f32 %v295, %v2527
  %v2529 = vpop.f32.mrb[0].mxu0
  %2530 = vmatprep.mubr.bf16.mxu0 %v1733
  %2531 = vmatmul.mubr.bf16.gmra.mrb[0].mxu0 %v1215
  %v2532 = vpop.f32.mrb[0].mxu0
  %v2533 = vadd.f32 %v295, %v2532
  %v2534 = vpop.f32.mrb[0].mxu0
  %v2535 = vpop.f32.mrb[0].mxu0
  %v2536 = vadd.f32 %v295, %v2535
  %v2537 = vpop.f32.mrb[0].mxu0
  %2538 = vmatprep.mubr.bf16.mxu0 %v1736
  %2539 = vmatmul.mubr.bf16.gmra.mrb[0].mxu0 %v1217
  %v2540 = vpop.f32.mrb[0].mxu0
  %v2541 = vadd.f32 %v295, %v2540
  %v2542 = vpop.f32.mrb[0].mxu0
  %v2543 = vpop.f32.mrb[0].mxu0
  %v2544 = vadd.f32 %v295, %v2543
  %v2545 = vpop.f32.mrb[0].mxu0
  %2546 = vmatprep.mubr.bf16.mxu0 %v1739
  %2547 = vmatmul.mubr.bf16.gmra.mrb[0].mxu0 %v1219
  %v2548 = vpop.f32.mrb[0].mxu0
  %v2549 = vadd.f32 %v295, %v2548
  %v2550 = vpop.f32.mrb[0].mxu0
  %v2551 = vpop.f32.mrb[0].mxu0
  %v2552 = vadd.f32 %v295, %v2551
  %v2553 = vpop.f32.mrb[0].mxu0
  %2554 = vmatprep.mubr.bf16.mxu0 %v1742
  %2555 = vmatmul.mubr.bf16.gmra.mrb[0].mxu0 %v1221
  %v2556 = vpop.f32.mrb[0].mxu0
  %v2557 = vadd.f32 %v295, %v2556
  %v2558 = vpop.f32.mrb[0].mxu0
  %v2559 = vpop.f32.mrb[0].mxu0
  %v2560 = vadd.f32 %v295, %v2559
  %v2561 = vpop.f32.mrb[0].mxu0
  %2562 = vmatprep.mubr.bf16.mxu0 %v1745
  %2563 = vmatmul.mubr.bf16.gmra.mrb[0].mxu0 %v1223
  %v2564 = vpop.f32.mrb[0].mxu0
  %v2565 = vadd.f32 %v295, %v2564
  %v2566 = vpop.f32.mrb[0].mxu0
  %v2567 = vpop.f32.mrb[0].mxu0
  %v2568 = vadd.f32 %v295, %v2567
  %v2569 = vpop.f32.mrb[0].mxu0
  %2570 = vmatprep.mubr.bf16.mxu0 %v1748
  %2571 = vmatmul.mubr.bf16.gmra.mrb[0].mxu0 %v1225
  %v2572 = vpop.f32.mrb[0].mxu0
  %v2573 = vadd.f32 %v295, %v2572
  %v2574 = vpop.f32.mrb[0].mxu0
  %v2575 = vpop.f32.mrb[0].mxu0
  %v2576 = vadd.f32 %v295, %v2575
  %v2577 = vpop.f32.mrb[0].mxu0
  %2578 = vmatprep.mubr.bf16.mxu0 %v1751
  %2579 = vmatmul.mubr.bf16.gmra.mrb[0].mxu0 %v1227
  %v2580 = vpop.f32.mrb[0].mxu0
  %v2581 = vadd.f32 %v295, %v2580
  %v2582 = vpop.f32.mrb[0].mxu0
  %v2583 = vpop.f32.mrb[0].mxu0
  %v2584 = vadd.f32 %v295, %v2583
  %v2585 = vpop.f32.mrb[0].mxu0
  %2586 = vmatprep.mubr.bf16.mxu0 %v1754
  %2587 = vmatmul.mubr.bf16.gmra.mrb[0].mxu0 %v1229
  %v2588 = vpop.f32.mrb[0].mxu0
  %v2589 = vadd.f32 %v295, %v2588
  %v2590 = vpop.f32.mrb[0].mxu0
  %v2591 = vpop.f32.mrb[0].mxu0
  %v2592 = vadd.f32 %v295, %v2591
  %v2593 = vpop.f32.mrb[0].mxu0
  %2594 = vmatprep.mubr.bf16.mxu0 %v1757
  %2595 = vmatmul.mubr.bf16.gmra.mrb[0].mxu0 %v1231
  %v2596 = vpop.f32.mrb[0].mxu0
  %v2597 = vadd.f32 %v295, %v2596
  %v2598 = vpop.f32.mrb[0].mxu0
  %v2599 = vpop.f32.mrb[0].mxu0
  %v2600 = vadd.f32 %v295, %v2599
  %v2601 = vpop.f32.mrb[0].mxu0
  %2602 = vmatprep.mubr.bf16.mxu0 %v1760
  %2603 = vmatmul.mubr.bf16.gmra.mrb[0].mxu0 %v1233
  %v2604 = vpop.f32.mrb[0].mxu0
  %v2605 = vadd.f32 %v295, %v2604
  %v2606 = vpop.f32.mrb[0].mxu0
  %v2607 = vpop.f32.mrb[0].mxu0
  %v2608 = vadd.f32 %v295, %v2607
  %v2609 = vpop.f32.mrb[0].mxu0
  %2610 = vmatprep.mubr.bf16.mxu0 %v1763
  %2611 = vmatmul.mubr.bf16.gmra.mrb[0].mxu0 %v1235
  %v2612 = vpop.f32.mrb[0].mxu0
  %v2613 = vadd.f32 %v295, %v2612
  %v2614 = vpop.f32.mrb[0].mxu0
  %v2615 = vpop.f32.mrb[0].mxu0
  %v2616 = vadd.f32 %v295, %v2615
  %v2617 = vpop.f32.mrb[0].mxu0
  %2618 = vmatprep.mubr.bf16.mxu0 %v1766
  %2619 = vmatmul.mubr.bf16.gmra.mrb[0].mxu0 %v1237
  %v2620 = vpop.f32.mrb[0].mxu0
  %v2621 = vadd.f32 %v295, %v2620
  %v2622 = vpop.f32.mrb[0].mxu0
  %v2623 = vpop.f32.mrb[0].mxu0
  %v2624 = vadd.f32 %v295, %v2623
  %v2625 = vpop.f32.mrb[0].mxu0
  %2626 = vmatprep.mubr.bf16.mxu0 %v1769
  %2627 = vmatmul.mubr.bf16.gmra.mrb[0].mxu0 %v1239
  %v2628 = vpop.f32.mrb[0].mxu0
  %v2629 = vadd.f32 %v295, %v2628
  %v2630 = vpop.f32.mrb[0].mxu0
  %v2631 = vpop.f32.mrb[0].mxu0
  %v2632 = vadd.f32 %v295, %v2631
  %v2633 = vpop.f32.mrb[0].mxu0
  %2634 = vmatprep.mubr.bf16.mxu0 %v1772
  %2635 = vmatmul.mubr.bf16.gmra.mrb[0].mxu0 %v1241
  %v2636 = vpop.f32.mrb[0].mxu0
  %v2637 = vadd.f32 %v295, %v2636
  %v2638 = vpop.f32.mrb[0].mxu0
  %v2639 = vpop.f32.mrb[0].mxu0
  %v2640 = vadd.f32 %v295, %v2639
  %v2641 = vpop.f32.mrb[0].mxu0
  %2642 = vmatprep.mubr.bf16.mxu0 %v1775
  %2643 = vmatmul.mubr.bf16.gmra.mrb[0].mxu0 %v1243
  %v2644 = vpop.f32.mrb[0].mxu0
  %v2645 = vadd.f32 %v295, %v2644
  %v2646 = vpop.f32.mrb[0].mxu0
  %v2647 = vpop.f32.mrb[0].mxu0
  %v2648 = vadd.f32 %v295, %v2647
  %v2649 = vpop.f32.mrb[0].mxu0
  %2650 = vmatprep.mubr.bf16.mxu0 %v1778
  %2651 = vmatmul.mubr.bf16.gmra.mrb[0].mxu0 %v1245
  %v2652 = vpop.f32.mrb[0].mxu0
  %v2653 = vadd.f32 %v295, %v2652
  %v2654 = vpop.f32.mrb[0].mxu0
  %v2655 = vpop.f32.mrb[0].mxu0
  %v2656 = vadd.f32 %v295, %v2655
  %v2657 = vpop.f32.mrb[0].mxu0
  %2658 = vmatprep.mubr.bf16.mxu0 %v1781
  %2659 = vmatmul.mubr.bf16.gmra.mrb[0].mxu0 %v1247
  %v2660 = vpop.f32.mrb[0].mxu0
  %v2661 = vadd.f32 %v295, %v2660
  %v2662 = vpop.f32.mrb[0].mxu0
  %v2663 = vpop.f32.mrb[0].mxu0
  %v2664 = vadd.f32 %v295, %v2663
  %v2665 = vpop.f32.mrb[0].mxu0
  %2666 = vmatprep.mubr.bf16.mxu0 %v1784
  %2667 = vmatmul.mubr.bf16.gmra.mrb[0].mxu0 %v1249
  %v2668 = vpop.f32.mrb[0].mxu0
  %v2669 = vadd.f32 %v295, %v2668
  %v2670 = vpop.f32.mrb[0].mxu0
  %v2671 = vpop.f32.mrb[0].mxu0
  %v2672 = vadd.f32 %v295, %v2671
  %v2673 = vpop.f32.mrb[0].mxu0
  %2674 = vmatprep.mubr.bf16.mxu0 %v1787
  %2675 = vmatmul.mubr.bf16.gmra.mrb[0].mxu0 %v1251
  %v2676 = vpop.f32.mrb[0].mxu0
  %v2677 = vadd.f32 %v295, %v2676
  %v2678 = vpop.f32.mrb[0].mxu0
  %v2679 = vpop.f32.mrb[0].mxu0
  %v2680 = vadd.f32 %v295, %v2679
  %v2681 = vpop.f32.mrb[0].mxu0
  %2682 = vmatprep.mubr.bf16.mxu0 %v1790
  %2683 = vmatmul.mubr.bf16.gmra.mrb[0].mxu0 %v1253
  %v2684 = vpop.f32.mrb[0].mxu0
  %v2685 = vadd.f32 %v295, %v2684
  %v2686 = vpop.f32.mrb[0].mxu0
  %v2687 = vpop.f32.mrb[0].mxu0
  %v2688 = vadd.f32 %v295, %v2687
  %v2689 = vpop.f32.mrb[0].mxu0
  %2690 = vmatprep.mubr.bf16.mxu0 %v1793
  %2691 = vmatmul.mubr.bf16.gmra.mrb[0].mxu0 %v1255
  %v2692 = vpop.f32.mrb[0].mxu0
  %v2693 = vadd.f32 %v295, %v2692
  %v2694 = vpop.f32.mrb[0].mxu0
  %v2695 = vpop.f32.mrb[0].mxu0
  %v2696 = vadd.f32 %v295, %v2695
  %v2697 = vpop.f32.mrb[0].mxu0
  %2698 = vmatprep.mubr.bf16.mxu0 %v1796
  %2699 = vmatmul.mubr.bf16.gmra.mrb[0].mxu0 %v1257
  %v2700 = vpop.f32.mrb[0].mxu0
  %v2701 = vadd.f32 %v295, %v2700
  %v2702 = vpop.f32.mrb[0].mxu0
  %v2703 = vpop.f32.mrb[0].mxu0
  %v2704 = vadd.f32 %v295, %v2703
  %v2705 = vpop.f32.mrb[0].mxu0
  %2706 = vmatprep.mubr.bf16.mxu0 %v1799
  %2707 = vmatmul.mubr.bf16.gmra.mrb[0].mxu0 %v1259
  %v2708 = vpop.f32.mrb[0].mxu0
  %v2709 = vadd.f32 %v295, %v2708
  %v2710 = vpop.f32.mrb[0].mxu0
  %v2711 = vpop.f32.mrb[0].mxu0
  %v2712 = vadd.f32 %v295, %v2711
  %v2713 = vpop.f32.mrb[0].mxu0
  %2714 = vmatprep.mubr.bf16.mxu0 %v1802
  %2715 = vmatmul.mubr.bf16.gmra.mrb[0].mxu0 %v1261
  %v2716 = vpop.f32.mrb[0].mxu0
  %v2717 = vadd.f32 %v295, %v2716
  %v2718 = vpop.f32.mrb[0].mxu0
  %v2719 = vpop.f32.mrb[0].mxu0
  %v2720 = vadd.f32 %v295, %v2719
  %v2721 = vpop.f32.mrb[0].mxu0
  %2722 = vmatprep.mubr.bf16.mxu0 %v1805
  %2723 = vmatmul.mubr.bf16.gmra.mrb[0].mxu0 %v1263
  %v2724 = vpop.f32.mrb[0].mxu0
  %v2725 = vadd.f32 %v295, %v2724
  %v2726 = vpop.f32.mrb[0].mxu0
  %v2727 = vpop.f32.mrb[0].mxu0
  %v2728 = vadd.f32 %v295, %v2727
  %v2729 = vpop.f32.mrb[0].mxu0
  %2730 = vmatprep.mubr.bf16.mxu0 %v1808
  %2731 = vmatmul.mubr.bf16.gmra.mrb[0].mxu0 %v1265
  %v2732 = vpop.f32.mrb[0].mxu0
  %v2733 = vadd.f32 %v295, %v2732
  %v2734 = vpop.f32.mrb[0].mxu0
  %v2735 = vpop.f32.mrb[0].mxu0
  %v2736 = vadd.f32 %v295, %v2735
  %v2737 = vpop.f32.mrb[0].mxu0
  %2738 = vmatprep.mubr.bf16.mxu0 %v1811
  %2739 = vmatmul.mubr.bf16.gmra.mrb[0].mxu0 %v1267
  %v2740 = vpop.f32.mrb[0].mxu0
  %v2741 = vadd.f32 %v295, %v2740
  %v2742 = vpop.f32.mrb[0].mxu0
  %v2743 = vpop.f32.mrb[0].mxu0
  %v2744 = vadd.f32 %v295, %v2743
  %v2745 = vpop.f32.mrb[0].mxu0
  %2746 = vmatprep.mubr.bf16.mxu0 %v1814
  %2747 = vmatmul.mubr.bf16.gmra.mrb[0].mxu0 %v1269
  %v2748 = vpop.f32.mrb[0].mxu0
  %v2749 = vadd.f32 %v295, %v2748
  %v2750 = vpop.f32.mrb[0].mxu0
  %v2751 = vpop.f32.mrb[0].mxu0
  %v2752 = vadd.f32 %v295, %v2751
  %v2753 = vpop.f32.mrb[0].mxu0
  %2754 = vmatprep.mubr.bf16.mxu0 %v1817
  %2755 = vmatmul.mubr.bf16.gmra.mrb[0].mxu0 %v1271
  %v2756 = vpop.f32.mrb[0].mxu0
  %v2757 = vadd.f32 %v295, %v2756
  %v2758 = vpop.f32.mrb[0].mxu0
  %v2759 = vpop.f32.mrb[0].mxu0
  %v2760 = vadd.f32 %v295, %v2759
  %v2761 = vpop.f32.mrb[0].mxu0
  %2762 = vmatprep.mubr.bf16.mxu0 %v1820
  %2763 = vmatmul.mubr.bf16.gmra.mrb[0].mxu0 %v1273
  %v2764 = vpop.f32.mrb[0].mxu0
  %v2765 = vadd.f32 %v295, %v2764
  %v2766 = vpop.f32.mrb[0].mxu0
  %v2767 = vpop.f32.mrb[0].mxu0
  %v2768 = vadd.f32 %v295, %v2767
  %v2769 = vpop.f32.mrb[0].mxu0
  %2770 = vmatprep.mubr.bf16.mxu0 %v1823
  %2771 = vmatmul.mubr.bf16.gmra.mrb[0].mxu0 %v1275
  %v2772 = vpop.f32.mrb[0].mxu0
  %v2773 = vadd.f32 %v295, %v2772
  %v2774 = vpop.f32.mrb[0].mxu0
  %v2775 = vpop.f32.mrb[0].mxu0
  %v2776 = vadd.f32 %v295, %v2775
  %v2777 = vpop.f32.mrb[0].mxu0
  %2778 = vmatprep.mubr.bf16.mxu0 %v1826
  %2779 = vmatmul.mubr.bf16.gmra.mrb[0].mxu0 %v1277
  %v2780 = vpop.f32.mrb[0].mxu0
  %v2781 = vadd.f32 %v295, %v2780
  %v2782 = vpop.f32.mrb[0].mxu0
  %v2783 = vpop.f32.mrb[0].mxu0
  %v2784 = vadd.f32 %v295, %v2783
  %v2785 = vpop.f32.mrb[0].mxu0
  %2786 = vmatprep.mubr.bf16.mxu0 %v1829
  %2787 = vmatmul.mubr.bf16.gmra.mrb[0].mxu0 %v1279
  %v2788 = vpop.f32.mrb[0].mxu0
  %v2789 = vadd.f32 %v295, %v2788
  %v2790 = vpop.f32.mrb[0].mxu0
  %v2791 = vpop.f32.mrb[0].mxu0
  %v2792 = vadd.f32 %v295, %v2791
  %v2793 = vpop.f32.mrb[0].mxu0
  %2794 = vmatprep.mubr.bf16.mxu0 %v1832
  %2795 = vmatmul.mubr.bf16.gmra.mrb[0].mxu0 %v1281
  %v2796 = vpop.f32.mrb[0].mxu0
  %v2797 = vadd.f32 %v295, %v2796
  %v2798 = vpop.f32.mrb[0].mxu0
  %v2799 = vpop.f32.mrb[0].mxu0
  %v2800 = vadd.f32 %v295, %v2799
  %v2801 = vpop.f32.mrb[0].mxu0
  %2802 = vmatprep.mubr.bf16.mxu0 %v1835
  %2803 = vmatmul.mubr.bf16.gmra.mrb[0].mxu0 %v1283
  %v2804 = vpop.f32.mrb[0].mxu0
  %v2805 = vadd.f32 %v295, %v2804
  %v2806 = vpop.f32.mrb[0].mxu0
  %v2807 = vpop.f32.mrb[0].mxu0
  %v2808 = vadd.f32 %v295, %v2807
  %v2809 = vpop.f32.mrb[0].mxu0
  %2810 = vmatprep.mubr.bf16.mxu0 %v1838
  %2811 = vmatmul.mubr.bf16.gmra.mrb[0].mxu0 %v1285
  %v2812 = vpop.f32.mrb[0].mxu0
  %v2813 = vadd.f32 %v295, %v2812
  %v2814 = vpop.f32.mrb[0].mxu0
  %v2815 = vpop.f32.mrb[0].mxu0
  %v2816 = vadd.f32 %v295, %v2815
  %v2817 = vpop.f32.mrb[0].mxu0
  %2818 = vmatprep.mubr.bf16.mxu0 %v1841
  %2819 = vmatmul.mubr.bf16.gmra.mrb[0].mxu0 %v1287
  %v2820 = vpop.f32.mrb[0].mxu0
  %v2821 = vadd.f32 %v295, %v2820
  %v2822 = vpop.f32.mrb[0].mxu0
  %v2823 = vpop.f32.mrb[0].mxu0
  %v2824 = vadd.f32 %v295, %v2823
  %v2825 = vpop.f32.mrb[0].mxu0
  %2826 = vmatprep.mubr.bf16.mxu0 %v1844
  %2827 = vmatmul.mubr.bf16.gmra.mrb[0].mxu0 %v1289
  %v2828 = vpop.f32.mrb[0].mxu0
  %v2829 = vadd.f32 %v295, %v2828
  %v2830 = vpop.f32.mrb[0].mxu0
  %v2831 = vpop.f32.mrb[0].mxu0
  %v2832 = vadd.f32 %v295, %v2831
  %v2833 = vpop.f32.mrb[0].mxu0
  %2834 = vmatprep.mubr.bf16.mxu0 %v1847
  %2835 = vmatmul.mubr.bf16.gmra.mrb[0].mxu0 %v1291
  %v2836 = vpop.f32.mrb[0].mxu0
  %v2837 = vadd.f32 %v295, %v2836
  %v2838 = vpop.f32.mrb[0].mxu0
  %v2839 = vpop.f32.mrb[0].mxu0
  %v2840 = vadd.f32 %v295, %v2839
  %v2841 = vpop.f32.mrb[0].mxu0
  %2842 = vmatprep.mubr.bf16.mxu0 %v1850
  %2843 = vmatmul.mubr.bf16.gmra.mrb[0].mxu0 %v1293
  %v2844 = vpop.f32.mrb[0].mxu0
  %v2845 = vadd.f32 %v295, %v2844
  %v2846 = vpop.f32.mrb[0].mxu0
  %v2847 = vpop.f32.mrb[0].mxu0
  %v2848 = vadd.f32 %v295, %v2847
  %v2849 = vpop.f32.mrb[0].mxu0
  %2850 = vmatprep.mubr.bf16.mxu0 %v1853
  %2851 = vmatmul.mubr.bf16.gmra.mrb[0].mxu0 %v1295
  %v2852 = vpop.f32.mrb[0].mxu0
  %v2853 = vadd.f32 %v295, %v2852
  %v2854 = vpop.f32.mrb[0].mxu0
  %v2855 = vpop.f32.mrb[0].mxu0
  %v2856 = vadd.f32 %v295, %v2855
  %v2857 = vpop.f32.mrb[0].mxu0
  %2858 = vmatprep.mubr.bf16.mxu0 %v1856
  %2859 = vmatmul.mubr.bf16.gmra.mrb[0].mxu0 %v1297
  %v2860 = vpop.f32.mrb[0].mxu0
  %v2861 = vadd.f32 %v295, %v2860
  %v2862 = vpop.f32.mrb[0].mxu0
  %v2863 = vpop.f32.mrb[0].mxu0
  %v2864 = vadd.f32 %v295, %v2863
  %v2865 = vpop.f32.mrb[0].mxu0
  %2866 = vmatprep.mubr.bf16.mxu0 %v1859
  %2867 = vmatmul.mubr.bf16.gmra.mrb[0].mxu0 %v1299
  %v2868 = vpop.f32.mrb[0].mxu0
  %v2869 = vadd.f32 %v295, %v2868
  %v2870 = vpop.f32.mrb[0].mxu0
  %v2871 = vpop.f32.mrb[0].mxu0
  %v2872 = vadd.f32 %v295, %v2871
  %v2873 = vpop.f32.mrb[0].mxu0
  %2874 = vmatprep.mubr.bf16.mxu0 %v1862
  %2875 = vmatmul.mubr.bf16.gmra.mrb[0].mxu0 %v1301
  %v2876 = vpop.f32.mrb[0].mxu0
  %v2877 = vadd.f32 %v295, %v2876
  %v2878 = vpop.f32.mrb[0].mxu0
  %v2879 = vpop.f32.mrb[0].mxu0
  %v2880 = vadd.f32 %v295, %v2879
  %v2881 = vpop.f32.mrb[0].mxu0
  %2882 = vmatprep.mubr.bf16.mxu0 %v1865
  %2883 = vmatmul.mubr.bf16.gmra.mrb[0].mxu0 %v1303
  %v2884 = vpop.f32.mrb[0].mxu0
  %v2885 = vadd.f32 %v295, %v2884
  %v2886 = vpop.f32.mrb[0].mxu0
  %v2887 = vpop.f32.mrb[0].mxu0
  %v2888 = vadd.f32 %v295, %v2887
  %v2889 = vpop.f32.mrb[0].mxu0
  %2890 = vmatprep.mubr.bf16.mxu0 %v1868
  %2891 = vmatmul.mubr.bf16.gmra.mrb[0].mxu0 %v1305
  %v2892 = vpop.f32.mrb[0].mxu0
  %v2893 = vadd.f32 %v295, %v2892
  %v2894 = vpop.f32.mrb[0].mxu0
  %v2895 = vpop.f32.mrb[0].mxu0
  %v2896 = vadd.f32 %v295, %v2895
  %v2897 = vpop.f32.mrb[0].mxu0
  %2898 = vmatprep.mubr.bf16.mxu0 %v1871
  %2899 = vmatmul.mubr.bf16.gmra.mrb[0].mxu0 %v1307
  %v2900 = vpop.f32.mrb[0].mxu0
  %v2901 = vadd.f32 %v295, %v2900
  %v2902 = vpop.f32.mrb[0].mxu0
  %v2903 = vpop.f32.mrb[0].mxu0
  %v2904 = vadd.f32 %v295, %v2903
  %v2905 = vpop.f32.mrb[0].mxu0
  %2906 = vmatprep.mubr.bf16.mxu0 %v1874
  %2907 = vmatmul.mubr.bf16.gmra.mrb[0].mxu0 %v1309
  %v2908 = vpop.f32.mrb[0].mxu0
  %v2909 = vadd.f32 %v295, %v2908
  %v2910 = vpop.f32.mrb[0].mxu0
  %v2911 = vpop.f32.mrb[0].mxu0
  %v2912 = vadd.f32 %v295, %v2911
  %v2913 = vpop.f32.mrb[0].mxu0
  %2914 = vmatprep.mubr.bf16.mxu0 %v1877
  %2915 = vmatmul.mubr.bf16.gmra.mrb[0].mxu0 %v1311
  %v2916 = vpop.f32.mrb[0].mxu0
  %v2917 = vadd.f32 %v295, %v2916
  %v2918 = vpop.f32.mrb[0].mxu0
  %v2919 = vpop.f32.mrb[0].mxu0
  %v2920 = vadd.f32 %v295, %v2919
  %v2921 = vpop.f32.mrb[0].mxu0
  %2922 = vmatprep.mubr.bf16.mxu0 %v1880
  %2923 = vmatmul.mubr.bf16.gmra.mrb[0].mxu0 %v1313
  %v2924 = vpop.f32.mrb[0].mxu0
  %v2925 = vadd.f32 %v295, %v2924
  %v2926 = vpop.f32.mrb[0].mxu0
  %v2927 = vpop.f32.mrb[0].mxu0
  %v2928 = vadd.f32 %v295, %v2927
  %v2929 = vpop.f32.mrb[0].mxu0
  %2930 = vmatprep.mubr.bf16.mxu0 %v1883
  %2931 = vmatmul.mubr.bf16.gmra.mrb[0].mxu0 %v1315
  %v2932 = vpop.f32.mrb[0].mxu0
  %v2933 = vadd.f32 %v295, %v2932
  %v2934 = vpop.f32.mrb[0].mxu0
  %v2935 = vpop.f32.mrb[0].mxu0
  %v2936 = vadd.f32 %v295, %v2935
  %v2937 = vpop.f32.mrb[0].mxu0
  %2938 = vmatprep.mubr.bf16.mxu0 %v1886
  %2939 = vmatmul.mubr.bf16.gmra.mrb[0].mxu0 %v1317
  %v2940 = vpop.f32.mrb[0].mxu0
  %v2941 = vadd.f32 %v295, %v2940
  %v2942 = vpop.f32.mrb[0].mxu0
  %v2943 = vpop.f32.mrb[0].mxu0
  %v2944 = vadd.f32 %v295, %v2943
  %v2945 = vpop.f32.mrb[0].mxu0
  %2946 = vmatprep.mubr.bf16.mxu0 %v1889
  %2947 = vmatmul.mubr.bf16.gmra.mrb[0].mxu0 %v1319
  %v2948 = vpop.f32.mrb[0].mxu0
  %v2949 = vadd.f32 %v295, %v2948
  %v2950 = vpop.f32.mrb[0].mxu0
  %v2951 = vpop.f32.mrb[0].mxu0
  %v2952 = vadd.f32 %v295, %v2951
  %v2953 = vpop.f32.mrb[0].mxu0
  %2954 = vdwg.mxu0
  %v2955 = vmax.f32 %v1933, 0.0
  %v2956 = vmax.f32 %v1936, 0.0
  %v2957 = vmax.f32 %v1941, 0.0
  %v2958 = vmax.f32 %v1944, 0.0
  %v2959 = vmax.f32 %v1949, 0.0
  %v2960 = vmax.f32 %v1952, 0.0
  %v2961 = vmax.f32 %v1957, 0.0
  %v2962 = vmax.f32 %v1960, 0.0
  %v2963 = vmax.f32 %v1965, 0.0
  %v2964 = vmax.f32 %v1968, 0.0
  %v2965 = vmax.f32 %v1973, 0.0
  %v2966 = vmax.f32 %v1976, 0.0
  %v2967 = vmax.f32 %v1981, 0.0
  %v2968 = vmax.f32 %v1984, 0.0
  %v2969 = vmax.f32 %v1989, 0.0
  %v2970 = vmax.f32 %v1992, 0.0
  %v2971 = vmax.f32 %v1997, 0.0
  %v2972 = vmax.f32 %v2000, 0.0
  %v2973 = vmax.f32 %v2005, 0.0
  %v2974 = vmax.f32 %v2008, 0.0
  %v2975 = vmax.f32 %v2013, 0.0
  %v2976 = vmax.f32 %v2016, 0.0
  %v2977 = vmax.f32 %v2021, 0.0
  %v2978 = vmax.f32 %v2024, 0.0
  %v2979 = vmax.f32 %v2029, 0.0
  %v2980 = vmax.f32 %v2032, 0.0
  %v2981 = vmax.f32 %v2037, 0.0
  %v2982 = vmax.f32 %v2040, 0.0
  %v2983 = vmax.f32 %v2045, 0.0
  %v2984 = vmax.f32 %v2048, 0.0
  %v2985 = vmax.f32 %v2053, 0.0
  %v2986 = vmax.f32 %v2056, 0.0
  %v2987 = vmax.f32 %v2061, 0.0
  %v2988 = vmax.f32 %v2064, 0.0
  %v2989 = vmax.f32 %v2069, 0.0
  %v2990 = vmax.f32 %v2072, 0.0
  %v2991 = vmax.f32 %v2077, 0.0
  %v2992 = vmax.f32 %v2080, 0.0
  %v2993 = vmax.f32 %v2085, 0.0
  %v2994 = vmax.f32 %v2088, 0.0
  %v2995 = vmax.f32 %v2093, 0.0
  %v2996 = vmax.f32 %v2096, 0.0
  %v2997 = vmax.f32 %v2101, 0.0
  %v2998 = vmax.f32 %v2104, 0.0
  %v2999 = vmax.f32 %v2109, 0.0
  %v3000 = vmax.f32 %v2112, 0.0
  %v3001 = vmax.f32 %v2117, 0.0
  %v3002 = vmax.f32 %v2120, 0.0
  %v3003 = vmax.f32 %v2125, 0.0
  %v3004 = vmax.f32 %v2128, 0.0
  %v3005 = vmax.f32 %v2133, 0.0
  %v3006 = vmax.f32 %v2136, 0.0
  %v3007 = vmax.f32 %v2141, 0.0
  %v3008 = vmax.f32 %v2144, 0.0
  %v3009 = vmax.f32 %v2149, 0.0
  %v3010 = vmax.f32 %v2152, 0.0
  %v3011 = vmax.f32 %v2157, 0.0
  %v3012 = vmax.f32 %v2160, 0.0
  %v3013 = vmax.f32 %v2165, 0.0
  %v3014 = vmax.f32 %v2168, 0.0
  %v3015 = vmax.f32 %v2173, 0.0
  %v3016 = vmax.f32 %v2176, 0.0
  %v3017 = vmax.f32 %v2181, 0.0
  %v3018 = vmax.f32 %v2184, 0.0
  %v3019 = vmax.f32 %v2189, 0.0
  %v3020 = vmax.f32 %v2192, 0.0
  %v3021 = vmax.f32 %v2197, 0.0
  %v3022 = vmax.f32 %v2200, 0.0
  %v3023 = vmax.f32 %v2205, 0.0
  %v3024 = vmax.f32 %v2208, 0.0
  %v3025 = vmax.f32 %v2213, 0.0
  %v3026 = vmax.f32 %v2216, 0.0
  %v3027 = vmax.f32 %v2221, 0.0
  %v3028 = vmax.f32 %v2224, 0.0
  %v3029 = vmax.f32 %v2229, 0.0
  %v3030 = vmax.f32 %v2232, 0.0
  %v3031 = vmax.f32 %v2237, 0.0
  %v3032 = vmax.f32 %v2240, 0.0
  %v3033 = vmax.f32 %v2245, 0.0
  %v3034 = vmax.f32 %v2248, 0.0
  %v3035 = vmax.f32 %v2253, 0.0
  %v3036 = vmax.f32 %v2256, 0.0
  %v3037 = vmax.f32 %v2261, 0.0
  %v3038 = vmax.f32 %v2264, 0.0
  %v3039 = vmax.f32 %v2269, 0.0
  %v3040 = vmax.f32 %v2272, 0.0
  %v3041 = vmax.f32 %v2277, 0.0
  %v3042 = vmax.f32 %v2280, 0.0
  %v3043 = vmax.f32 %v2285, 0.0
  %v3044 = vmax.f32 %v2288, 0.0
  %v3045 = vmax.f32 %v2293, 0.0
  %v3046 = vmax.f32 %v2296, 0.0
  %v3047 = vmax.f32 %v2301, 0.0
  %v3048 = vmax.f32 %v2304, 0.0
  %v3049 = vmax.f32 %v2309, 0.0
  %v3050 = vmax.f32 %v2312, 0.0
  %v3051 = vmax.f32 %v2317, 0.0
  %v3052 = vmax.f32 %v2320, 0.0
  %v3053 = vmax.f32 %v2325, 0.0
  %v3054 = vmax.f32 %v2328, 0.0
  %v3055 = vmax.f32 %v2333, 0.0
  %v3056 = vmax.f32 %v2336, 0.0
  %v3057 = vmax.f32 %v2341, 0.0
  %v3058 = vmax.f32 %v2344, 0.0
  %v3059 = vmax.f32 %v2349, 0.0
  %v3060 = vmax.f32 %v2352, 0.0
  %v3061 = vmax.f32 %v2357, 0.0
  %v3062 = vmax.f32 %v2360, 0.0
  %v3063 = vmax.f32 %v2365, 0.0
  %v3064 = vmax.f32 %v2368, 0.0
  %v3065 = vmax.f32 %v2373, 0.0
  %v3066 = vmax.f32 %v2376, 0.0
  %v3067 = vmax.f32 %v2381, 0.0
  %v3068 = vmax.f32 %v2384, 0.0
  %v3069 = vmax.f32 %v2389, 0.0
  %v3070 = vmax.f32 %v2392, 0.0
  %v3071 = vmax.f32 %v2397, 0.0
  %v3072 = vmax.f32 %v2400, 0.0
  %v3073 = vmax.f32 %v2405, 0.0
  %v3074 = vmax.f32 %v2408, 0.0
  %v3075 = vmax.f32 %v2413, 0.0
  %v3076 = vmax.f32 %v2416, 0.0
  %v3077 = vmax.f32 %v2421, 0.0
  %v3078 = vmax.f32 %v2424, 0.0
  %v3079 = vmax.f32 %v2429, 0.0
  %v3080 = vmax.f32 %v2432, 0.0
  %v3081 = vmax.f32 %v2437, 0.0
  %v3082 = vmax.f32 %v2440, 0.0
  %v3083 = vmax.f32 %v2445, 0.0
  %v3084 = vmax.f32 %v2448, 0.0
  %v3085 = vmax.f32 %v2453, 0.0
  %v3086 = vmax.f32 %v2456, 0.0
  %v3087 = vmax.f32 %v2461, 0.0
  %v3088 = vmax.f32 %v2464, 0.0
  %v3089 = vmax.f32 %v2469, 0.0
  %v3090 = vmax.f32 %v2472, 0.0
  %v3091 = vmax.f32 %v2477, 0.0
  %v3092 = vmax.f32 %v2480, 0.0
  %v3093 = vmax.f32 %v2485, 0.0
  %v3094 = vmax.f32 %v2488, 0.0
  %v3095 = vmax.f32 %v2493, 0.0
  %v3096 = vmax.f32 %v2496, 0.0
  %v3097 = vmax.f32 %v2501, 0.0
  %v3098 = vmax.f32 %v2504, 0.0
  %v3099 = vmax.f32 %v2509, 0.0
  %v3100 = vmax.f32 %v2512, 0.0
  %v3101 = vmax.f32 %v2517, 0.0
  %v3102 = vmax.f32 %v2520, 0.0
  %v3103 = vmax.f32 %v2525, 0.0
  %v3104 = vmax.f32 %v2528, 0.0
  %v3105 = vmax.f32 %v2533, 0.0
  %v3106 = vmax.f32 %v2536, 0.0
  %v3107 = vmax.f32 %v2541, 0.0
  %v3108 = vmax.f32 %v2544, 0.0
  %v3109 = vmax.f32 %v2549, 0.0
  %v3110 = vmax.f32 %v2552, 0.0
  %v3111 = vmax.f32 %v2557, 0.0
  %v3112 = vmax.f32 %v2560, 0.0
  %v3113 = vmax.f32 %v2565, 0.0
  %v3114 = vmax.f32 %v2568, 0.0
  %v3115 = vmax.f32 %v2573, 0.0
  %v3116 = vmax.f32 %v2576, 0.0
  %v3117 = vmax.f32 %v2581, 0.0
  %v3118 = vmax.f32 %v2584, 0.0
  %v3119 = vmax.f32 %v2589, 0.0
  %v3120 = vmax.f32 %v2592, 0.0
  %v3121 = vmax.f32 %v2597, 0.0
  %v3122 = vmax.f32 %v2600, 0.0
  %v3123 = vmax.f32 %v2605, 0.0
  %v3124 = vmax.f32 %v2608, 0.0
  %v3125 = vmax.f32 %v2613, 0.0
  %v3126 = vmax.f32 %v2616, 0.0
  %v3127 = vmax.f32 %v2621, 0.0
  %v3128 = vmax.f32 %v2624, 0.0
  %v3129 = vmax.f32 %v2629, 0.0
  %v3130 = vmax.f32 %v2632, 0.0
  %v3131 = vmax.f32 %v2637, 0.0
  %v3132 = vmax.f32 %v2640, 0.0
  %v3133 = vmax.f32 %v2645, 0.0
  %v3134 = vmax.f32 %v2648, 0.0
  %v3135 = vmax.f32 %v2653, 0.0
  %v3136 = vmax.f32 %v2656, 0.0
  %v3137 = vmax.f32 %v2661, 0.0
  %v3138 = vmax.f32 %v2664, 0.0
  %v3139 = vmax.f32 %v2669, 0.0
  %v3140 = vmax.f32 %v2672, 0.0
  %v3141 = vmax.f32 %v2677, 0.0
  %v3142 = vmax.f32 %v2680, 0.0
  %v3143 = vmax.f32 %v2685, 0.0
  %v3144 = vmax.f32 %v2688, 0.0
  %v3145 = vmax.f32 %v2693, 0.0
  %v3146 = vmax.f32 %v2696, 0.0
  %v3147 = vmax.f32 %v2701, 0.0
  %v3148 = vmax.f32 %v2704, 0.0
  %v3149 = vmax.f32 %v2709, 0.0
  %v3150 = vmax.f32 %v2712, 0.0
  %v3151 = vmax.f32 %v2717, 0.0
  %v3152 = vmax.f32 %v2720, 0.0
  %v3153 = vmax.f32 %v2725, 0.0
  %v3154 = vmax.f32 %v2728, 0.0
  %v3155 = vmax.f32 %v2733, 0.0
  %v3156 = vmax.f32 %v2736, 0.0
  %v3157 = vmax.f32 %v2741, 0.0
  %v3158 = vmax.f32 %v2744, 0.0
  %v3159 = vmax.f32 %v2749, 0.0
  %v3160 = vmax.f32 %v2752, 0.0
  %v3161 = vmax.f32 %v2757, 0.0
  %v3162 = vmax.f32 %v2760, 0.0
  %v3163 = vmax.f32 %v2765, 0.0
  %v3164 = vmax.f32 %v2768, 0.0
  %v3165 = vmax.f32 %v2773, 0.0
  %v3166 = vmax.f32 %v2776, 0.0
  %v3167 = vmax.f32 %v2781, 0.0
  %v3168 = vmax.f32 %v2784, 0.0
  %v3169 = vmax.f32 %v2789, 0.0
  %v3170 = vmax.f32 %v2792, 0.0
  %v3171 = vmax.f32 %v2797, 0.0
  %v3172 = vmax.f32 %v2800, 0.0
  %v3173 = vmax.f32 %v2805, 0.0
  %v3174 = vmax.f32 %v2808, 0.0
  %v3175 = vmax.f32 %v2813, 0.0
  %v3176 = vmax.f32 %v2816, 0.0
  %v3177 = vmax.f32 %v2821, 0.0
  %v3178 = vmax.f32 %v2824, 0.0
  %v3179 = vmax.f32 %v2829, 0.0
  %v3180 = vmax.f32 %v2832, 0.0
  %v3181 = vmax.f32 %v2837, 0.0
  %v3182 = vmax.f32 %v2840, 0.0
  %v3183 = vmax.f32 %v2845, 0.0
  %v3184 = vmax.f32 %v2848, 0.0
  %v3185 = vmax.f32 %v2853, 0.0
  %v3186 = vmax.f32 %v2856, 0.0
  %v3187 = vmax.f32 %v2861, 0.0
  %v3188 = vmax.f32 %v2864, 0.0
  %v3189 = vmax.f32 %v2869, 0.0
  %v3190 = vmax.f32 %v2872, 0.0
  %v3191 = vmax.f32 %v2877, 0.0
  %v3192 = vmax.f32 %v2880, 0.0
  %v3193 = vmax.f32 %v2885, 0.0
  %v3194 = vmax.f32 %v2888, 0.0
  %v3195 = vmax.f32 %v2893, 0.0
  %v3196 = vmax.f32 %v2896, 0.0
  %v3197 = vmax.f32 %v2901, 0.0
  %v3198 = vmax.f32 %v2904, 0.0
  %v3199 = vmax.f32 %v2909, 0.0
  %v3200 = vmax.f32 %v2912, 0.0
  %v3201 = vmax.f32 %v2917, 0.0
  %v3202 = vmax.f32 %v2920, 0.0
  %v3203 = vmax.f32 %v2925, 0.0
  %v3204 = vmax.f32 %v2928, 0.0
  %v3205 = vmax.f32 %v2933, 0.0
  %v3206 = vmax.f32 %v2936, 0.0
  %v3207 = vmax.f32 %v2941, 0.0
  %v3208 = vmax.f32 %v2944, 0.0
  %v3209 = vmax.f32 %v2949, 0.0
  %v3210 = vmax.f32 %v2952, 0.0
  %v3211 = vpack.c.bf16 %v2956, %v2955
  %v3212 = vpack.c.bf16 %v2958, %v2957
  %v3213 = vpack.c.bf16 %v2960, %v2959
  %v3214 = vpack.c.bf16 %v2962, %v2961
  %v3215 = vpack.c.bf16 %v2964, %v2963
  %v3216 = vpack.c.bf16 %v2966, %v2965
  %v3217 = vpack.c.bf16 %v2968, %v2967
  %v3218 = vpack.c.bf16 %v2970, %v2969
  %v3219 = vpack.c.bf16 %v2972, %v2971
  %v3220 = vpack.c.bf16 %v2974, %v2973
  %v3221 = vpack.c.bf16 %v2976, %v2975
  %v3222 = vpack.c.bf16 %v2978, %v2977
  %v3223 = vpack.c.bf16 %v2980, %v2979
  %v3224 = vpack.c.bf16 %v2982, %v2981
  %v3225 = vpack.c.bf16 %v2984, %v2983
  %v3226 = vpack.c.bf16 %v2986, %v2985
  %v3227 = vpack.c.bf16 %v2988, %v2987
  %v3228 = vpack.c.bf16 %v2990, %v2989
  %v3229 = vpack.c.bf16 %v2992, %v2991
  %v3230 = vpack.c.bf16 %v2994, %v2993
  %v3231 = vpack.c.bf16 %v2996, %v2995
  %v3232 = vpack.c.bf16 %v2998, %v2997
  %v3233 = vpack.c.bf16 %v3000, %v2999
  %v3234 = vpack.c.bf16 %v3002, %v3001
  %v3235 = vpack.c.bf16 %v3004, %v3003
  %v3236 = vpack.c.bf16 %v3006, %v3005
  %v3237 = vpack.c.bf16 %v3008, %v3007
  %v3238 = vpack.c.bf16 %v3010, %v3009
  %v3239 = vpack.c.bf16 %v3012, %v3011
  %v3240 = vpack.c.bf16 %v3014, %v3013
  %v3241 = vpack.c.bf16 %v3016, %v3015
  %v3242 = vpack.c.bf16 %v3018, %v3017
  %v3243 = vpack.c.bf16 %v3020, %v3019
  %v3244 = vpack.c.bf16 %v3022, %v3021
  %v3245 = vpack.c.bf16 %v3024, %v3023
  %v3246 = vpack.c.bf16 %v3026, %v3025
  %v3247 = vpack.c.bf16 %v3028, %v3027
  %v3248 = vpack.c.bf16 %v3030, %v3029
  %v3249 = vpack.c.bf16 %v3032, %v3031
  %v3250 = vpack.c.bf16 %v3034, %v3033
  %v3251 = vpack.c.bf16 %v3036, %v3035
  %v3252 = vpack.c.bf16 %v3038, %v3037
  %v3253 = vpack.c.bf16 %v3040, %v3039
  %v3254 = vpack.c.bf16 %v3042, %v3041
  %v3255 = vpack.c.bf16 %v3044, %v3043
  %v3256 = vpack.c.bf16 %v3046, %v3045
  %v3257 = vpack.c.bf16 %v3048, %v3047
  %v3258 = vpack.c.bf16 %v3050, %v3049
  %v3259 = vpack.c.bf16 %v3052, %v3051
  %v3260 = vpack.c.bf16 %v3054, %v3053
  %v3261 = vpack.c.bf16 %v3056, %v3055
  %v3262 = vpack.c.bf16 %v3058, %v3057
  %v3263 = vpack.c.bf16 %v3060, %v3059
  %v3264 = vpack.c.bf16 %v3062, %v3061
  %v3265 = vpack.c.bf16 %v3064, %v3063
  %v3266 = vpack.c.bf16 %v3066, %v3065
  %v3267 = vpack.c.bf16 %v3068, %v3067
  %v3268 = vpack.c.bf16 %v3070, %v3069
  %v3269 = vpack.c.bf16 %v3072, %v3071
  %v3270 = vpack.c.bf16 %v3074, %v3073
  %v3271 = vpack.c.bf16 %v3076, %v3075
  %v3272 = vpack.c.bf16 %v3078, %v3077
  %v3273 = vpack.c.bf16 %v3080, %v3079
  %v3274 = vpack.c.bf16 %v3082, %v3081
  %v3275 = vpack.c.bf16 %v3084, %v3083
  %v3276 = vpack.c.bf16 %v3086, %v3085
  %v3277 = vpack.c.bf16 %v3088, %v3087
  %v3278 = vpack.c.bf16 %v3090, %v3089
  %v3279 = vpack.c.bf16 %v3092, %v3091
  %v3280 = vpack.c.bf16 %v3094, %v3093
  %v3281 = vpack.c.bf16 %v3096, %v3095
  %v3282 = vpack.c.bf16 %v3098, %v3097
  %v3283 = vpack.c.bf16 %v3100, %v3099
  %v3284 = vpack.c.bf16 %v3102, %v3101
  %v3285 = vpack.c.bf16 %v3104, %v3103
  %v3286 = vpack.c.bf16 %v3106, %v3105
  %v3287 = vpack.c.bf16 %v3108, %v3107
  %v3288 = vpack.c.bf16 %v3110, %v3109
  %v3289 = vpack.c.bf16 %v3112, %v3111
  %v3290 = vpack.c.bf16 %v3114, %v3113
  %v3291 = vpack.c.bf16 %v3116, %v3115
  %v3292 = vpack.c.bf16 %v3118, %v3117
  %v3293 = vpack.c.bf16 %v3120, %v3119
  %v3294 = vpack.c.bf16 %v3122, %v3121
  %v3295 = vpack.c.bf16 %v3124, %v3123
  %v3296 = vpack.c.bf16 %v3126, %v3125
  %v3297 = vpack.c.bf16 %v3128, %v3127
  %v3298 = vpack.c.bf16 %v3130, %v3129
  %v3299 = vpack.c.bf16 %v3132, %v3131
  %v3300 = vpack.c.bf16 %v3134, %v3133
  %v3301 = vpack.c.bf16 %v3136, %v3135
  %v3302 = vpack.c.bf16 %v3138, %v3137
  %v3303 = vpack.c.bf16 %v3140, %v3139
  %v3304 = vpack.c.bf16 %v3142, %v3141
  %v3305 = vpack.c.bf16 %v3144, %v3143
  %v3306 = vpack.c.bf16 %v3146, %v3145
  %v3307 = vpack.c.bf16 %v3148, %v3147
  %v3308 = vpack.c.bf16 %v3150, %v3149
  %v3309 = vpack.c.bf16 %v3152, %v3151
  %v3310 = vpack.c.bf16 %v3154, %v3153
  %v3311 = vpack.c.bf16 %v3156, %v3155
  %v3312 = vpack.c.bf16 %v3158, %v3157
  %v3313 = vpack.c.bf16 %v3160, %v3159
  %v3314 = vpack.c.bf16 %v3162, %v3161
  %v3315 = vpack.c.bf16 %v3164, %v3163
  %v3316 = vpack.c.bf16 %v3166, %v3165
  %v3317 = vpack.c.bf16 %v3168, %v3167
  %v3318 = vpack.c.bf16 %v3170, %v3169
  %v3319 = vpack.c.bf16 %v3172, %v3171
  %v3320 = vpack.c.bf16 %v3174, %v3173
  %v3321 = vpack.c.bf16 %v3176, %v3175
  %v3322 = vpack.c.bf16 %v3178, %v3177
  %v3323 = vpack.c.bf16 %v3180, %v3179
  %v3324 = vpack.c.bf16 %v3182, %v3181
  %v3325 = vpack.c.bf16 %v3184, %v3183
  %v3326 = vpack.c.bf16 %v3186, %v3185
  %v3327 = vpack.c.bf16 %v3188, %v3187
  %v3328 = vpack.c.bf16 %v3190, %v3189
  %v3329 = vpack.c.bf16 %v3192, %v3191
  %v3330 = vpack.c.bf16 %v3194, %v3193
  %v3331 = vpack.c.bf16 %v3196, %v3195
  %v3332 = vpack.c.bf16 %v3198, %v3197
  %v3333 = vpack.c.bf16 %v3200, %v3199
  %v3334 = vpack.c.bf16 %v3202, %v3201
  %v3335 = vpack.c.bf16 %v3204, %v3203
  %v3336 = vpack.c.bf16 %v3206, %v3205
  %v3337 = vpack.c.bf16 %v3208, %v3207
  %v3338 = vpack.c.bf16 %v3210, %v3209
  %v3467 = vunpack.c.l.b16 %v3211
  %v3468 = vunpack.c.h.b16 %v3211
  %v3469 = vunpack.c.l.b16 %v3212
  %v3470 = vunpack.c.h.b16 %v3212
  %v3471 = vunpack.c.l.b16 %v3213
  %v3472 = vunpack.c.h.b16 %v3213
  %v3473 = vunpack.c.l.b16 %v3214
  %v3474 = vunpack.c.h.b16 %v3214
  %v3475 = vunpack.c.l.b16 %v3215
  %v3476 = vunpack.c.h.b16 %v3215
  %v3477 = vunpack.c.l.b16 %v3216
  %v3478 = vunpack.c.h.b16 %v3216
  %v3479 = vunpack.c.l.b16 %v3217
  %v3480 = vunpack.c.h.b16 %v3217
  %v3481 = vunpack.c.l.b16 %v3218
  %v3482 = vunpack.c.h.b16 %v3218
  %v3483 = vunpack.c.l.b16 %v3219
  %v3484 = vunpack.c.h.b16 %v3219
  %v3485 = vunpack.c.l.b16 %v3220
  %v3486 = vunpack.c.h.b16 %v3220
  %v3487 = vunpack.c.l.b16 %v3221
  %v3488 = vunpack.c.h.b16 %v3221
  %v3489 = vunpack.c.l.b16 %v3222
  %v3490 = vunpack.c.h.b16 %v3222
  %v3491 = vunpack.c.l.b16 %v3223
  %v3492 = vunpack.c.h.b16 %v3223
  %v3493 = vunpack.c.l.b16 %v3224
  %v3494 = vunpack.c.h.b16 %v3224
  %v3495 = vunpack.c.l.b16 %v3225
  %v3496 = vunpack.c.h.b16 %v3225
  %v3497 = vunpack.c.l.b16 %v3226
  %v3498 = vunpack.c.h.b16 %v3226
  %v3499 = vunpack.c.l.b16 %v3227
  %v3500 = vunpack.c.h.b16 %v3227
  %v3501 = vunpack.c.l.b16 %v3228
  %v3502 = vunpack.c.h.b16 %v3228
  %v3503 = vunpack.c.l.b16 %v3229
  %v3504 = vunpack.c.h.b16 %v3229
  %v3505 = vunpack.c.l.b16 %v3230
  %v3506 = vunpack.c.h.b16 %v3230
  %v3507 = vunpack.c.l.b16 %v3231
  %v3508 = vunpack.c.h.b16 %v3231
  %v3509 = vunpack.c.l.b16 %v3232
  %v3510 = vunpack.c.h.b16 %v3232
  %v3511 = vunpack.c.l.b16 %v3233
  %v3512 = vunpack.c.h.b16 %v3233
  %v3513 = vunpack.c.l.b16 %v3234
  %v3514 = vunpack.c.h.b16 %v3234
  %v3515 = vunpack.c.l.b16 %v3235
  %v3516 = vunpack.c.h.b16 %v3235
  %v3517 = vunpack.c.l.b16 %v3236
  %v3518 = vunpack.c.h.b16 %v3236
  %v3519 = vunpack.c.l.b16 %v3237
  %v3520 = vunpack.c.h.b16 %v3237
  %v3521 = vunpack.c.l.b16 %v3238
  %v3522 = vunpack.c.h.b16 %v3238
  %v3523 = vunpack.c.l.b16 %v3239
  %v3524 = vunpack.c.h.b16 %v3239
  %v3525 = vunpack.c.l.b16 %v3240
  %v3526 = vunpack.c.h.b16 %v3240
  %v3527 = vunpack.c.l.b16 %v3241
  %v3528 = vunpack.c.h.b16 %v3241
  %v3529 = vunpack.c.l.b16 %v3242
  %v3530 = vunpack.c.h.b16 %v3242
  %v3531 = vunpack.c.l.b16 %v3243
  %v3532 = vunpack.c.h.b16 %v3243
  %v3533 = vunpack.c.l.b16 %v3244
  %v3534 = vunpack.c.h.b16 %v3244
  %v3535 = vunpack.c.l.b16 %v3245
  %v3536 = vunpack.c.h.b16 %v3245
  %v3537 = vunpack.c.l.b16 %v3246
  %v3538 = vunpack.c.h.b16 %v3246
  %v3539 = vunpack.c.l.b16 %v3247
  %v3540 = vunpack.c.h.b16 %v3247
  %v3541 = vunpack.c.l.b16 %v3248
  %v3542 = vunpack.c.h.b16 %v3248
  %v3543 = vunpack.c.l.b16 %v3249
  %v3544 = vunpack.c.h.b16 %v3249
  %v3545 = vunpack.c.l.b16 %v3250
  %v3546 = vunpack.c.h.b16 %v3250
  %v3547 = vunpack.c.l.b16 %v3251
  %v3548 = vunpack.c.h.b16 %v3251
  %v3549 = vunpack.c.l.b16 %v3252
  %v3550 = vunpack.c.h.b16 %v3252
  %v3551 = vunpack.c.l.b16 %v3253
  %v3552 = vunpack.c.h.b16 %v3253
  %v3553 = vunpack.c.l.b16 %v3254
  %v3554 = vunpack.c.h.b16 %v3254
  %v3555 = vunpack.c.l.b16 %v3255
  %v3556 = vunpack.c.h.b16 %v3255
  %v3557 = vunpack.c.l.b16 %v3256
  %v3558 = vunpack.c.h.b16 %v3256
  %v3559 = vunpack.c.l.b16 %v3257
  %v3560 = vunpack.c.h.b16 %v3257
  %v3561 = vunpack.c.l.b16 %v3258
  %v3562 = vunpack.c.h.b16 %v3258
  %v3563 = vunpack.c.l.b16 %v3259
  %v3564 = vunpack.c.h.b16 %v3259
  %v3565 = vunpack.c.l.b16 %v3260
  %v3566 = vunpack.c.h.b16 %v3260
  %v3567 = vunpack.c.l.b16 %v3261
  %v3568 = vunpack.c.h.b16 %v3261
  %v3569 = vunpack.c.l.b16 %v3262
  %v3570 = vunpack.c.h.b16 %v3262
  %v3571 = vunpack.c.l.b16 %v3263
  %v3572 = vunpack.c.h.b16 %v3263
  %v3573 = vunpack.c.l.b16 %v3264
  %v3574 = vunpack.c.h.b16 %v3264
  %v3575 = vunpack.c.l.b16 %v3265
  %v3576 = vunpack.c.h.b16 %v3265
  %v3577 = vunpack.c.l.b16 %v3266
  %v3578 = vunpack.c.h.b16 %v3266
  %v3579 = vunpack.c.l.b16 %v3267
  %v3580 = vunpack.c.h.b16 %v3267
  %v3581 = vunpack.c.l.b16 %v3268
  %v3582 = vunpack.c.h.b16 %v3268
  %v3583 = vunpack.c.l.b16 %v3269
  %v3584 = vunpack.c.h.b16 %v3269
  %v3585 = vunpack.c.l.b16 %v3270
  %v3586 = vunpack.c.h.b16 %v3270
  %v3587 = vunpack.c.l.b16 %v3271
  %v3588 = vunpack.c.h.b16 %v3271
  %v3589 = vunpack.c.l.b16 %v3272
  %v3590 = vunpack.c.h.b16 %v3272
  %v3591 = vunpack.c.l.b16 %v3273
  %v3592 = vunpack.c.h.b16 %v3273
  %v3593 = vunpack.c.l.b16 %v3274
  %v3594 = vunpack.c.h.b16 %v3274
  %v3595 = vunpack.c.l.b16 %v3275
  %v3596 = vunpack.c.h.b16 %v3275
  %v3597 = vunpack.c.l.b16 %v3276
  %v3598 = vunpack.c.h.b16 %v3276
  %v3599 = vunpack.c.l.b16 %v3277
  %v3600 = vunpack.c.h.b16 %v3277
  %v3601 = vunpack.c.l.b16 %v3278
  %v3602 = vunpack.c.h.b16 %v3278
  %v3603 = vunpack.c.l.b16 %v3279
  %v3604 = vunpack.c.h.b16 %v3279
  %v3605 = vunpack.c.l.b16 %v3280
  %v3606 = vunpack.c.h.b16 %v3280
  %v3607 = vunpack.c.l.b16 %v3281
  %v3608 = vunpack.c.h.b16 %v3281
  %v3609 = vunpack.c.l.b16 %v3282
  %v3610 = vunpack.c.h.b16 %v3282
  %v3611 = vunpack.c.l.b16 %v3283
  %v3612 = vunpack.c.h.b16 %v3283
  %v3613 = vunpack.c.l.b16 %v3284
  %v3614 = vunpack.c.h.b16 %v3284
  %v3615 = vunpack.c.l.b16 %v3285
  %v3616 = vunpack.c.h.b16 %v3285
  %v3617 = vunpack.c.l.b16 %v3286
  %v3618 = vunpack.c.h.b16 %v3286
  %v3619 = vunpack.c.l.b16 %v3287
  %v3620 = vunpack.c.h.b16 %v3287
  %v3621 = vunpack.c.l.b16 %v3288
  %v3622 = vunpack.c.h.b16 %v3288
  %v3623 = vunpack.c.l.b16 %v3289
  %v3624 = vunpack.c.h.b16 %v3289
  %v3625 = vunpack.c.l.b16 %v3290
  %v3626 = vunpack.c.h.b16 %v3290
  %v3627 = vunpack.c.l.b16 %v3291
  %v3628 = vunpack.c.h.b16 %v3291
  %v3629 = vunpack.c.l.b16 %v3292
  %v3630 = vunpack.c.h.b16 %v3292
  %v3631 = vunpack.c.l.b16 %v3293
  %v3632 = vunpack.c.h.b16 %v3293
  %v3633 = vunpack.c.l.b16 %v3294
  %v3634 = vunpack.c.h.b16 %v3294
  %v3635 = vunpack.c.l.b16 %v3295
  %v3636 = vunpack.c.h.b16 %v3295
  %v3637 = vunpack.c.l.b16 %v3296
  %v3638 = vunpack.c.h.b16 %v3296
  %v3639 = vunpack.c.l.b16 %v3297
  %v3640 = vunpack.c.h.b16 %v3297
  %v3641 = vunpack.c.l.b16 %v3298
  %v3642 = vunpack.c.h.b16 %v3298
  %v3643 = vunpack.c.l.b16 %v3299
  %v3644 = vunpack.c.h.b16 %v3299
  %v3645 = vunpack.c.l.b16 %v3300
  %v3646 = vunpack.c.h.b16 %v3300
  %v3647 = vunpack.c.l.b16 %v3301
  %v3648 = vunpack.c.h.b16 %v3301
  %v3649 = vunpack.c.l.b16 %v3302
  %v3650 = vunpack.c.h.b16 %v3302
  %v3651 = vunpack.c.l.b16 %v3303
  %v3652 = vunpack.c.h.b16 %v3303
  %v3653 = vunpack.c.l.b16 %v3304
  %v3654 = vunpack.c.h.b16 %v3304
  %v3655 = vunpack.c.l.b16 %v3305
  %v3656 = vunpack.c.h.b16 %v3305
  %v3657 = vunpack.c.l.b16 %v3306
  %v3658 = vunpack.c.h.b16 %v3306
  %v3659 = vunpack.c.l.b16 %v3307
  %v3660 = vunpack.c.h.b16 %v3307
  %v3661 = vunpack.c.l.b16 %v3308
  %v3662 = vunpack.c.h.b16 %v3308
  %v3663 = vunpack.c.l.b16 %v3309
  %v3664 = vunpack.c.h.b16 %v3309
  %v3665 = vunpack.c.l.b16 %v3310
  %v3666 = vunpack.c.h.b16 %v3310
  %v3667 = vunpack.c.l.b16 %v3311
  %v3668 = vunpack.c.h.b16 %v3311
  %v3669 = vunpack.c.l.b16 %v3312
  %v3670 = vunpack.c.h.b16 %v3312
  %v3671 = vunpack.c.l.b16 %v3313
  %v3672 = vunpack.c.h.b16 %v3313
  %v3673 = vunpack.c.l.b16 %v3314
  %v3674 = vunpack.c.h.b16 %v3314
  %v3675 = vunpack.c.l.b16 %v3315
  %v3676 = vunpack.c.h.b16 %v3315
  %v3677 = vunpack.c.l.b16 %v3316
  %v3678 = vunpack.c.h.b16 %v3316
  %v3679 = vunpack.c.l.b16 %v3317
  %v3680 = vunpack.c.h.b16 %v3317
  %v3681 = vunpack.c.l.b16 %v3318
  %v3682 = vunpack.c.h.b16 %v3318
  %v3683 = vunpack.c.l.b16 %v3319
  %v3684 = vunpack.c.h.b16 %v3319
  %v3685 = vunpack.c.l.b16 %v3320
  %v3686 = vunpack.c.h.b16 %v3320
  %v3687 = vunpack.c.l.b16 %v3321
  %v3688 = vunpack.c.h.b16 %v3321
  %v3689 = vunpack.c.l.b16 %v3322
  %v3690 = vunpack.c.h.b16 %v3322
  %v3691 = vunpack.c.l.b16 %v3323
  %v3692 = vunpack.c.h.b16 %v3323
  %v3693 = vunpack.c.l.b16 %v3324
  %v3694 = vunpack.c.h.b16 %v3324
  %v3695 = vunpack.c.l.b16 %v3325
  %v3696 = vunpack.c.h.b16 %v3325
  %v3697 = vunpack.c.l.b16 %v3326
  %v3698 = vunpack.c.h.b16 %v3326
  %v3699 = vunpack.c.l.b16 %v3327
  %v3700 = vunpack.c.h.b16 %v3327
  %v3701 = vunpack.c.l.b16 %v3328
  %v3702 = vunpack.c.h.b16 %v3328
  %v3703 = vunpack.c.l.b16 %v3329
  %v3704 = vunpack.c.h.b16 %v3329
  %v3705 = vunpack.c.l.b16 %v3330
  %v3706 = vunpack.c.h.b16 %v3330
  %v3707 = vunpack.c.l.b16 %v3331
  %v3708 = vunpack.c.h.b16 %v3331
  %v3709 = vunpack.c.l.b16 %v3332
  %v3710 = vunpack.c.h.b16 %v3332
  %v3711 = vunpack.c.l.b16 %v3333
  %v3712 = vunpack.c.h.b16 %v3333
  %v3713 = vunpack.c.l.b16 %v3334
  %v3714 = vunpack.c.h.b16 %v3334
  %v3715 = vunpack.c.l.b16 %v3335
  %v3716 = vunpack.c.h.b16 %v3335
  %v3717 = vunpack.c.l.b16 %v3336
  %v3718 = vunpack.c.h.b16 %v3336
  %v3719 = vunpack.c.l.b16 %v3337
  %v3720 = vunpack.c.h.b16 %v3337
  %v3721 = vunpack.c.l.b16 %v3338
  %v3722 = vunpack.c.h.b16 %v3338
  %v3723 = vpack.c.b16 %v3467, %v3467
  %v3724 = vpack.c.b16 %v3468, %v3468
  %v3725 = vpack.c.b16 %v3469, %v3469
  %v3726 = vpack.c.b16 %v3470, %v3470
  %v3727 = vpack.c.b16 %v3471, %v3471
  %v3728 = vpack.c.b16 %v3472, %v3472
  %v3729 = vpack.c.b16 %v3473, %v3473
  %v3730 = vpack.c.b16 %v3474, %v3474
  %v3731 = vpack.c.b16 %v3475, %v3475
  %v3732 = vpack.c.b16 %v3476, %v3476
  %v3733 = vpack.c.b16 %v3477, %v3477
  %v3734 = vpack.c.b16 %v3478, %v3478
  %v3735 = vpack.c.b16 %v3479, %v3479
  %v3736 = vpack.c.b16 %v3480, %v3480
  %v3737 = vpack.c.b16 %v3481, %v3481
  %v3738 = vpack.c.b16 %v3482, %v3482
  %v3739 = vpack.c.b16 %v3483, %v3483
  %v3740 = vpack.c.b16 %v3484, %v3484
  %v3741 = vpack.c.b16 %v3485, %v3485
  %v3742 = vpack.c.b16 %v3486, %v3486
  %v3743 = vpack.c.b16 %v3487, %v3487
  %v3744 = vpack.c.b16 %v3488, %v3488
  %v3745 = vpack.c.b16 %v3489, %v3489
  %v3746 = vpack.c.b16 %v3490, %v3490
  %v3747 = vpack.c.b16 %v3491, %v3491
  %v3748 = vpack.c.b16 %v3492, %v3492
  %v3749 = vpack.c.b16 %v3493, %v3493
  %v3750 = vpack.c.b16 %v3494, %v3494
  %v3751 = vpack.c.b16 %v3495, %v3495
  %v3752 = vpack.c.b16 %v3496, %v3496
  %v3753 = vpack.c.b16 %v3497, %v3497
  %v3754 = vpack.c.b16 %v3498, %v3498
  %v3755 = vpack.c.b16 %v3499, %v3499
  %v3756 = vpack.c.b16 %v3500, %v3500
  %v3757 = vpack.c.b16 %v3501, %v3501
  %v3758 = vpack.c.b16 %v3502, %v3502
  %v3759 = vpack.c.b16 %v3503, %v3503
  %v3760 = vpack.c.b16 %v3504, %v3504
  %v3761 = vpack.c.b16 %v3505, %v3505
  %v3762 = vpack.c.b16 %v3506, %v3506
  %v3763 = vpack.c.b16 %v3507, %v3507
  %v3764 = vpack.c.b16 %v3508, %v3508
  %v3765 = vpack.c.b16 %v3509, %v3509
  %v3766 = vpack.c.b16 %v3510, %v3510
  %v3767 = vpack.c.b16 %v3511, %v3511
  %v3768 = vpack.c.b16 %v3512, %v3512
  %v3769 = vpack.c.b16 %v3513, %v3513
  %v3770 = vpack.c.b16 %v3514, %v3514
  %v3771 = vpack.c.b16 %v3515, %v3515
  %v3772 = vpack.c.b16 %v3516, %v3516
  %v3773 = vpack.c.b16 %v3517, %v3517
  %v3774 = vpack.c.b16 %v3518, %v3518
  %v3775 = vpack.c.b16 %v3519, %v3519
  %v3776 = vpack.c.b16 %v3520, %v3520
  %v3777 = vpack.c.b16 %v3521, %v3521
  %v3778 = vpack.c.b16 %v3522, %v3522
  %v3779 = vpack.c.b16 %v3523, %v3523
  %v3780 = vpack.c.b16 %v3524, %v3524
  %v3781 = vpack.c.b16 %v3525, %v3525
  %v3782 = vpack.c.b16 %v3526, %v3526
  %v3783 = vpack.c.b16 %v3527, %v3527
  %v3784 = vpack.c.b16 %v3528, %v3528
  %v3785 = vpack.c.b16 %v3529, %v3529
  %v3786 = vpack.c.b16 %v3530, %v3530
  %v3787 = vpack.c.b16 %v3531, %v3531
  %v3788 = vpack.c.b16 %v3532, %v3532
  %v3789 = vpack.c.b16 %v3533, %v3533
  %v3790 = vpack.c.b16 %v3534, %v3534
  %v3791 = vpack.c.b16 %v3535, %v3535
  %v3792 = vpack.c.b16 %v3536, %v3536
  %v3793 = vpack.c.b16 %v3537, %v3537
  %v3794 = vpack.c.b16 %v3538, %v3538
  %v3795 = vpack.c.b16 %v3539, %v3539
  %v3796 = vpack.c.b16 %v3540, %v3540
  %v3797 = vpack.c.b16 %v3541, %v3541
  %v3798 = vpack.c.b16 %v3542, %v3542
  %v3799 = vpack.c.b16 %v3543, %v3543
  %v3800 = vpack.c.b16 %v3544, %v3544
  %v3801 = vpack.c.b16 %v3545, %v3545
  %v3802 = vpack.c.b16 %v3546, %v3546
  %v3803 = vpack.c.b16 %v3547, %v3547
  %v3804 = vpack.c.b16 %v3548, %v3548
  %v3805 = vpack.c.b16 %v3549, %v3549
  %v3806 = vpack.c.b16 %v3550, %v3550
  %v3807 = vpack.c.b16 %v3551, %v3551
  %v3808 = vpack.c.b16 %v3552, %v3552
  %v3809 = vpack.c.b16 %v3553, %v3553
  %v3810 = vpack.c.b16 %v3554, %v3554
  %v3811 = vpack.c.b16 %v3555, %v3555
  %v3812 = vpack.c.b16 %v3556, %v3556
  %v3813 = vpack.c.b16 %v3557, %v3557
  %v3814 = vpack.c.b16 %v3558, %v3558
  %v3815 = vpack.c.b16 %v3559, %v3559
  %v3816 = vpack.c.b16 %v3560, %v3560
  %v3817 = vpack.c.b16 %v3561, %v3561
  %v3818 = vpack.c.b16 %v3562, %v3562
  %v3819 = vpack.c.b16 %v3563, %v3563
  %v3820 = vpack.c.b16 %v3564, %v3564
  %v3821 = vpack.c.b16 %v3565, %v3565
  %v3822 = vpack.c.b16 %v3566, %v3566
  %v3823 = vpack.c.b16 %v3567, %v3567
  %v3824 = vpack.c.b16 %v3568, %v3568
  %v3825 = vpack.c.b16 %v3569, %v3569
  %v3826 = vpack.c.b16 %v3570, %v3570
  %v3827 = vpack.c.b16 %v3571, %v3571
  %v3828 = vpack.c.b16 %v3572, %v3572
  %v3829 = vpack.c.b16 %v3573, %v3573
  %v3830 = vpack.c.b16 %v3574, %v3574
  %v3831 = vpack.c.b16 %v3575, %v3575
  %v3832 = vpack.c.b16 %v3576, %v3576
  %v3833 = vpack.c.b16 %v3577, %v3577
  %v3834 = vpack.c.b16 %v3578, %v3578
  %v3835 = vpack.c.b16 %v3579, %v3579
  %v3836 = vpack.c.b16 %v3580, %v3580
  %v3837 = vpack.c.b16 %v3581, %v3581
  %v3838 = vpack.c.b16 %v3582, %v3582
  %v3839 = vpack.c.b16 %v3583, %v3583
  %v3840 = vpack.c.b16 %v3584, %v3584
  %v3841 = vpack.c.b16 %v3585, %v3585
  %v3842 = vpack.c.b16 %v3586, %v3586
  %v3843 = vpack.c.b16 %v3587, %v3587
  %v3844 = vpack.c.b16 %v3588, %v3588
  %v3845 = vpack.c.b16 %v3589, %v3589
  %v3846 = vpack.c.b16 %v3590, %v3590
  %v3847 = vpack.c.b16 %v3591, %v3591
  %v3848 = vpack.c.b16 %v3592, %v3592
  %v3849 = vpack.c.b16 %v3593, %v3593
  %v3850 = vpack.c.b16 %v3594, %v3594
  %v3851 = vpack.c.b16 %v3595, %v3595
  %v3852 = vpack.c.b16 %v3596, %v3596
  %v3853 = vpack.c.b16 %v3597, %v3597
  %v3854 = vpack.c.b16 %v3598, %v3598
  %v3855 = vpack.c.b16 %v3599, %v3599
  %v3856 = vpack.c.b16 %v3600, %v3600
  %v3857 = vpack.c.b16 %v3601, %v3601
  %v3858 = vpack.c.b16 %v3602, %v3602
  %v3859 = vpack.c.b16 %v3603, %v3603
  %v3860 = vpack.c.b16 %v3604, %v3604
  %v3861 = vpack.c.b16 %v3605, %v3605
  %v3862 = vpack.c.b16 %v3606, %v3606
  %v3863 = vpack.c.b16 %v3607, %v3607
  %v3864 = vpack.c.b16 %v3608, %v3608
  %v3865 = vpack.c.b16 %v3609, %v3609
  %v3866 = vpack.c.b16 %v3610, %v3610
  %v3867 = vpack.c.b16 %v3611, %v3611
  %v3868 = vpack.c.b16 %v3612, %v3612
  %v3869 = vpack.c.b16 %v3613, %v3613
  %v3870 = vpack.c.b16 %v3614, %v3614
  %v3871 = vpack.c.b16 %v3615, %v3615
  %v3872 = vpack.c.b16 %v3616, %v3616
  %v3873 = vpack.c.b16 %v3617, %v3617
  %v3874 = vpack.c.b16 %v3618, %v3618
  %v3875 = vpack.c.b16 %v3619, %v3619
  %v3876 = vpack.c.b16 %v3620, %v3620
  %v3877 = vpack.c.b16 %v3621, %v3621
  %v3878 = vpack.c.b16 %v3622, %v3622
  %v3879 = vpack.c.b16 %v3623, %v3623
  %v3880 = vpack.c.b16 %v3624, %v3624
  %v3881 = vpack.c.b16 %v3625, %v3625
  %v3882 = vpack.c.b16 %v3626, %v3626
  %v3883 = vpack.c.b16 %v3627, %v3627
  %v3884 = vpack.c.b16 %v3628, %v3628
  %v3885 = vpack.c.b16 %v3629, %v3629
  %v3886 = vpack.c.b16 %v3630, %v3630
  %v3887 = vpack.c.b16 %v3631, %v3631
  %v3888 = vpack.c.b16 %v3632, %v3632
  %v3889 = vpack.c.b16 %v3633, %v3633
  %v3890 = vpack.c.b16 %v3634, %v3634
  %v3891 = vpack.c.b16 %v3635, %v3635
  %v3892 = vpack.c.b16 %v3636, %v3636
  %v3893 = vpack.c.b16 %v3637, %v3637
  %v3894 = vpack.c.b16 %v3638, %v3638
  %v3895 = vpack.c.b16 %v3639, %v3639
  %v3896 = vpack.c.b16 %v3640, %v3640
  %v3897 = vpack.c.b16 %v3641, %v3641
  %v3898 = vpack.c.b16 %v3642, %v3642
  %v3899 = vpack.c.b16 %v3643, %v3643
  %v3900 = vpack.c.b16 %v3644, %v3644
  %v3901 = vpack.c.b16 %v3645, %v3645
  %v3902 = vpack.c.b16 %v3646, %v3646
  %v3903 = vpack.c.b16 %v3647, %v3647
  %v3904 = vpack.c.b16 %v3648, %v3648
  %v3905 = vpack.c.b16 %v3649, %v3649
  %v3906 = vpack.c.b16 %v3650, %v3650
  %v3907 = vpack.c.b16 %v3651, %v3651
  %v3908 = vpack.c.b16 %v3652, %v3652
  %v3909 = vpack.c.b16 %v3653, %v3653
  %v3910 = vpack.c.b16 %v3654, %v3654
  %v3911 = vpack.c.b16 %v3655, %v3655
  %v3912 = vpack.c.b16 %v3656, %v3656
  %v3913 = vpack.c.b16 %v3657, %v3657
  %v3914 = vpack.c.b16 %v3658, %v3658
  %v3915 = vpack.c.b16 %v3659, %v3659
  %v3916 = vpack.c.b16 %v3660, %v3660
  %v3917 = vpack.c.b16 %v3661, %v3661
  %v3918 = vpack.c.b16 %v3662, %v3662
  %v3919 = vpack.c.b16 %v3663, %v3663
  %v3920 = vpack.c.b16 %v3664, %v3664
  %v3921 = vpack.c.b16 %v3665, %v3665
  %v3922 = vpack.c.b16 %v3666, %v3666
  %v3923 = vpack.c.b16 %v3667, %v3667
  %v3924 = vpack.c.b16 %v3668, %v3668
  %v3925 = vpack.c.b16 %v3669, %v3669
  %v3926 = vpack.c.b16 %v3670, %v3670
  %v3927 = vpack.c.b16 %v3671, %v3671
  %v3928 = vpack.c.b16 %v3672, %v3672
  %v3929 = vpack.c.b16 %v3673, %v3673
  %v3930 = vpack.c.b16 %v3674, %v3674
  %v3931 = vpack.c.b16 %v3675, %v3675
  %v3932 = vpack.c.b16 %v3676, %v3676
  %v3933 = vpack.c.b16 %v3677, %v3677
  %v3934 = vpack.c.b16 %v3678, %v3678
  %v3935 = vpack.c.b16 %v3679, %v3679
  %v3936 = vpack.c.b16 %v3680, %v3680
  %v3937 = vpack.c.b16 %v3681, %v3681
  %v3938 = vpack.c.b16 %v3682, %v3682
  %v3939 = vpack.c.b16 %v3683, %v3683
  %v3940 = vpack.c.b16 %v3684, %v3684
  %v3941 = vpack.c.b16 %v3685, %v3685
  %v3942 = vpack.c.b16 %v3686, %v3686
  %v3943 = vpack.c.b16 %v3687, %v3687
  %v3944 = vpack.c.b16 %v3688, %v3688
  %v3945 = vpack.c.b16 %v3689, %v3689
  %v3946 = vpack.c.b16 %v3690, %v3690
  %v3947 = vpack.c.b16 %v3691, %v3691
  %v3948 = vpack.c.b16 %v3692, %v3692
  %v3949 = vpack.c.b16 %v3693, %v3693
  %v3950 = vpack.c.b16 %v3694, %v3694
  %v3951 = vpack.c.b16 %v3695, %v3695
  %v3952 = vpack.c.b16 %v3696, %v3696
  %v3953 = vpack.c.b16 %v3697, %v3697
  %v3954 = vpack.c.b16 %v3698, %v3698
  %v3955 = vpack.c.b16 %v3699, %v3699
  %v3956 = vpack.c.b16 %v3700, %v3700
  %v3957 = vpack.c.b16 %v3701, %v3701
  %v3958 = vpack.c.b16 %v3702, %v3702
  %v3959 = vpack.c.b16 %v3703, %v3703
  %v3960 = vpack.c.b16 %v3704, %v3704
  %v3961 = vpack.c.b16 %v3705, %v3705
  %v3962 = vpack.c.b16 %v3706, %v3706
  %v3963 = vpack.c.b16 %v3707, %v3707
  %v3964 = vpack.c.b16 %v3708, %v3708
  %v3965 = vpack.c.b16 %v3709, %v3709
  %v3966 = vpack.c.b16 %v3710, %v3710
  %v3967 = vpack.c.b16 %v3711, %v3711
  %v3968 = vpack.c.b16 %v3712, %v3712
  %v3969 = vpack.c.b16 %v3713, %v3713
  %v3970 = vpack.c.b16 %v3714, %v3714
  %v3971 = vpack.c.b16 %v3715, %v3715
  %v3972 = vpack.c.b16 %v3716, %v3716
  %v3973 = vpack.c.b16 %v3717, %v3717
  %v3974 = vpack.c.b16 %v3718, %v3718
  %v3975 = vpack.c.b16 %v3719, %v3719
  %v3976 = vpack.c.b16 %v3720, %v3720
  %v3977 = vpack.c.b16 %v3721, %v3721
  %v3978 = vpack.c.b16 %v3722, %v3722
  %vm4235 = vcmask 519168
  %4236 = vst.msk [vmem:[%s3] sm:$0xf] %vm4235, %v3723
  %4237 = vst.msk [vmem:[%s3 + $0x4] sm:$0xf] %vm4235, %v3724
  %4238 = vst.msk [vmem:[%s3 + $0x8] sm:$0xf] %vm4235, %v3725
  %4239 = vst.msk [vmem:[%s3 + $0xc] sm:$0xf] %vm4235, %v3726
  %4240 = vst.msk [vmem:[%s3 + $0x10] sm:$0xf] %vm4235, %v3727
  %4241 = vst.msk [vmem:[%s3 + $0x14] sm:$0xf] %vm4235, %v3728
  %4242 = vst.msk [vmem:[%s3 + $0x18] sm:$0xf] %vm4235, %v3729
  %4243 = vst.msk [vmem:[%s3 + $0x1c] sm:$0xf] %vm4235, %v3730
  %4244 = vst.msk [vmem:[%s3 + $0x20] sm:$0xf] %vm4235, %v3731
  %4245 = vst.msk [vmem:[%s3 + $0x24] sm:$0xf] %vm4235, %v3732
  %4246 = vst.msk [vmem:[%s3 + $0x28] sm:$0xf] %vm4235, %v3733
  %4247 = vst.msk [vmem:[%s3 + $0x2c] sm:$0xf] %vm4235, %v3734
  %4248 = vst.msk [vmem:[%s3 + $0x30] sm:$0xf] %vm4235, %v3735
  %4249 = vst.msk [vmem:[%s3 + $0x34] sm:$0xf] %vm4235, %v3736
  %4250 = vst.msk [vmem:[%s3 + $0x38] sm:$0xf] %vm4235, %v3737
  %4251 = vst.msk [vmem:[%s3 + $0x3c] sm:$0xf] %vm4235, %v3738
  %4252 = vst.msk [vmem:[%s3 + $0x40] sm:$0xf] %vm4235, %v3739
  %4253 = vst.msk [vmem:[%s3 + $0x44] sm:$0xf] %vm4235, %v3740
  %4254 = vst.msk [vmem:[%s3 + $0x48] sm:$0xf] %vm4235, %v3741
  %4255 = vst.msk [vmem:[%s3 + $0x4c] sm:$0xf] %vm4235, %v3742
  %4256 = vst.msk [vmem:[%s3 + $0x50] sm:$0xf] %vm4235, %v3743
  %4257 = vst.msk [vmem:[%s3 + $0x54] sm:$0xf] %vm4235, %v3744
  %4258 = vst.msk [vmem:[%s3 + $0x58] sm:$0xf] %vm4235, %v3745
  %4259 = vst.msk [vmem:[%s3 + $0x5c] sm:$0xf] %vm4235, %v3746
  %4260 = vst.msk [vmem:[%s3 + $0x60] sm:$0xf] %vm4235, %v3747
  %4261 = vst.msk [vmem:[%s3 + $0x64] sm:$0xf] %vm4235, %v3748
  %4262 = vst.msk [vmem:[%s3 + $0x68] sm:$0xf] %vm4235, %v3749
  %4263 = vst.msk [vmem:[%s3 + $0x6c] sm:$0xf] %vm4235, %v3750
  %4264 = vst.msk [vmem:[%s3 + $0x70] sm:$0xf] %vm4235, %v3751
  %4265 = vst.msk [vmem:[%s3 + $0x74] sm:$0xf] %vm4235, %v3752
  %4266 = vst.msk [vmem:[%s3 + $0x78] sm:$0xf] %vm4235, %v3753
  %4267 = vst.msk [vmem:[%s3 + $0x7c] sm:$0xf] %vm4235, %v3754
  %4268 = vst.msk [vmem:[%s3 + $0x80] sm:$0xf] %vm4235, %v3755
  %4269 = vst.msk [vmem:[%s3 + $0x84] sm:$0xf] %vm4235, %v3756
  %4270 = vst.msk [vmem:[%s3 + $0x88] sm:$0xf] %vm4235, %v3757
  %4271 = vst.msk [vmem:[%s3 + $0x8c] sm:$0xf] %vm4235, %v3758
  %4272 = vst.msk [vmem:[%s3 + $0x90] sm:$0xf] %vm4235, %v3759
  %4273 = vst.msk [vmem:[%s3 + $0x94] sm:$0xf] %vm4235, %v3760
  %4274 = vst.msk [vmem:[%s3 + $0x98] sm:$0xf] %vm4235, %v3761
  %4275 = vst.msk [vmem:[%s3 + $0x9c] sm:$0xf] %vm4235, %v3762
  %4276 = vst.msk [vmem:[%s3 + $0xa0] sm:$0xf] %vm4235, %v3763
  %4277 = vst.msk [vmem:[%s3 + $0xa4] sm:$0xf] %vm4235, %v3764
  %4278 = vst.msk [vmem:[%s3 + $0xa8] sm:$0xf] %vm4235, %v3765
  %4279 = vst.msk [vmem:[%s3 + $0xac] sm:$0xf] %vm4235, %v3766
  %4280 = vst.msk [vmem:[%s3 + $0xb0] sm:$0xf] %vm4235, %v3767
  %4281 = vst.msk [vmem:[%s3 + $0xb4] sm:$0xf] %vm4235, %v3768
  %4282 = vst.msk [vmem:[%s3 + $0xb8] sm:$0xf] %vm4235, %v3769
  %4283 = vst.msk [vmem:[%s3 + $0xbc] sm:$0xf] %vm4235, %v3770
  %4284 = vst.msk [vmem:[%s3 + $0xc0] sm:$0xf] %vm4235, %v3771
  %4285 = vst.msk [vmem:[%s3 + $0xc4] sm:$0xf] %vm4235, %v3772
  %4286 = vst.msk [vmem:[%s3 + $0xc8] sm:$0xf] %vm4235, %v3773
  %4287 = vst.msk [vmem:[%s3 + $0xcc] sm:$0xf] %vm4235, %v3774
  %4288 = vst.msk [vmem:[%s3 + $0xd0] sm:$0xf] %vm4235, %v3775
  %4289 = vst.msk [vmem:[%s3 + $0xd4] sm:$0xf] %vm4235, %v3776
  %4290 = vst.msk [vmem:[%s3 + $0xd8] sm:$0xf] %vm4235, %v3777
  %4291 = vst.msk [vmem:[%s3 + $0xdc] sm:$0xf] %vm4235, %v3778
  %4292 = vst.msk [vmem:[%s3 + $0xe0] sm:$0xf] %vm4235, %v3779
  %4293 = vst.msk [vmem:[%s3 + $0xe4] sm:$0xf] %vm4235, %v3780
  %4294 = vst.msk [vmem:[%s3 + $0xe8] sm:$0xf] %vm4235, %v3781
  %4295 = vst.msk [vmem:[%s3 + $0xec] sm:$0xf] %vm4235, %v3782
  %4296 = vst.msk [vmem:[%s3 + $0xf0] sm:$0xf] %vm4235, %v3783
  %4297 = vst.msk [vmem:[%s3 + $0xf4] sm:$0xf] %vm4235, %v3784
  %4298 = vst.msk [vmem:[%s3 + $0xf8] sm:$0xf] %vm4235, %v3785
  %4299 = vst.msk [vmem:[%s3 + $0xfc] sm:$0xf] %vm4235, %v3786
  %4300 = vst.msk [vmem:[%s3 + $0x100] sm:$0xf] %vm4235, %v3787
  %4301 = vst.msk [vmem:[%s3 + $0x104] sm:$0xf] %vm4235, %v3788
  %4302 = vst.msk [vmem:[%s3 + $0x108] sm:$0xf] %vm4235, %v3789
  %4303 = vst.msk [vmem:[%s3 + $0x10c] sm:$0xf] %vm4235, %v3790
  %4304 = vst.msk [vmem:[%s3 + $0x110] sm:$0xf] %vm4235, %v3791
  %4305 = vst.msk [vmem:[%s3 + $0x114] sm:$0xf] %vm4235, %v3792
  %4306 = vst.msk [vmem:[%s3 + $0x118] sm:$0xf] %vm4235, %v3793
  %4307 = vst.msk [vmem:[%s3 + $0x11c] sm:$0xf] %vm4235, %v3794
  %4308 = vst.msk [vmem:[%s3 + $0x120] sm:$0xf] %vm4235, %v3795
  %4309 = vst.msk [vmem:[%s3 + $0x124] sm:$0xf] %vm4235, %v3796
  %4310 = vst.msk [vmem:[%s3 + $0x128] sm:$0xf] %vm4235, %v3797
  %4311 = vst.msk [vmem:[%s3 + $0x12c] sm:$0xf] %vm4235, %v3798
  %4312 = vst.msk [vmem:[%s3 + $0x130] sm:$0xf] %vm4235, %v3799
  %4313 = vst.msk [vmem:[%s3 + $0x134] sm:$0xf] %vm4235, %v3800
  %4314 = vst.msk [vmem:[%s3 + $0x138] sm:$0xf] %vm4235, %v3801
  %4315 = vst.msk [vmem:[%s3 + $0x13c] sm:$0xf] %vm4235, %v3802
  %4316 = vst.msk [vmem:[%s3 + $0x140] sm:$0xf] %vm4235, %v3803
  %4317 = vst.msk [vmem:[%s3 + $0x144] sm:$0xf] %vm4235, %v3804
  %4318 = vst.msk [vmem:[%s3 + $0x148] sm:$0xf] %vm4235, %v3805
  %4319 = vst.msk [vmem:[%s3 + $0x14c] sm:$0xf] %vm4235, %v3806
  %4320 = vst.msk [vmem:[%s3 + $0x150] sm:$0xf] %vm4235, %v3807
  %4321 = vst.msk [vmem:[%s3 + $0x154] sm:$0xf] %vm4235, %v3808
  %4322 = vst.msk [vmem:[%s3 + $0x158] sm:$0xf] %vm4235, %v3809
  %4323 = vst.msk [vmem:[%s3 + $0x15c] sm:$0xf] %vm4235, %v3810
  %4324 = vst.msk [vmem:[%s3 + $0x160] sm:$0xf] %vm4235, %v3811
  %4325 = vst.msk [vmem:[%s3 + $0x164] sm:$0xf] %vm4235, %v3812
  %4326 = vst.msk [vmem:[%s3 + $0x168] sm:$0xf] %vm4235, %v3813
  %4327 = vst.msk [vmem:[%s3 + $0x16c] sm:$0xf] %vm4235, %v3814
  %4328 = vst.msk [vmem:[%s3 + $0x170] sm:$0xf] %vm4235, %v3815
  %4329 = vst.msk [vmem:[%s3 + $0x174] sm:$0xf] %vm4235, %v3816
  %4330 = vst.msk [vmem:[%s3 + $0x178] sm:$0xf] %vm4235, %v3817
  %4331 = vst.msk [vmem:[%s3 + $0x17c] sm:$0xf] %vm4235, %v3818
  %4332 = vst.msk [vmem:[%s3 + $0x180] sm:$0xf] %vm4235, %v3819
  %4333 = vst.msk [vmem:[%s3 + $0x184] sm:$0xf] %vm4235, %v3820
  %4334 = vst.msk [vmem:[%s3 + $0x188] sm:$0xf] %vm4235, %v3821
  %4335 = vst.msk [vmem:[%s3 + $0x18c] sm:$0xf] %vm4235, %v3822
  %4336 = vst.msk [vmem:[%s3 + $0x190] sm:$0xf] %vm4235, %v3823
  %4337 = vst.msk [vmem:[%s3 + $0x194] sm:$0xf] %vm4235, %v3824
  %4338 = vst.msk [vmem:[%s3 + $0x198] sm:$0xf] %vm4235, %v3825
  %4339 = vst.msk [vmem:[%s3 + $0x19c] sm:$0xf] %vm4235, %v3826
  %4340 = vst.msk [vmem:[%s3 + $0x1a0] sm:$0xf] %vm4235, %v3827
  %4341 = vst.msk [vmem:[%s3 + $0x1a4] sm:$0xf] %vm4235, %v3828
  %4342 = vst.msk [vmem:[%s3 + $0x1a8] sm:$0xf] %vm4235, %v3829
  %4343 = vst.msk [vmem:[%s3 + $0x1ac] sm:$0xf] %vm4235, %v3830
  %4344 = vst.msk [vmem:[%s3 + $0x1b0] sm:$0xf] %vm4235, %v3831
  %4345 = vst.msk [vmem:[%s3 + $0x1b4] sm:$0xf] %vm4235, %v3832
  %4346 = vst.msk [vmem:[%s3 + $0x1b8] sm:$0xf] %vm4235, %v3833
  %4347 = vst.msk [vmem:[%s3 + $0x1bc] sm:$0xf] %vm4235, %v3834
  %4348 = vst.msk [vmem:[%s3 + $0x1c0] sm:$0xf] %vm4235, %v3835
  %4349 = vst.msk [vmem:[%s3 + $0x1c4] sm:$0xf] %vm4235, %v3836
  %4350 = vst.msk [vmem:[%s3 + $0x1c8] sm:$0xf] %vm4235, %v3837
  %4351 = vst.msk [vmem:[%s3 + $0x1cc] sm:$0xf] %vm4235, %v3838
  %4352 = vst.msk [vmem:[%s3 + $0x1d0] sm:$0xf] %vm4235, %v3839
  %4353 = vst.msk [vmem:[%s3 + $0x1d4] sm:$0xf] %vm4235, %v3840
  %4354 = vst.msk [vmem:[%s3 + $0x1d8] sm:$0xf] %vm4235, %v3841
  %4355 = vst.msk [vmem:[%s3 + $0x1dc] sm:$0xf] %vm4235, %v3842
  %4356 = vst.msk [vmem:[%s3 + $0x1e0] sm:$0xf] %vm4235, %v3843
  %4357 = vst.msk [vmem:[%s3 + $0x1e4] sm:$0xf] %vm4235, %v3844
  %4358 = vst.msk [vmem:[%s3 + $0x1e8] sm:$0xf] %vm4235, %v3845
  %4359 = vst.msk [vmem:[%s3 + $0x1ec] sm:$0xf] %vm4235, %v3846
  %4360 = vst.msk [vmem:[%s3 + $0x1f0] sm:$0xf] %vm4235, %v3847
  %4361 = vst.msk [vmem:[%s3 + $0x1f4] sm:$0xf] %vm4235, %v3848
  %4362 = vst.msk [vmem:[%s3 + $0x1f8] sm:$0xf] %vm4235, %v3849
  %4363 = vst.msk [vmem:[%s3 + $0x1fc] sm:$0xf] %vm4235, %v3850
  %4364 = vst.msk [vmem:[%s3 + $0x200] sm:$0xf] %vm4235, %v3851
  %4365 = vst.msk [vmem:[%s3 + $0x204] sm:$0xf] %vm4235, %v3852
  %4366 = vst.msk [vmem:[%s3 + $0x208] sm:$0xf] %vm4235, %v3853
  %4367 = vst.msk [vmem:[%s3 + $0x20c] sm:$0xf] %vm4235, %v3854
  %4368 = vst.msk [vmem:[%s3 + $0x210] sm:$0xf] %vm4235, %v3855
  %4369 = vst.msk [vmem:[%s3 + $0x214] sm:$0xf] %vm4235, %v3856
  %4370 = vst.msk [vmem:[%s3 + $0x218] sm:$0xf] %vm4235, %v3857
  %4371 = vst.msk [vmem:[%s3 + $0x21c] sm:$0xf] %vm4235, %v3858
  %4372 = vst.msk [vmem:[%s3 + $0x220] sm:$0xf] %vm4235, %v3859
  %4373 = vst.msk [vmem:[%s3 + $0x224] sm:$0xf] %vm4235, %v3860
  %4374 = vst.msk [vmem:[%s3 + $0x228] sm:$0xf] %vm4235, %v3861
  %4375 = vst.msk [vmem:[%s3 + $0x22c] sm:$0xf] %vm4235, %v3862
  %4376 = vst.msk [vmem:[%s3 + $0x230] sm:$0xf] %vm4235, %v3863
  %4377 = vst.msk [vmem:[%s3 + $0x234] sm:$0xf] %vm4235, %v3864
  %4378 = vst.msk [vmem:[%s3 + $0x238] sm:$0xf] %vm4235, %v3865
  %4379 = vst.msk [vmem:[%s3 + $0x23c] sm:$0xf] %vm4235, %v3866
  %4380 = vst.msk [vmem:[%s3 + $0x240] sm:$0xf] %vm4235, %v3867
  %4381 = vst.msk [vmem:[%s3 + $0x244] sm:$0xf] %vm4235, %v3868
  %4382 = vst.msk [vmem:[%s3 + $0x248] sm:$0xf] %vm4235, %v3869
  %4383 = vst.msk [vmem:[%s3 + $0x24c] sm:$0xf] %vm4235, %v3870
  %4384 = vst.msk [vmem:[%s3 + $0x250] sm:$0xf] %vm4235, %v3871
  %4385 = vst.msk [vmem:[%s3 + $0x254] sm:$0xf] %vm4235, %v3872
  %4386 = vst.msk [vmem:[%s3 + $0x258] sm:$0xf] %vm4235, %v3873
  %4387 = vst.msk [vmem:[%s3 + $0x25c] sm:$0xf] %vm4235, %v3874
  %4388 = vst.msk [vmem:[%s3 + $0x260] sm:$0xf] %vm4235, %v3875
  %4389 = vst.msk [vmem:[%s3 + $0x264] sm:$0xf] %vm4235, %v3876
  %4390 = vst.msk [vmem:[%s3 + $0x268] sm:$0xf] %vm4235, %v3877
  %4391 = vst.msk [vmem:[%s3 + $0x26c] sm:$0xf] %vm4235, %v3878
  %4392 = vst.msk [vmem:[%s3 + $0x270] sm:$0xf] %vm4235, %v3879
  %4393 = vst.msk [vmem:[%s3 + $0x274] sm:$0xf] %vm4235, %v3880
  %4394 = vst.msk [vmem:[%s3 + $0x278] sm:$0xf] %vm4235, %v3881
  %4395 = vst.msk [vmem:[%s3 + $0x27c] sm:$0xf] %vm4235, %v3882
  %4396 = vst.msk [vmem:[%s3 + $0x280] sm:$0xf] %vm4235, %v3883
  %4397 = vst.msk [vmem:[%s3 + $0x284] sm:$0xf] %vm4235, %v3884
  %4398 = vst.msk [vmem:[%s3 + $0x288] sm:$0xf] %vm4235, %v3885
  %4399 = vst.msk [vmem:[%s3 + $0x28c] sm:$0xf] %vm4235, %v3886
  %4400 = vst.msk [vmem:[%s3 + $0x290] sm:$0xf] %vm4235, %v3887
  %4401 = vst.msk [vmem:[%s3 + $0x294] sm:$0xf] %vm4235, %v3888
  %4402 = vst.msk [vmem:[%s3 + $0x298] sm:$0xf] %vm4235, %v3889
  %4403 = vst.msk [vmem:[%s3 + $0x29c] sm:$0xf] %vm4235, %v3890
  %4404 = vst.msk [vmem:[%s3 + $0x2a0] sm:$0xf] %vm4235, %v3891
  %4405 = vst.msk [vmem:[%s3 + $0x2a4] sm:$0xf] %vm4235, %v3892
  %4406 = vst.msk [vmem:[%s3 + $0x2a8] sm:$0xf] %vm4235, %v3893
  %4407 = vst.msk [vmem:[%s3 + $0x2ac] sm:$0xf] %vm4235, %v3894
  %4408 = vst.msk [vmem:[%s3 + $0x2b0] sm:$0xf] %vm4235, %v3895
  %4409 = vst.msk [vmem:[%s3 + $0x2b4] sm:$0xf] %vm4235, %v3896
  %4410 = vst.msk [vmem:[%s3 + $0x2b8] sm:$0xf] %vm4235, %v3897
  %4411 = vst.msk [vmem:[%s3 + $0x2bc] sm:$0xf] %vm4235, %v3898
  %4412 = vst.msk [vmem:[%s3 + $0x2c0] sm:$0xf] %vm4235, %v3899
  %4413 = vst.msk [vmem:[%s3 + $0x2c4] sm:$0xf] %vm4235, %v3900
  %4414 = vst.msk [vmem:[%s3 + $0x2c8] sm:$0xf] %vm4235, %v3901
  %4415 = vst.msk [vmem:[%s3 + $0x2cc] sm:$0xf] %vm4235, %v3902
  %4416 = vst.msk [vmem:[%s3 + $0x2d0] sm:$0xf] %vm4235, %v3903
  %4417 = vst.msk [vmem:[%s3 + $0x2d4] sm:$0xf] %vm4235, %v3904
  %4418 = vst.msk [vmem:[%s3 + $0x2d8] sm:$0xf] %vm4235, %v3905
  %4419 = vst.msk [vmem:[%s3 + $0x2dc] sm:$0xf] %vm4235, %v3906
  %4420 = vst.msk [vmem:[%s3 + $0x2e0] sm:$0xf] %vm4235, %v3907
  %4421 = vst.msk [vmem:[%s3 + $0x2e4] sm:$0xf] %vm4235, %v3908
  %4422 = vst.msk [vmem:[%s3 + $0x2e8] sm:$0xf] %vm4235, %v3909
  %4423 = vst.msk [vmem:[%s3 + $0x2ec] sm:$0xf] %vm4235, %v3910
  %4424 = vst.msk [vmem:[%s3 + $0x2f0] sm:$0xf] %vm4235, %v3911
  %4425 = vst.msk [vmem:[%s3 + $0x2f4] sm:$0xf] %vm4235, %v3912
  %4426 = vst.msk [vmem:[%s3 + $0x2f8] sm:$0xf] %vm4235, %v3913
  %4427 = vst.msk [vmem:[%s3 + $0x2fc] sm:$0xf] %vm4235, %v3914
  %4428 = vst.msk [vmem:[%s3 + $0x300] sm:$0xf] %vm4235, %v3915
  %4429 = vst.msk [vmem:[%s3 + $0x304] sm:$0xf] %vm4235, %v3916
  %4430 = vst.msk [vmem:[%s3 + $0x308] sm:$0xf] %vm4235, %v3917
  %4431 = vst.msk [vmem:[%s3 + $0x30c] sm:$0xf] %vm4235, %v3918
  %4432 = vst.msk [vmem:[%s3 + $0x310] sm:$0xf] %vm4235, %v3919
  %4433 = vst.msk [vmem:[%s3 + $0x314] sm:$0xf] %vm4235, %v3920
  %4434 = vst.msk [vmem:[%s3 + $0x318] sm:$0xf] %vm4235, %v3921
  %4435 = vst.msk [vmem:[%s3 + $0x31c] sm:$0xf] %vm4235, %v3922
  %4436 = vst.msk [vmem:[%s3 + $0x320] sm:$0xf] %vm4235, %v3923
  %4437 = vst.msk [vmem:[%s3 + $0x324] sm:$0xf] %vm4235, %v3924
  %4438 = vst.msk [vmem:[%s3 + $0x328] sm:$0xf] %vm4235, %v3925
  %4439 = vst.msk [vmem:[%s3 + $0x32c] sm:$0xf] %vm4235, %v3926
  %4440 = vst.msk [vmem:[%s3 + $0x330] sm:$0xf] %vm4235, %v3927
  %4441 = vst.msk [vmem:[%s3 + $0x334] sm:$0xf] %vm4235, %v3928
  %4442 = vst.msk [vmem:[%s3 + $0x338] sm:$0xf] %vm4235, %v3929
  %4443 = vst.msk [vmem:[%s3 + $0x33c] sm:$0xf] %vm4235, %v3930
  %4444 = vst.msk [vmem:[%s3 + $0x340] sm:$0xf] %vm4235, %v3931
  %4445 = vst.msk [vmem:[%s3 + $0x344] sm:$0xf] %vm4235, %v3932
  %4446 = vst.msk [vmem:[%s3 + $0x348] sm:$0xf] %vm4235, %v3933
  %4447 = vst.msk [vmem:[%s3 + $0x34c] sm:$0xf] %vm4235, %v3934
  %4448 = vst.msk [vmem:[%s3 + $0x350] sm:$0xf] %vm4235, %v3935
  %4449 = vst.msk [vmem:[%s3 + $0x354] sm:$0xf] %vm4235, %v3936
  %4450 = vst.msk [vmem:[%s3 + $0x358] sm:$0xf] %vm4235, %v3937
  %4451 = vst.msk [vmem:[%s3 + $0x35c] sm:$0xf] %vm4235, %v3938
  %4452 = vst.msk [vmem:[%s3 + $0x360] sm:$0xf] %vm4235, %v3939
  %4453 = vst.msk [vmem:[%s3 + $0x364] sm:$0xf] %vm4235, %v3940
  %4454 = vst.msk [vmem:[%s3 + $0x368] sm:$0xf] %vm4235, %v3941
  %4455 = vst.msk [vmem:[%s3 + $0x36c] sm:$0xf] %vm4235, %v3942
  %4456 = vst.msk [vmem:[%s3 + $0x370] sm:$0xf] %vm4235, %v3943
  %4457 = vst.msk [vmem:[%s3 + $0x374] sm:$0xf] %vm4235, %v3944
  %4458 = vst.msk [vmem:[%s3 + $0x378] sm:$0xf] %vm4235, %v3945
  %4459 = vst.msk [vmem:[%s3 + $0x37c] sm:$0xf] %vm4235, %v3946
  %4460 = vst.msk [vmem:[%s3 + $0x380] sm:$0xf] %vm4235, %v3947
  %4461 = vst.msk [vmem:[%s3 + $0x384] sm:$0xf] %vm4235, %v3948
  %4462 = vst.msk [vmem:[%s3 + $0x388] sm:$0xf] %vm4235, %v3949
  %4463 = vst.msk [vmem:[%s3 + $0x38c] sm:$0xf] %vm4235, %v3950
  %4464 = vst.msk [vmem:[%s3 + $0x390] sm:$0xf] %vm4235, %v3951
  %4465 = vst.msk [vmem:[%s3 + $0x394] sm:$0xf] %vm4235, %v3952
  %4466 = vst.msk [vmem:[%s3 + $0x398] sm:$0xf] %vm4235, %v3953
  %4467 = vst.msk [vmem:[%s3 + $0x39c] sm:$0xf] %vm4235, %v3954
  %4468 = vst.msk [vmem:[%s3 + $0x3a0] sm:$0xf] %vm4235, %v3955
  %4469 = vst.msk [vmem:[%s3 + $0x3a4] sm:$0xf] %vm4235, %v3956
  %4470 = vst.msk [vmem:[%s3 + $0x3a8] sm:$0xf] %vm4235, %v3957
  %4471 = vst.msk [vmem:[%s3 + $0x3ac] sm:$0xf] %vm4235, %v3958
  %4472 = vst.msk [vmem:[%s3 + $0x3b0] sm:$0xf] %vm4235, %v3959
  %4473 = vst.msk [vmem:[%s3 + $0x3b4] sm:$0xf] %vm4235, %v3960
  %4474 = vst.msk [vmem:[%s3 + $0x3b8] sm:$0xf] %vm4235, %v3961
  %4475 = vst.msk [vmem:[%s3 + $0x3bc] sm:$0xf] %vm4235, %v3962
  %4476 = vst.msk [vmem:[%s3 + $0x3c0] sm:$0xf] %vm4235, %v3963
  %4477 = vst.msk [vmem:[%s3 + $0x3c4] sm:$0xf] %vm4235, %v3964
  %4478 = vst.msk [vmem:[%s3 + $0x3c8] sm:$0xf] %vm4235, %v3965
  %4479 = vst.msk [vmem:[%s3 + $0x3cc] sm:$0xf] %vm4235, %v3966
  %4480 = vst.msk [vmem:[%s3 + $0x3d0] sm:$0xf] %vm4235, %v3967
  %4481 = vst.msk [vmem:[%s3 + $0x3d4] sm:$0xf] %vm4235, %v3968
  %4482 = vst.msk [vmem:[%s3 + $0x3d8] sm:$0xf] %vm4235, %v3969
  %4483 = vst.msk [vmem:[%s3 + $0x3dc] sm:$0xf] %vm4235, %v3970
  %4484 = vst.msk [vmem:[%s3 + $0x3e0] sm:$0xf] %vm4235, %v3971
  %4485 = vst.msk [vmem:[%s3 + $0x3e4] sm:$0xf] %vm4235, %v3972
  %4486 = vst.msk [vmem:[%s3 + $0x3e8] sm:$0xf] %vm4235, %v3973
  %4487 = vst.msk [vmem:[%s3 + $0x3ec] sm:$0xf] %vm4235, %v3974
  %4488 = vst.msk [vmem:[%s3 + $0x3f0] sm:$0xf] %vm4235, %v3975
  %4489 = vst.msk [vmem:[%s3 + $0x3f4] sm:$0xf] %vm4235, %v3976
  %4490 = vst.msk [vmem:[%s3 + $0x3f8] sm:$0xf] %vm4235, %v3977
  %4491 = vst.msk [vmem:[%s3 + $0x3fc] sm:$0xf] %vm4235, %v3978
  // Predicated region
  $region14: #{tpu_custom_call.1} parent=0 // pred_check
    _
  $region15: #{tpu_custom_call.1} parent=0 // pred_check_branch
    %4493 = sbr.rel (0) target = $region17
  $region16: #{tpu_custom_call.1} parent=0 // pred_region
    _
  $region17: #{tpu_custom_call.1} parent=0 // pred_fallthru
    _
  // Predicated region
  $region18: #{tpu_custom_call.1} parent=0 // pred_check
    _
  $region19: #{tpu_custom_call.1} parent=0 // pred_check_branch
    %4495 = sbr.rel (0) target = $region21
  $region20: #{tpu_custom_call.1} parent=0 // pred_region
    _
  $region21: #{tpu_custom_call.1} parent=0 // pred_fallthru
    _

</llo_original>
